<compile_context>
chip_gen: v7x
topology: tpu7x:2x2x1
jax: 0.10.0
libtpu: 0.0.40
codegen_flags: <defaults>
</compile_context>

<pallas_src>
import functools

import jax
import jax.numpy as jnp
from jax import lax
from jax.experimental import pallas as pl
from jax.experimental.pallas import tpu as pltpu


_NT_DIMS = (((1,), (1,)), ((), ()))  # contract the last dim of both operands


def net_kernel(x_ref, wconv_ref, bconv_ref, wfc_ref, bfc_ref, out_ref, *, chunk):
    # x_ref:     (b_blk, H, W)      block of samples, single in-channel squeezed
    # wconv_ref: (32, 9)            conv weight (out_ch, kh*kw)
    # bconv_ref: (32, 1)            conv bias
    # wfc_ref:   (10, 9216)         fc weight, lane-dense (out_features, in)
    # bfc_ref:   (1, 10)            fc bias
    # out_ref:   (b_blk, 32*h_out, 10)  rows h-major: row = h*32 + c
    b_blk, h_in, _ = x_ref.shape
    h_out = h_in - 2
    n_ch = wconv_ref.shape[0]
    n_cls = out_ref.shape[-1]
    w_out = wfc_ref.shape[1]
    n_chunks = w_out // chunk
    cp = chunk + 2                       # halo for the 3-wide taps

    wconv = wconv_ref[...]               # (32, 9)  small, loop-invariant
    bconv = bconv_ref[...]               # (32, 1)

    def chunk_body(ci, logits):
        c0 = pl.multiple_of(ci * chunk, chunk)          # 256-aligned lane start
        wfc_c = wfc_ref[:, pl.ds(c0, chunk)]            # (10, chunk), aligned load
        new_logits = list(logits)
        for b in range(b_blk):
            for h in range(h_out):
                acc = None
                for ki in range(3):
                    # One aligned load per (input row, chunk); the +1/+2 lane
                    # offsets are in-register static slices of this value
                    # (no full-width lane-rotated slabs in VMEM).
                    row = x_ref[b, pl.ds(h + ki, 1), pl.ds(c0, cp)]   # (1, chunk+2)
                    for kj in range(3):
                        xs = row[:, kj:kj + chunk]                    # (1, chunk)
                        k = ki * 3 + kj
                        tap = wconv[:, k:k + 1] * xs                  # (32, chunk)
                        if acc is None:
                            acc = tap + bconv        # fold conv bias into tap 0
                        else:
                            acc = acc + tap
                act = jnp.maximum(acc, 0.0)                           # (32, chunk)
                # Partial FC contraction for this chunk on the MXU, accumulated
                # into a tiny (32, 10) f32 tile carried through the loop.
                part = lax.dot_general(act, wfc_c, _NT_DIMS,
                                       preferred_element_type=jnp.float32)
                idx = b * h_out + h
                new_logits[idx] = logits[idx] + part
        return tuple(new_logits)

    init = tuple(jnp.zeros((n_ch, n_cls), jnp.float32)
                 for _ in range(b_blk * h_out))
    logits = lax.fori_loop(0, n_chunks, chunk_body, init)

    bfc = bfc_ref[...]                                                # (1, 10)
    for b in range(b_blk):
        for h in range(h_out):
            z = logits[b * h_out + h] + bfc                           # (32, 10)
            # log_softmax over the 32-channel axis (PyTorch dim=1).
            m = jnp.max(z, axis=0, keepdims=True)
            s = z - m
            lse = jnp.log(jnp.sum(jnp.exp(s), axis=0, keepdims=True))
            out_ref[b, h * n_ch:(h + 1) * n_ch, :] = s - lse


def net_forward(x, conv_w, conv_b, fc_w, fc_b, *, chunk=256, samples_per_block=2):
    n, c, h, w = x.shape
    assert c == 1
    h_out = h - 2
    w_out = w - 2
    n_ch = conv_w.shape[0]      # 32
    n_cls = fc_w.shape[0]       # 10
    assert w_out == fc_w.shape[1], "input width must be fc in_features + 2"
    assert w_out % chunk == 0

    # Batch-block so per-step DMA/overhead is amortized and the grid stays even.
    b_blk = samples_per_block if (n % samples_per_block == 0) else 1

    x3 = x.reshape(n, h, w)                    # drop the single input channel
    wconv2d = conv_w.reshape(n_ch, 9)          # (32, 1, 3, 3) -> (32, 9)
    bconv2d = conv_b.reshape(n_ch, 1)
    bfc2d = fc_b.reshape(1, n_cls)
    # fc_w stays lane-dense as (10, 9216): contiguous, resident, no padded tile.

    kernel = functools.partial(net_kernel, chunk=chunk)

    out = pl.pallas_call(
        kernel,
        out_shape=jax.ShapeDtypeStruct((n, n_ch * h_out, n_cls), jnp.float32),
        grid_spec=pltpu.PrefetchScalarGridSpec(
            num_scalar_prefetch=0,
            grid=(n // b_blk,),
            in_specs=[
                pl.BlockSpec((b_blk, h, w), lambda i: (i, 0, 0)),
                pl.BlockSpec((n_ch, 9), lambda i: (0, 0)),        # resident
                pl.BlockSpec((n_ch, 1), lambda i: (0, 0)),        # resident
                pl.BlockSpec((n_cls, w_out), lambda i: (0, 0)),   # resident, lane-dense
                pl.BlockSpec((1, n_cls), lambda i: (0, 0)),       # resident
            ],
            out_specs=pl.BlockSpec((b_blk, n_ch * h_out, n_cls),
                                   lambda i: (i, 0, 0)),
        ),
        compiler_params=pltpu.CompilerParams(
            dimension_semantics=("parallel",),
            vmem_limit_bytes=16 * 1024 * 1024),
    )(x3, wconv2d, bconv2d, fc_w, bfc2d)

    # rows are h-major (row = h*32 + c): (n, h_out, 32, 10) -> (n, 32, h_out, 10).
    # This transpose is a few KB total; kept outside the kernel.
    return out.reshape(n, h_out, n_ch, n_cls).transpose(0, 2, 1, 3)


def ref_forward(x, conv_w, conv_b, fc_w, fc_b):
    # Pure-JAX reference of the exact PyTorch forward (no flatten before fc).
    y = jax.lax.conv_general_dilated(
        x, conv_w, window_strides=(1, 1), padding="VALID",
        dimension_numbers=("NCHW", "OIHW", "NCHW"))
    y = jnp.maximum(y + conv_b.reshape(1, -1, 1, 1), 0.0)
    z = jnp.einsum("nchw,ow->ncho", y, fc_w) + fc_b
    return jax.nn.log_softmax(z, axis=1)


if __name__ == "__main__":
    key = jax.random.PRNGKey(0)
    k_x, k_cw, k_cb, k_fw, k_fb = jax.random.split(key, 5)

    # conv output width = 9216 = fc in_features  ->  input width 9218.
    N, H, W = 4, 4, 9218
    x = jax.random.normal(k_x, (N, 1, H, W), dtype=jnp.float32)

    conv_w = 0.05 * jax.random.normal(k_cw, (32, 1, 3, 3), dtype=jnp.float32)
    conv_b = 0.05 * jax.random.normal(k_cb, (32,), dtype=jnp.float32)
    fc_w = 0.02 * jax.random.normal(k_fw, (10, 9216), dtype=jnp.float32)
    fc_b = 0.02 * jax.random.normal(k_fb, (10,), dtype=jnp.float32)

    out = jax.block_until_ready(net_forward(x, conv_w, conv_b, fc_w, fc_b))
    ref = jax.block_until_ready(ref_forward(x, conv_w, conv_b, fc_w, fc_b))

    assert out.shape == (N, 32, H - 2, 10)
    assert jnp.allclose(out, ref, atol=5e-4, rtol=5e-4), float(
        jnp.max(jnp.abs(out - ref)))

    print("KERNEL_OK")
</pallas_src>

<mosaic_0001>
module attributes {stable_mosaic.version = 11 : i64} {
  func.func @net_kernel(%arg0: i32, %arg1: memref<2x4x9218xf32, #tpu.memory_space<vmem>>, %arg2: memref<32x9xf32, #tpu.memory_space<vmem>>, %arg3: memref<32x1xf32, #tpu.memory_space<vmem>>, %arg4: memref<10x9216xf32, #tpu.memory_space<vmem>>, %arg5: memref<1x10xf32, #tpu.memory_space<vmem>>, %arg6: memref<2x64x10xf32, #tpu.memory_space<vmem>>) attributes {dimension_semantics = [#tpu.dimension_semantics<parallel>], iteration_bounds = array<i64: 2>, scalar_prefetch = 0 : i64, scratch_operands = 0 : i64, tpu.core_type = #tpu.core_type<tc>, window_params = [{transform_indices = @transform_0, window_bounds = array<i64: 2, 4, 9218>}, {pipeline_mode = #tpu.pipeline_mode<synchronous>, transform_indices = @transform_1, window_bounds = array<i64: 32, 9>}, {pipeline_mode = #tpu.pipeline_mode<synchronous>, transform_indices = @transform_2, window_bounds = array<i64: 32, 1>}, {pipeline_mode = #tpu.pipeline_mode<synchronous>, transform_indices = @transform_3, window_bounds = array<i64: 10, 9216>}, {pipeline_mode = #tpu.pipeline_mode<synchronous>, transform_indices = @transform_4, window_bounds = array<i64: 1, 10>}, {transform_indices = @transform_5, window_bounds = array<i64: 2, 64, 10>}]} {
    %c0 = arith.constant 0 : index
    %c0_0 = arith.constant 0 : index
    %0 = vector.load %arg2[%c0, %c0_0] : memref<32x9xf32, #tpu.memory_space<vmem>>, vector<32x9xf32>
    %c0_1 = arith.constant 0 : index
    %c0_2 = arith.constant 0 : index
    %1 = vector.load %arg3[%c0_1, %c0_2] : memref<32x1xf32, #tpu.memory_space<vmem>>, vector<32x1xf32>
    %cst = arith.constant 0.000000e+00 : f32
    %2 = vector.broadcast %cst : f32 to vector<32x10xf32>
    %cst_3 = arith.constant 0.000000e+00 : f32
    %3 = vector.broadcast %cst_3 : f32 to vector<32x10xf32>
    %cst_4 = arith.constant 0.000000e+00 : f32
    %4 = vector.broadcast %cst_4 : f32 to vector<32x10xf32>
    %cst_5 = arith.constant 0.000000e+00 : f32
    %5 = vector.broadcast %cst_5 : f32 to vector<32x10xf32>
    %c0_i32 = arith.constant 0 : i32
    %c36_i32 = arith.constant 36 : i32
    %6 = arith.addi %c0_i32, %c36_i32 : i32
    %c1_i32 = arith.constant 1 : i32
    %7:4 = scf.for %arg7 = %c0_i32 to %6 step %c1_i32 iter_args(%arg8 = %2, %arg9 = %3, %arg10 = %4, %arg11 = %5) -> (vector<32x10xf32>, vector<32x10xf32>, vector<32x10xf32>, vector<32x10xf32>)  : i32 {
      %c256_i32 = arith.constant 256 : i32
      %69 = arith.muli %arg7, %c256_i32 : i32
      %70 = tpu.assume_multiple %69, 256 : i32
      %c0_27 = arith.constant 0 : index
      %71 = arith.index_cast %70 : i32 to index
      %72 = vector.load %arg4[%c0_27, %71] : memref<10x9216xf32, #tpu.memory_space<vmem>>, vector<10x256xf32>
      %c0_28 = arith.constant 0 : index
      %c0_29 = arith.constant 0 : index
      %73 = arith.index_cast %70 : i32 to index
      %74 = vector.load %arg1[%c0_28, %c0_29, %73] : memref<2x4x9218xf32, #tpu.memory_space<vmem>>, vector<1x1x258xf32>
      %75 = vector.shape_cast %74 : vector<1x1x258xf32> to vector<1x258xf32>
      %76 = vector.extract_strided_slice %75 {offsets = [0, 0], sizes = [1, 256], strides = [1, 1]} : vector<1x258xf32> to vector<1x256xf32>
      %77 = vector.extract_strided_slice %0 {offsets = [0, 0], sizes = [32, 1], strides = [1, 1]} : vector<32x9xf32> to vector<32x1xf32>
      %78 = vector.broadcast %77 : vector<32x1xf32> to vector<32x256xf32>
      %79 = vector.broadcast %76 : vector<1x256xf32> to vector<32x256xf32>
      %80 = arith.mulf %78, %79 : vector<32x256xf32>
      %81 = vector.broadcast %1 : vector<32x1xf32> to vector<32x256xf32>
      %82 = arith.addf %80, %81 : vector<32x256xf32>
      %83 = vector.extract_strided_slice %75 {offsets = [0, 1], sizes = [1, 256], strides = [1, 1]} : vector<1x258xf32> to vector<1x256xf32>
      %84 = vector.extract_strided_slice %0 {offsets = [0, 1], sizes = [32, 1], strides = [1, 1]} : vector<32x9xf32> to vector<32x1xf32>
      %85 = vector.broadcast %84 : vector<32x1xf32> to vector<32x256xf32>
      %86 = vector.broadcast %83 : vector<1x256xf32> to vector<32x256xf32>
      %87 = arith.mulf %85, %86 : vector<32x256xf32>
      %88 = arith.addf %82, %87 : vector<32x256xf32>
      %89 = vector.extract_strided_slice %75 {offsets = [0, 2], sizes = [1, 256], strides = [1, 1]} : vector<1x258xf32> to vector<1x256xf32>
      %90 = vector.extract_strided_slice %0 {offsets = [0, 2], sizes = [32, 1], strides = [1, 1]} : vector<32x9xf32> to vector<32x1xf32>
      %91 = vector.broadcast %90 : vector<32x1xf32> to vector<32x256xf32>
      %92 = vector.broadcast %89 : vector<1x256xf32> to vector<32x256xf32>
      %93 = arith.mulf %91, %92 : vector<32x256xf32>
      %94 = arith.addf %88, %93 : vector<32x256xf32>
      %c0_30 = arith.constant 0 : index
      %c1_31 = arith.constant 1 : index
      %95 = arith.index_cast %70 : i32 to index
      %96 = vector.load %arg1[%c0_30, %c1_31, %95] : memref<2x4x9218xf32, #tpu.memory_space<vmem>>, vector<1x1x258xf32>
      %97 = vector.shape_cast %96 : vector<1x1x258xf32> to vector<1x258xf32>
      %98 = vector.extract_strided_slice %97 {offsets = [0, 0], sizes = [1, 256], strides = [1, 1]} : vector<1x258xf32> to vector<1x256xf32>
      %99 = vector.extract_strided_slice %0 {offsets = [0, 3], sizes = [32, 1], strides = [1, 1]} : vector<32x9xf32> to vector<32x1xf32>
      %100 = vector.broadcast %99 : vector<32x1xf32> to vector<32x256xf32>
      %101 = vector.broadcast %98 : vector<1x256xf32> to vector<32x256xf32>
      %102 = arith.mulf %100, %101 : vector<32x256xf32>
      %103 = arith.addf %94, %102 : vector<32x256xf32>
      %104 = vector.extract_strided_slice %97 {offsets = [0, 1], sizes = [1, 256], strides = [1, 1]} : vector<1x258xf32> to vector<1x256xf32>
      %105 = vector.extract_strided_slice %0 {offsets = [0, 4], sizes = [32, 1], strides = [1, 1]} : vector<32x9xf32> to vector<32x1xf32>
      %106 = vector.broadcast %105 : vector<32x1xf32> to vector<32x256xf32>
      %107 = vector.broadcast %104 : vector<1x256xf32> to vector<32x256xf32>
      %108 = arith.mulf %106, %107 : vector<32x256xf32>
      %109 = arith.addf %103, %108 : vector<32x256xf32>
      %110 = vector.extract_strided_slice %97 {offsets = [0, 2], sizes = [1, 256], strides = [1, 1]} : vector<1x258xf32> to vector<1x256xf32>
      %111 = vector.extract_strided_slice %0 {offsets = [0, 5], sizes = [32, 1], strides = [1, 1]} : vector<32x9xf32> to vector<32x1xf32>
      %112 = vector.broadcast %111 : vector<32x1xf32> to vector<32x256xf32>
      %113 = vector.broadcast %110 : vector<1x256xf32> to vector<32x256xf32>
      %114 = arith.mulf %112, %113 : vector<32x256xf32>
      %115 = arith.addf %109, %114 : vector<32x256xf32>
      %c0_32 = arith.constant 0 : index
      %c2 = arith.constant 2 : index
      %116 = arith.index_cast %70 : i32 to index
      %117 = vector.load %arg1[%c0_32, %c2, %116] : memref<2x4x9218xf32, #tpu.memory_space<vmem>>, vector<1x1x258xf32>
      %118 = vector.shape_cast %117 : vector<1x1x258xf32> to vector<1x258xf32>
      %119 = vector.extract_strided_slice %118 {offsets = [0, 0], sizes = [1, 256], strides = [1, 1]} : vector<1x258xf32> to vector<1x256xf32>
      %120 = vector.extract_strided_slice %0 {offsets = [0, 6], sizes = [32, 1], strides = [1, 1]} : vector<32x9xf32> to vector<32x1xf32>
      %121 = vector.broadcast %120 : vector<32x1xf32> to vector<32x256xf32>
      %122 = vector.broadcast %119 : vector<1x256xf32> to vector<32x256xf32>
      %123 = arith.mulf %121, %122 : vector<32x256xf32>
      %124 = arith.addf %115, %123 : vector<32x256xf32>
      %125 = vector.extract_strided_slice %118 {offsets = [0, 1], sizes = [1, 256], strides = [1, 1]} : vector<1x258xf32> to vector<1x256xf32>
      %126 = vector.extract_strided_slice %0 {offsets = [0, 7], sizes = [32, 1], strides = [1, 1]} : vector<32x9xf32> to vector<32x1xf32>
      %127 = vector.broadcast %126 : vector<32x1xf32> to vector<32x256xf32>
      %128 = vector.broadcast %125 : vector<1x256xf32> to vector<32x256xf32>
      %129 = arith.mulf %127, %128 : vector<32x256xf32>
      %130 = arith.addf %124, %129 : vector<32x256xf32>
      %131 = vector.extract_strided_slice %118 {offsets = [0, 2], sizes = [1, 256], strides = [1, 1]} : vector<1x258xf32> to vector<1x256xf32>
      %132 = vector.extract_strided_slice %0 {offsets = [0, 8], sizes = [32, 1], strides = [1, 1]} : vector<32x9xf32> to vector<32x1xf32>
      %133 = vector.broadcast %132 : vector<32x1xf32> to vector<32x256xf32>
      %134 = vector.broadcast %131 : vector<1x256xf32> to vector<32x256xf32>
      %135 = arith.mulf %133, %134 : vector<32x256xf32>
      %136 = arith.addf %130, %135 : vector<32x256xf32>
      %cst_33 = arith.constant 0.000000e+00 : f32
      %137 = vector.broadcast %cst_33 : f32 to vector<32x256xf32>
      %138 = arith.maximumf %136, %137 : vector<32x256xf32>
      %cst_34 = arith.constant dense<0.000000e+00> : vector<32x10xf32>
      %139 = tpu.matmul %138, %72, %cst_34 {dimension_numbers = #tpu.dot_dimension_numbers<[1], [1], [0], [0], [0, 0, 1, 0], [], []>} : vector<32x256xf32>, vector<10x256xf32>, vector<32x10xf32> -> vector<32x10xf32>
      %140 = arith.addf %arg8, %139 : vector<32x10xf32>
      %c0_35 = arith.constant 0 : index
      %c1_36 = arith.constant 1 : index
      %141 = arith.index_cast %70 : i32 to index
      %142 = vector.load %arg1[%c0_35, %c1_36, %141] : memref<2x4x9218xf32, #tpu.memory_space<vmem>>, vector<1x1x258xf32>
      %143 = vector.shape_cast %142 : vector<1x1x258xf32> to vector<1x258xf32>
      %144 = vector.extract_strided_slice %143 {offsets = [0, 0], sizes = [1, 256], strides = [1, 1]} : vector<1x258xf32> to vector<1x256xf32>
      %145 = vector.extract_strided_slice %0 {offsets = [0, 0], sizes = [32, 1], strides = [1, 1]} : vector<32x9xf32> to vector<32x1xf32>
      %146 = vector.broadcast %145 : vector<32x1xf32> to vector<32x256xf32>
      %147 = vector.broadcast %144 : vector<1x256xf32> to vector<32x256xf32>
      %148 = arith.mulf %146, %147 : vector<32x256xf32>
      %149 = vector.broadcast %1 : vector<32x1xf32> to vector<32x256xf32>
      %150 = arith.addf %148, %149 : vector<32x256xf32>
      %151 = vector.extract_strided_slice %143 {offsets = [0, 1], sizes = [1, 256], strides = [1, 1]} : vector<1x258xf32> to vector<1x256xf32>
      %152 = vector.extract_strided_slice %0 {offsets = [0, 1], sizes = [32, 1], strides = [1, 1]} : vector<32x9xf32> to vector<32x1xf32>
      %153 = vector.broadcast %152 : vector<32x1xf32> to vector<32x256xf32>
      %154 = vector.broadcast %151 : vector<1x256xf32> to vector<32x256xf32>
      %155 = arith.mulf %153, %154 : vector<32x256xf32>
      %156 = arith.addf %150, %155 : vector<32x256xf32>
      %157 = vector.extract_strided_slice %143 {offsets = [0, 2], sizes = [1, 256], strides = [1, 1]} : vector<1x258xf32> to vector<1x256xf32>
      %158 = vector.extract_strided_slice %0 {offsets = [0, 2], sizes = [32, 1], strides = [1, 1]} : vector<32x9xf32> to vector<32x1xf32>
      %159 = vector.broadcast %158 : vector<32x1xf32> to vector<32x256xf32>
      %160 = vector.broadcast %157 : vector<1x256xf32> to vector<32x256xf32>
      %161 = arith.mulf %159, %160 : vector<32x256xf32>
      %162 = arith.addf %156, %161 : vector<32x256xf32>
      %c0_37 = arith.constant 0 : index
      %c2_38 = arith.constant 2 : index
      %163 = arith.index_cast %70 : i32 to index
      %164 = vector.load %arg1[%c0_37, %c2_38, %163] : memref<2x4x9218xf32, #tpu.memory_space<vmem>>, vector<1x1x258xf32>
      %165 = vector.shape_cast %164 : vector<1x1x258xf32> to vector<1x258xf32>
      %166 = vector.extract_strided_slice %165 {offsets = [0, 0], sizes = [1, 256], strides = [1, 1]} : vector<1x258xf32> to vector<1x256xf32>
      %167 = vector.extract_strided_slice %0 {offsets = [0, 3], sizes = [32, 1], strides = [1, 1]} : vector<32x9xf32> to vector<32x1xf32>
      %168 = vector.broadcast %167 : vector<32x1xf32> to vector<32x256xf32>
      %169 = vector.broadcast %166 : vector<1x256xf32> to vector<32x256xf32>
      %170 = arith.mulf %168, %169 : vector<32x256xf32>
      %171 = arith.addf %162, %170 : vector<32x256xf32>
      %172 = vector.extract_strided_slice %165 {offsets = [0, 1], sizes = [1, 256], strides = [1, 1]} : vector<1x258xf32> to vector<1x256xf32>
      %173 = vector.extract_strided_slice %0 {offsets = [0, 4], sizes = [32, 1], strides = [1, 1]} : vector<32x9xf32> to vector<32x1xf32>
      %174 = vector.broadcast %173 : vector<32x1xf32> to vector<32x256xf32>
      %175 = vector.broadcast %172 : vector<1x256xf32> to vector<32x256xf32>
      %176 = arith.mulf %174, %175 : vector<32x256xf32>
      %177 = arith.addf %171, %176 : vector<32x256xf32>
      %178 = vector.extract_strided_slice %165 {offsets = [0, 2], sizes = [1, 256], strides = [1, 1]} : vector<1x258xf32> to vector<1x256xf32>
      %179 = vector.extract_strided_slice %0 {offsets = [0, 5], sizes = [32, 1], strides = [1, 1]} : vector<32x9xf32> to vector<32x1xf32>
      %180 = vector.broadcast %179 : vector<32x1xf32> to vector<32x256xf32>
      %181 = vector.broadcast %178 : vector<1x256xf32> to vector<32x256xf32>
      %182 = arith.mulf %180, %181 : vector<32x256xf32>
      %183 = arith.addf %177, %182 : vector<32x256xf32>
      %c0_39 = arith.constant 0 : index
      %c3 = arith.constant 3 : index
      %184 = arith.index_cast %70 : i32 to index
      %185 = vector.load %arg1[%c0_39, %c3, %184] : memref<2x4x9218xf32, #tpu.memory_space<vmem>>, vector<1x1x258xf32>
      %186 = vector.shape_cast %185 : vector<1x1x258xf32> to vector<1x258xf32>
      %187 = vector.extract_strided_slice %186 {offsets = [0, 0], sizes = [1, 256], strides = [1, 1]} : vector<1x258xf32> to vector<1x256xf32>
      %188 = vector.extract_strided_slice %0 {offsets = [0, 6], sizes = [32, 1], strides = [1, 1]} : vector<32x9xf32> to vector<32x1xf32>
      %189 = vector.broadcast %188 : vector<32x1xf32> to vector<32x256xf32>
      %190 = vector.broadcast %187 : vector<1x256xf32> to vector<32x256xf32>
      %191 = arith.mulf %189, %190 : vector<32x256xf32>
      %192 = arith.addf %183, %191 : vector<32x256xf32>
      %193 = vector.extract_strided_slice %186 {offsets = [0, 1], sizes = [1, 256], strides = [1, 1]} : vector<1x258xf32> to vector<1x256xf32>
      %194 = vector.extract_strided_slice %0 {offsets = [0, 7], sizes = [32, 1], strides = [1, 1]} : vector<32x9xf32> to vector<32x1xf32>
      %195 = vector.broadcast %194 : vector<32x1xf32> to vector<32x256xf32>
      %196 = vector.broadcast %193 : vector<1x256xf32> to vector<32x256xf32>
      %197 = arith.mulf %195, %196 : vector<32x256xf32>
      %198 = arith.addf %192, %197 : vector<32x256xf32>
      %199 = vector.extract_strided_slice %186 {offsets = [0, 2], sizes = [1, 256], strides = [1, 1]} : vector<1x258xf32> to vector<1x256xf32>
      %200 = vector.extract_strided_slice %0 {offsets = [0, 8], sizes = [32, 1], strides = [1, 1]} : vector<32x9xf32> to vector<32x1xf32>
      %201 = vector.broadcast %200 : vector<32x1xf32> to vector<32x256xf32>
      %202 = vector.broadcast %199 : vector<1x256xf32> to vector<32x256xf32>
      %203 = arith.mulf %201, %202 : vector<32x256xf32>
      %204 = arith.addf %198, %203 : vector<32x256xf32>
      %cst_40 = arith.constant 0.000000e+00 : f32
      %205 = vector.broadcast %cst_40 : f32 to vector<32x256xf32>
      %206 = arith.maximumf %204, %205 : vector<32x256xf32>
      %cst_41 = arith.constant dense<0.000000e+00> : vector<32x10xf32>
      %207 = tpu.matmul %206, %72, %cst_41 {dimension_numbers = #tpu.dot_dimension_numbers<[1], [1], [0], [0], [0, 0, 1, 0], [], []>} : vector<32x256xf32>, vector<10x256xf32>, vector<32x10xf32> -> vector<32x10xf32>
      %208 = arith.addf %arg9, %207 : vector<32x10xf32>
      %c1_42 = arith.constant 1 : index
      %c0_43 = arith.constant 0 : index
      %209 = arith.index_cast %70 : i32 to index
      %210 = vector.load %arg1[%c1_42, %c0_43, %209] : memref<2x4x9218xf32, #tpu.memory_space<vmem>>, vector<1x1x258xf32>
      %211 = vector.shape_cast %210 : vector<1x1x258xf32> to vector<1x258xf32>
      %212 = vector.extract_strided_slice %211 {offsets = [0, 0], sizes = [1, 256], strides = [1, 1]} : vector<1x258xf32> to vector<1x256xf32>
      %213 = vector.extract_strided_slice %0 {offsets = [0, 0], sizes = [32, 1], strides = [1, 1]} : vector<32x9xf32> to vector<32x1xf32>
      %214 = vector.broadcast %213 : vector<32x1xf32> to vector<32x256xf32>
      %215 = vector.broadcast %212 : vector<1x256xf32> to vector<32x256xf32>
      %216 = arith.mulf %214, %215 : vector<32x256xf32>
      %217 = vector.broadcast %1 : vector<32x1xf32> to vector<32x256xf32>
      %218 = arith.addf %216, %217 : vector<32x256xf32>
      %219 = vector.extract_strided_slice %211 {offsets = [0, 1], sizes = [1, 256], strides = [1, 1]} : vector<1x258xf32> to vector<1x256xf32>
      %220 = vector.extract_strided_slice %0 {offsets = [0, 1], sizes = [32, 1], strides = [1, 1]} : vector<32x9xf32> to vector<32x1xf32>
      %221 = vector.broadcast %220 : vector<32x1xf32> to vector<32x256xf32>
      %222 = vector.broadcast %219 : vector<1x256xf32> to vector<32x256xf32>
      %223 = arith.mulf %221, %222 : vector<32x256xf32>
      %224 = arith.addf %218, %223 : vector<32x256xf32>
      %225 = vector.extract_strided_slice %211 {offsets = [0, 2], sizes = [1, 256], strides = [1, 1]} : vector<1x258xf32> to vector<1x256xf32>
      %226 = vector.extract_strided_slice %0 {offsets = [0, 2], sizes = [32, 1], strides = [1, 1]} : vector<32x9xf32> to vector<32x1xf32>
      %227 = vector.broadcast %226 : vector<32x1xf32> to vector<32x256xf32>
      %228 = vector.broadcast %225 : vector<1x256xf32> to vector<32x256xf32>
      %229 = arith.mulf %227, %228 : vector<32x256xf32>
      %230 = arith.addf %224, %229 : vector<32x256xf32>
      %c1_44 = arith.constant 1 : index
      %c1_45 = arith.constant 1 : index
      %231 = arith.index_cast %70 : i32 to index
      %232 = vector.load %arg1[%c1_44, %c1_45, %231] : memref<2x4x9218xf32, #tpu.memory_space<vmem>>, vector<1x1x258xf32>
      %233 = vector.shape_cast %232 : vector<1x1x258xf32> to vector<1x258xf32>
      %234 = vector.extract_strided_slice %233 {offsets = [0, 0], sizes = [1, 256], strides = [1, 1]} : vector<1x258xf32> to vector<1x256xf32>
      %235 = vector.extract_strided_slice %0 {offsets = [0, 3], sizes = [32, 1], strides = [1, 1]} : vector<32x9xf32> to vector<32x1xf32>
      %236 = vector.broadcast %235 : vector<32x1xf32> to vector<32x256xf32>
      %237 = vector.broadcast %234 : vector<1x256xf32> to vector<32x256xf32>
      %238 = arith.mulf %236, %237 : vector<32x256xf32>
      %239 = arith.addf %230, %238 : vector<32x256xf32>
      %240 = vector.extract_strided_slice %233 {offsets = [0, 1], sizes = [1, 256], strides = [1, 1]} : vector<1x258xf32> to vector<1x256xf32>
      %241 = vector.extract_strided_slice %0 {offsets = [0, 4], sizes = [32, 1], strides = [1, 1]} : vector<32x9xf32> to vector<32x1xf32>
      %242 = vector.broadcast %241 : vector<32x1xf32> to vector<32x256xf32>
      %243 = vector.broadcast %240 : vector<1x256xf32> to vector<32x256xf32>
      %244 = arith.mulf %242, %243 : vector<32x256xf32>
      %245 = arith.addf %239, %244 : vector<32x256xf32>
      %246 = vector.extract_strided_slice %233 {offsets = [0, 2], sizes = [1, 256], strides = [1, 1]} : vector<1x258xf32> to vector<1x256xf32>
      %247 = vector.extract_strided_slice %0 {offsets = [0, 5], sizes = [32, 1], strides = [1, 1]} : vector<32x9xf32> to vector<32x1xf32>
      %248 = vector.broadcast %247 : vector<32x1xf32> to vector<32x256xf32>
      %249 = vector.broadcast %246 : vector<1x256xf32> to vector<32x256xf32>
      %250 = arith.mulf %248, %249 : vector<32x256xf32>
      %251 = arith.addf %245, %250 : vector<32x256xf32>
      %c1_46 = arith.constant 1 : index
      %c2_47 = arith.constant 2 : index
      %252 = arith.index_cast %70 : i32 to index
      %253 = vector.load %arg1[%c1_46, %c2_47, %252] : memref<2x4x9218xf32, #tpu.memory_space<vmem>>, vector<1x1x258xf32>
      %254 = vector.shape_cast %253 : vector<1x1x258xf32> to vector<1x258xf32>
      %255 = vector.extract_strided_slice %254 {offsets = [0, 0], sizes = [1, 256], strides = [1, 1]} : vector<1x258xf32> to vector<1x256xf32>
      %256 = vector.extract_strided_slice %0 {offsets = [0, 6], sizes = [32, 1], strides = [1, 1]} : vector<32x9xf32> to vector<32x1xf32>
      %257 = vector.broadcast %256 : vector<32x1xf32> to vector<32x256xf32>
      %258 = vector.broadcast %255 : vector<1x256xf32> to vector<32x256xf32>
      %259 = arith.mulf %257, %258 : vector<32x256xf32>
      %260 = arith.addf %251, %259 : vector<32x256xf32>
      %261 = vector.extract_strided_slice %254 {offsets = [0, 1], sizes = [1, 256], strides = [1, 1]} : vector<1x258xf32> to vector<1x256xf32>
      %262 = vector.extract_strided_slice %0 {offsets = [0, 7], sizes = [32, 1], strides = [1, 1]} : vector<32x9xf32> to vector<32x1xf32>
      %263 = vector.broadcast %262 : vector<32x1xf32> to vector<32x256xf32>
      %264 = vector.broadcast %261 : vector<1x256xf32> to vector<32x256xf32>
      %265 = arith.mulf %263, %264 : vector<32x256xf32>
      %266 = arith.addf %260, %265 : vector<32x256xf32>
      %267 = vector.extract_strided_slice %254 {offsets = [0, 2], sizes = [1, 256], strides = [1, 1]} : vector<1x258xf32> to vector<1x256xf32>
      %268 = vector.extract_strided_slice %0 {offsets = [0, 8], sizes = [32, 1], strides = [1, 1]} : vector<32x9xf32> to vector<32x1xf32>
      %269 = vector.broadcast %268 : vector<32x1xf32> to vector<32x256xf32>
      %270 = vector.broadcast %267 : vector<1x256xf32> to vector<32x256xf32>
      %271 = arith.mulf %269, %270 : vector<32x256xf32>
      %272 = arith.addf %266, %271 : vector<32x256xf32>
      %cst_48 = arith.constant 0.000000e+00 : f32
      %273 = vector.broadcast %cst_48 : f32 to vector<32x256xf32>
      %274 = arith.maximumf %272, %273 : vector<32x256xf32>
      %cst_49 = arith.constant dense<0.000000e+00> : vector<32x10xf32>
      %275 = tpu.matmul %274, %72, %cst_49 {dimension_numbers = #tpu.dot_dimension_numbers<[1], [1], [0], [0], [0, 0, 1, 0], [], []>} : vector<32x256xf32>, vector<10x256xf32>, vector<32x10xf32> -> vector<32x10xf32>
      %276 = arith.addf %arg10, %275 : vector<32x10xf32>
      %c1_50 = arith.constant 1 : index
      %c1_51 = arith.constant 1 : index
      %277 = arith.index_cast %70 : i32 to index
      %278 = vector.load %arg1[%c1_50, %c1_51, %277] : memref<2x4x9218xf32, #tpu.memory_space<vmem>>, vector<1x1x258xf32>
      %279 = vector.shape_cast %278 : vector<1x1x258xf32> to vector<1x258xf32>
      %280 = vector.extract_strided_slice %279 {offsets = [0, 0], sizes = [1, 256], strides = [1, 1]} : vector<1x258xf32> to vector<1x256xf32>
      %281 = vector.extract_strided_slice %0 {offsets = [0, 0], sizes = [32, 1], strides = [1, 1]} : vector<32x9xf32> to vector<32x1xf32>
      %282 = vector.broadcast %281 : vector<32x1xf32> to vector<32x256xf32>
      %283 = vector.broadcast %280 : vector<1x256xf32> to vector<32x256xf32>
      %284 = arith.mulf %282, %283 : vector<32x256xf32>
      %285 = vector.broadcast %1 : vector<32x1xf32> to vector<32x256xf32>
      %286 = arith.addf %284, %285 : vector<32x256xf32>
      %287 = vector.extract_strided_slice %279 {offsets = [0, 1], sizes = [1, 256], strides = [1, 1]} : vector<1x258xf32> to vector<1x256xf32>
      %288 = vector.extract_strided_slice %0 {offsets = [0, 1], sizes = [32, 1], strides = [1, 1]} : vector<32x9xf32> to vector<32x1xf32>
      %289 = vector.broadcast %288 : vector<32x1xf32> to vector<32x256xf32>
      %290 = vector.broadcast %287 : vector<1x256xf32> to vector<32x256xf32>
      %291 = arith.mulf %289, %290 : vector<32x256xf32>
      %292 = arith.addf %286, %291 : vector<32x256xf32>
      %293 = vector.extract_strided_slice %279 {offsets = [0, 2], sizes = [1, 256], strides = [1, 1]} : vector<1x258xf32> to vector<1x256xf32>
      %294 = vector.extract_strided_slice %0 {offsets = [0, 2], sizes = [32, 1], strides = [1, 1]} : vector<32x9xf32> to vector<32x1xf32>
      %295 = vector.broadcast %294 : vector<32x1xf32> to vector<32x256xf32>
      %296 = vector.broadcast %293 : vector<1x256xf32> to vector<32x256xf32>
      %297 = arith.mulf %295, %296 : vector<32x256xf32>
      %298 = arith.addf %292, %297 : vector<32x256xf32>
      %c1_52 = arith.constant 1 : index
      %c2_53 = arith.constant 2 : index
      %299 = arith.index_cast %70 : i32 to index
      %300 = vector.load %arg1[%c1_52, %c2_53, %299] : memref<2x4x9218xf32, #tpu.memory_space<vmem>>, vector<1x1x258xf32>
      %301 = vector.shape_cast %300 : vector<1x1x258xf32> to vector<1x258xf32>
      %302 = vector.extract_strided_slice %301 {offsets = [0, 0], sizes = [1, 256], strides = [1, 1]} : vector<1x258xf32> to vector<1x256xf32>
      %303 = vector.extract_strided_slice %0 {offsets = [0, 3], sizes = [32, 1], strides = [1, 1]} : vector<32x9xf32> to vector<32x1xf32>
      %304 = vector.broadcast %303 : vector<32x1xf32> to vector<32x256xf32>
      %305 = vector.broadcast %302 : vector<1x256xf32> to vector<32x256xf32>
      %306 = arith.mulf %304, %305 : vector<32x256xf32>
      %307 = arith.addf %298, %306 : vector<32x256xf32>
      %308 = vector.extract_strided_slice %301 {offsets = [0, 1], sizes = [1, 256], strides = [1, 1]} : vector<1x258xf32> to vector<1x256xf32>
      %309 = vector.extract_strided_slice %0 {offsets = [0, 4], sizes = [32, 1], strides = [1, 1]} : vector<32x9xf32> to vector<32x1xf32>
      %310 = vector.broadcast %309 : vector<32x1xf32> to vector<32x256xf32>
      %311 = vector.broadcast %308 : vector<1x256xf32> to vector<32x256xf32>
      %312 = arith.mulf %310, %311 : vector<32x256xf32>
      %313 = arith.addf %307, %312 : vector<32x256xf32>
      %314 = vector.extract_strided_slice %301 {offsets = [0, 2], sizes = [1, 256], strides = [1, 1]} : vector<1x258xf32> to vector<1x256xf32>
      %315 = vector.extract_strided_slice %0 {offsets = [0, 5], sizes = [32, 1], strides = [1, 1]} : vector<32x9xf32> to vector<32x1xf32>
      %316 = vector.broadcast %315 : vector<32x1xf32> to vector<32x256xf32>
      %317 = vector.broadcast %314 : vector<1x256xf32> to vector<32x256xf32>
      %318 = arith.mulf %316, %317 : vector<32x256xf32>
      %319 = arith.addf %313, %318 : vector<32x256xf32>
      %c1_54 = arith.constant 1 : index
      %c3_55 = arith.constant 3 : index
      %320 = arith.index_cast %70 : i32 to index
      %321 = vector.load %arg1[%c1_54, %c3_55, %320] : memref<2x4x9218xf32, #tpu.memory_space<vmem>>, vector<1x1x258xf32>
      %322 = vector.shape_cast %321 : vector<1x1x258xf32> to vector<1x258xf32>
      %323 = vector.extract_strided_slice %322 {offsets = [0, 0], sizes = [1, 256], strides = [1, 1]} : vector<1x258xf32> to vector<1x256xf32>
      %324 = vector.extract_strided_slice %0 {offsets = [0, 6], sizes = [32, 1], strides = [1, 1]} : vector<32x9xf32> to vector<32x1xf32>
      %325 = vector.broadcast %324 : vector<32x1xf32> to vector<32x256xf32>
      %326 = vector.broadcast %323 : vector<1x256xf32> to vector<32x256xf32>
      %327 = arith.mulf %325, %326 : vector<32x256xf32>
      %328 = arith.addf %319, %327 : vector<32x256xf32>
      %329 = vector.extract_strided_slice %322 {offsets = [0, 1], sizes = [1, 256], strides = [1, 1]} : vector<1x258xf32> to vector<1x256xf32>
      %330 = vector.extract_strided_slice %0 {offsets = [0, 7], sizes = [32, 1], strides = [1, 1]} : vector<32x9xf32> to vector<32x1xf32>
      %331 = vector.broadcast %330 : vector<32x1xf32> to vector<32x256xf32>
      %332 = vector.broadcast %329 : vector<1x256xf32> to vector<32x256xf32>
      %333 = arith.mulf %331, %332 : vector<32x256xf32>
      %334 = arith.addf %328, %333 : vector<32x256xf32>
      %335 = vector.extract_strided_slice %322 {offsets = [0, 2], sizes = [1, 256], strides = [1, 1]} : vector<1x258xf32> to vector<1x256xf32>
      %336 = vector.extract_strided_slice %0 {offsets = [0, 8], sizes = [32, 1], strides = [1, 1]} : vector<32x9xf32> to vector<32x1xf32>
      %337 = vector.broadcast %336 : vector<32x1xf32> to vector<32x256xf32>
      %338 = vector.broadcast %335 : vector<1x256xf32> to vector<32x256xf32>
      %339 = arith.mulf %337, %338 : vector<32x256xf32>
      %340 = arith.addf %334, %339 : vector<32x256xf32>
      %cst_56 = arith.constant 0.000000e+00 : f32
      %341 = vector.broadcast %cst_56 : f32 to vector<32x256xf32>
      %342 = arith.maximumf %340, %341 : vector<32x256xf32>
      %cst_57 = arith.constant dense<0.000000e+00> : vector<32x10xf32>
      %343 = tpu.matmul %342, %72, %cst_57 {dimension_numbers = #tpu.dot_dimension_numbers<[1], [1], [0], [0], [0, 0, 1, 0], [], []>} : vector<32x256xf32>, vector<10x256xf32>, vector<32x10xf32> -> vector<32x10xf32>
      %344 = arith.addf %arg11, %343 : vector<32x10xf32>
      scf.yield %140, %208, %276, %344 : vector<32x10xf32>, vector<32x10xf32>, vector<32x10xf32>, vector<32x10xf32>
    }
    %c36_i32_6 = arith.constant 36 : i32
    %c0_7 = arith.constant 0 : index
    %c0_8 = arith.constant 0 : index
    %8 = vector.load %arg5[%c0_7, %c0_8] : memref<1x10xf32, #tpu.memory_space<vmem>>, vector<1x10xf32>
    %9 = vector.broadcast %8 : vector<1x10xf32> to vector<32x10xf32>
    %10 = arith.addf %7#0, %9 : vector<32x10xf32>
    %cst_9 = arith.constant dense<0xFF800000> : vector<10xf32>
    %11 = vector.multi_reduction <maximumf>, %10, %cst_9 [0] : vector<32x10xf32> to vector<10xf32>
    %12 = vector.shape_cast %11 : vector<10xf32> to vector<1x10xf32>
    %13 = vector.broadcast %12 : vector<1x10xf32> to vector<32x10xf32>
    %14 = arith.subf %10, %13 : vector<32x10xf32>
    %15 = math.exp %14 : vector<32x10xf32>
    %cst_10 = arith.constant dense<0.000000e+00> : vector<10xf32>
    %16 = vector.multi_reduction <add>, %15, %cst_10 [0] : vector<32x10xf32> to vector<10xf32>
    %17 = vector.shape_cast %16 : vector<10xf32> to vector<1x10xf32>
    %18 = math.log %17 : vector<1x10xf32>
    %19 = vector.broadcast %18 : vector<1x10xf32> to vector<32x10xf32>
    %20 = arith.subf %14, %19 : vector<32x10xf32>
    %c0_11 = arith.constant 0 : index
    %c0_12 = arith.constant 0 : index
    %c0_13 = arith.constant 0 : index
    %21 = vector.load %arg6[%c0_11, %c0_12, %c0_13] : memref<2x64x10xf32, #tpu.memory_space<vmem>>, vector<1x32x10xf32>
    %22 = vector.shape_cast %21 : vector<1x32x10xf32> to vector<32x10xf32>
    %23 = vector.shape_cast %20 : vector<32x10xf32> to vector<1x32x10xf32>
    tpu.vector_store %arg6[%c0_11, %c0_12, %c0_13], %23 {strides = array<i32>} : memref<2x64x10xf32, #tpu.memory_space<vmem>>, vector<1x32x10xf32>,
    %24 = vector.broadcast %8 : vector<1x10xf32> to vector<32x10xf32>
    %25 = arith.addf %7#1, %24 : vector<32x10xf32>
    %cst_14 = arith.constant dense<0xFF800000> : vector<10xf32>
    %26 = vector.multi_reduction <maximumf>, %25, %cst_14 [0] : vector<32x10xf32> to vector<10xf32>
    %27 = vector.shape_cast %26 : vector<10xf32> to vector<1x10xf32>
    %28 = vector.broadcast %27 : vector<1x10xf32> to vector<32x10xf32>
    %29 = arith.subf %25, %28 : vector<32x10xf32>
    %30 = math.exp %29 : vector<32x10xf32>
    %cst_15 = arith.constant dense<0.000000e+00> : vector<10xf32>
    %31 = vector.multi_reduction <add>, %30, %cst_15 [0] : vector<32x10xf32> to vector<10xf32>
    %32 = vector.shape_cast %31 : vector<10xf32> to vector<1x10xf32>
    %33 = math.log %32 : vector<1x10xf32>
    %34 = vector.broadcast %33 : vector<1x10xf32> to vector<32x10xf32>
    %35 = arith.subf %29, %34 : vector<32x10xf32>
    %c0_16 = arith.constant 0 : index
    %c32 = arith.constant 32 : index
    %c0_17 = arith.constant 0 : index
    %36 = vector.load %arg6[%c0_16, %c32, %c0_17] : memref<2x64x10xf32, #tpu.memory_space<vmem>>, vector<1x32x10xf32>
    %37 = vector.shape_cast %36 : vector<1x32x10xf32> to vector<32x10xf32>
    %38 = vector.shape_cast %35 : vector<32x10xf32> to vector<1x32x10xf32>
    tpu.vector_store %arg6[%c0_16, %c32, %c0_17], %38 {strides = array<i32>} : memref<2x64x10xf32, #tpu.memory_space<vmem>>, vector<1x32x10xf32>,
    %39 = vector.broadcast %8 : vector<1x10xf32> to vector<32x10xf32>
    %40 = arith.addf %7#2, %39 : vector<32x10xf32>
    %cst_18 = arith.constant dense<0xFF800000> : vector<10xf32>
    %41 = vector.multi_reduction <maximumf>, %40, %cst_18 [0] : vector<32x10xf32> to vector<10xf32>
    %42 = vector.shape_cast %41 : vector<10xf32> to vector<1x10xf32>
    %43 = vector.broadcast %42 : vector<1x10xf32> to vector<32x10xf32>
    %44 = arith.subf %40, %43 : vector<32x10xf32>
    %45 = math.exp %44 : vector<32x10xf32>
    %cst_19 = arith.constant dense<0.000000e+00> : vector<10xf32>
    %46 = vector.multi_reduction <add>, %45, %cst_19 [0] : vector<32x10xf32> to vector<10xf32>
    %47 = vector.shape_cast %46 : vector<10xf32> to vector<1x10xf32>
    %48 = math.log %47 : vector<1x10xf32>
    %49 = vector.broadcast %48 : vector<1x10xf32> to vector<32x10xf32>
    %50 = arith.subf %44, %49 : vector<32x10xf32>
    %c1 = arith.constant 1 : index
    %c0_20 = arith.constant 0 : index
    %c0_21 = arith.constant 0 : index
    %51 = vector.load %arg6[%c1, %c0_20, %c0_21] : memref<2x64x10xf32, #tpu.memory_space<vmem>>, vector<1x32x10xf32>
    %52 = vector.shape_cast %51 : vector<1x32x10xf32> to vector<32x10xf32>
    %53 = vector.shape_cast %50 : vector<32x10xf32> to vector<1x32x10xf32>
    tpu.vector_store %arg6[%c1, %c0_20, %c0_21], %53 {strides = array<i32>} : memref<2x64x10xf32, #tpu.memory_space<vmem>>, vector<1x32x10xf32>,
    %54 = vector.broadcast %8 : vector<1x10xf32> to vector<32x10xf32>
    %55 = arith.addf %7#3, %54 : vector<32x10xf32>
    %cst_22 = arith.constant dense<0xFF800000> : vector<10xf32>
    %56 = vector.multi_reduction <maximumf>, %55, %cst_22 [0] : vector<32x10xf32> to vector<10xf32>
    %57 = vector.shape_cast %56 : vector<10xf32> to vector<1x10xf32>
    %58 = vector.broadcast %57 : vector<1x10xf32> to vector<32x10xf32>
    %59 = arith.subf %55, %58 : vector<32x10xf32>
    %60 = math.exp %59 : vector<32x10xf32>
    %cst_23 = arith.constant dense<0.000000e+00> : vector<10xf32>
    %61 = vector.multi_reduction <add>, %60, %cst_23 [0] : vector<32x10xf32> to vector<10xf32>
    %62 = vector.shape_cast %61 : vector<10xf32> to vector<1x10xf32>
    %63 = math.log %62 : vector<1x10xf32>
    %64 = vector.broadcast %63 : vector<1x10xf32> to vector<32x10xf32>
    %65 = arith.subf %59, %64 : vector<32x10xf32>
    %c1_24 = arith.constant 1 : index
    %c32_25 = arith.constant 32 : index
    %c0_26 = arith.constant 0 : index
    %66 = vector.load %arg6[%c1_24, %c32_25, %c0_26] : memref<2x64x10xf32, #tpu.memory_space<vmem>>, vector<1x32x10xf32>
    %67 = vector.shape_cast %66 : vector<1x32x10xf32> to vector<32x10xf32>
    %68 = vector.shape_cast %65 : vector<32x10xf32> to vector<1x32x10xf32>
    tpu.vector_store %arg6[%c1_24, %c32_25, %c0_26], %68 {strides = array<i32>} : memref<2x64x10xf32, #tpu.memory_space<vmem>>, vector<1x32x10xf32>,
    return
  }
  func.func @transform_0(%arg0: i32) -> (i32, i32, i32) {
    %c0_i32 = arith.constant 0 : i32
    %c0_i32_0 = arith.constant 0 : i32
    %c0_i32_1 = arith.constant 0 : i32
    return %arg0, %c0_i32, %c0_i32_0 : i32, i32, i32
  }
  func.func @transform_1(%arg0: i32) -> (i32, i32) {
    %c0_i32 = arith.constant 0 : i32
    %c0_i32_0 = arith.constant 0 : i32
    %c0_i32_1 = arith.constant 0 : i32
    return %c0_i32, %c0_i32_0 : i32, i32
  }
  func.func @transform_2(%arg0: i32) -> (i32, i32) {
    %c0_i32 = arith.constant 0 : i32
    %c0_i32_0 = arith.constant 0 : i32
    %c0_i32_1 = arith.constant 0 : i32
    return %c0_i32, %c0_i32_0 : i32, i32
  }
  func.func @transform_3(%arg0: i32) -> (i32, i32) {
    %c0_i32 = arith.constant 0 : i32
    %c0_i32_0 = arith.constant 0 : i32
    %c0_i32_1 = arith.constant 0 : i32
    return %c0_i32, %c0_i32_0 : i32, i32
  }
  func.func @transform_4(%arg0: i32) -> (i32, i32) {
    %c0_i32 = arith.constant 0 : i32
    %c0_i32_0 = arith.constant 0 : i32
    %c0_i32_1 = arith.constant 0 : i32
    return %c0_i32, %c0_i32_0 : i32, i32
  }
  func.func @transform_5(%arg0: i32) -> (i32, i32, i32) {
    %c0_i32 = arith.constant 0 : i32
    %c0_i32_0 = arith.constant 0 : i32
    %c0_i32_1 = arith.constant 0 : i32
    return %arg0, %c0_i32, %c0_i32_0 : i32, i32, i32
  }
}

</mosaic_0001>

<llo_original>
// kernel: tpu_custom_call.1
$region0: #{tpu_custom_call.1}
  #allocation0 [shape = 'u32[]', space=smem, size = 0x4, offset = 0x4, fixed_abs, tag = 'smem constant byte address 0x4 - core index']
  #allocation1 [shape = 'u32[144,128]{1,0:T(1,128)}', space=vmem, size = 0x12000, scoped, tag = 'internal scratch']
  %s0 = inlined_call_operand.hbm [shape: f32[4,4,9218], index: 0, kind: input, shape index: {}]
  %s1 = inlined_call_operand.vmem [shape: f32[32,9], index: 1, kind: input, shape index: {}]
  %s2 = inlined_call_operand.vmem [shape: f32[32,1], index: 2, kind: input, shape index: {}]
  %s3 = inlined_call_operand.hbm [shape: f32[10,9216], index: 3, kind: input, shape index: {}]
  %s4 = inlined_call_operand.vmem [shape: f32[1,10], index: 4, kind: input, shape index: {}]
  %s5 = inlined_call_operand.vmem [shape: f32[4,64,10], index: 5, kind: output, shape index: {}]
  %s6 = sld [smem:[#allocation0]]
  $region68: #{tpu_custom_call.1} parent=0
    _
  %s8 = ssub.s32 1, %s6
  %s9 = scalar_select 0, %s8, %s6
  $region1: #{tpu_custom_call.1} parent=0
    #allocation2 [shape = 'u8[598016]{0}', space=vmem, size = 0x92000, scoped, tag = 'input window, operand 0']
    #allocation3 [shape = 's32[2]{0}', space=sflag, size = 0x8, scoped, tag = 'scoped memory for tpu_custom_call.1']
    #allocation4 [shape = 'u8[589824]{0}', space=vmem, size = 0x90000, scoped, tag = 'input window, operand 3, single buffered']
    #allocation5 [shape = 's32[1]{0}', space=sflag, size = 0x4, scoped, tag = 'scoped memory for tpu_custom_call.1']
    %10 = vsyncpa [#allocation3], 0
    %s11 = scalar_lea.sflag [#allocation3], 1
    %12 = vsyncpa %s11, 0
    %13 = vsyncpa [#allocation5], 0
    loop: start=0, step=1, limit=4
    $region2: #{tpu_custom_call.1} parent=1 // loop_pre_header
      _
    $region3: #{tpu_custom_call.1} parent=1 // loop_header
      %s15 = sphi 0, %s19
      %p16 = scmp.ge.s32.totalorder %s15, 4
      %s25 = sphi 0, %s27
      %s28 = sphi 0, %s25
      %s29 = sphi 0, %s28
      %s45 = sphi 0, %s29
      %s49 = sphi 0, %s49
      %s51 = sphi 0, %s49
      %s52 = sphi 0, %s51
      %s66 = sphi 0, %s52
      %s70 = sphi 0, %s70
      %s72 = sphi 0, %s70
      %s73 = sphi 0, %s72
      %s87 = sphi 0, %s73
      %s91 = sphi 0, %s91
      %s93 = sphi 0, %s91
      %s94 = sphi 0, %s93
      %s108 = sphi 0, %s94
      %s112 = sphi 0, %s112
      %s114 = sphi 0, %s112
      %s115 = sphi 0, %s114
      %s129 = sphi 0, %s115
      %s135 = sphi 0, %s137
      %s138 = sphi 0, %s135
      %s139 = sphi 0, %s138
      %s155 = sphi 0, %s139
    $region4: #{tpu_custom_call.1} parent=1 // loop_header_branch
      %18 = sbr.rel (%p16) target = $region8
    $region5: #{tpu_custom_call.1} parent=1 // loop_body
      %s20 = ssub.s32 %s15, 1
      %s21 = ssub.s32 %s15, 2
      %s22 = sadd.s32 %s15, 1
      %s23 = ssub.s32 %s15, %s22
      %p24 = scmp.eq.s32.totalorder %s23, 0
      %s26 = sadd.s32 %s25, 1
      %s27 = scalar_select %p24, %s25, %s26
      %p30 = pneg %p24
      %p31 = scmp.eq.s32.totalorder %s15, 1
      %p32 = por %p30, %p31
      %p33 = scmp.ne.s32.totalorder %s25, %s28
      %p34 = scmp.eq.s32.totalorder %s15, 0
      %p35 = por %p33, %p34
      %p36 = scmp.ne.s32.totalorder %s25, %s28
      %p37 = scmp.eq.s32.totalorder %s20, 1
      %p38 = por %p36, %p37
      %p39 = scmp.ne.s32.totalorder %s28, %s29
      %p40 = scmp.eq.s32.totalorder %s20, 0
      %p41 = por %p39, %p40
      %p42 = scmp.ne.s32.totalorder %s28, %s29
      %p43 = scmp.eq.s32.totalorder %s21, 1
      %p44 = por %p42, %p43
      %p46 = scmp.ne.s32.totalorder %s29, %s45
      %p47 = scmp.eq.s32.totalorder %s21, 0
      %p48 = por %p46, %p47
      %s50 = sadd.s32 %s49, 1
      %p53 = scmp.eq.s32.totalorder %s15, 1
      %p54 = scmp.ne.s32.totalorder %s49, %s51
      %p55 = scmp.eq.s32.totalorder %s15, 0
      %p56 = por %p54, %p55
      %p57 = scmp.ne.s32.totalorder %s49, %s51
      %p58 = scmp.eq.s32.totalorder %s20, 1
      %p59 = por %p57, %p58
      %p60 = scmp.ne.s32.totalorder %s51, %s52
      %p61 = scmp.eq.s32.totalorder %s20, 0
      %p62 = por %p60, %p61
      %p63 = scmp.ne.s32.totalorder %s51, %s52
      %p64 = scmp.eq.s32.totalorder %s21, 1
      %p65 = por %p63, %p64
      %p67 = scmp.ne.s32.totalorder %s52, %s66
      %p68 = scmp.eq.s32.totalorder %s21, 0
      %p69 = por %p67, %p68
      %s71 = sadd.s32 %s70, 1
      %p74 = scmp.eq.s32.totalorder %s15, 1
      %p75 = scmp.ne.s32.totalorder %s70, %s72
      %p76 = scmp.eq.s32.totalorder %s15, 0
      %p77 = por %p75, %p76
      %p78 = scmp.ne.s32.totalorder %s70, %s72
      %p79 = scmp.eq.s32.totalorder %s20, 1
      %p80 = por %p78, %p79
      %p81 = scmp.ne.s32.totalorder %s72, %s73
      %p82 = scmp.eq.s32.totalorder %s20, 0
      %p83 = por %p81, %p82
      %p84 = scmp.ne.s32.totalorder %s72, %s73
      %p85 = scmp.eq.s32.totalorder %s21, 1
      %p86 = por %p84, %p85
      %p88 = scmp.ne.s32.totalorder %s73, %s87
      %p89 = scmp.eq.s32.totalorder %s21, 0
      %p90 = por %p88, %p89
      %s92 = sadd.s32 %s91, 1
      %p95 = scmp.eq.s32.totalorder %s15, 1
      %p96 = scmp.ne.s32.totalorder %s91, %s93
      %p97 = scmp.eq.s32.totalorder %s15, 0
      %p98 = por %p96, %p97
      %p99 = scmp.ne.s32.totalorder %s91, %s93
      %p100 = scmp.eq.s32.totalorder %s20, 1
      %p101 = por %p99, %p100
      %p102 = scmp.ne.s32.totalorder %s93, %s94
      %p103 = scmp.eq.s32.totalorder %s20, 0
      %p104 = por %p102, %p103
      %p105 = scmp.ne.s32.totalorder %s93, %s94
      %p106 = scmp.eq.s32.totalorder %s21, 1
      %p107 = por %p105, %p106
      %p109 = scmp.ne.s32.totalorder %s94, %s108
      %p110 = scmp.eq.s32.totalorder %s21, 0
      %p111 = por %p109, %p110
      %s113 = sadd.s32 %s112, 1
      %p116 = scmp.eq.s32.totalorder %s15, 1
      %p117 = scmp.ne.s32.totalorder %s112, %s114
      %p118 = scmp.eq.s32.totalorder %s15, 0
      %p119 = por %p117, %p118
      %p120 = scmp.ne.s32.totalorder %s112, %s114
      %p121 = scmp.eq.s32.totalorder %s20, 1
      %p122 = por %p120, %p121
      %p123 = scmp.ne.s32.totalorder %s114, %s115
      %p124 = scmp.eq.s32.totalorder %s20, 0
      %p125 = por %p123, %p124
      %p126 = scmp.ne.s32.totalorder %s114, %s115
      %p127 = scmp.eq.s32.totalorder %s21, 1
      %p128 = por %p126, %p127
      %p130 = scmp.ne.s32.totalorder %s115, %s129
      %p131 = scmp.eq.s32.totalorder %s21, 0
      %p132 = por %p130, %p131
      %s133 = ssub.s32 %s15, %s22
      %p134 = scmp.eq.s32.totalorder %s133, 0
      %s136 = sadd.s32 %s135, 1
      %s137 = scalar_select %p134, %s135, %s136
      %p140 = pneg %p134
      %p141 = scmp.eq.s32.totalorder %s15, 1
      %p142 = por %p140, %p141
      %p143 = scmp.ne.s32.totalorder %s135, %s138
      %p144 = scmp.eq.s32.totalorder %s15, 0
      %p145 = por %p143, %p144
      %p146 = scmp.ne.s32.totalorder %s135, %s138
      %p147 = scmp.eq.s32.totalorder %s20, 1
      %p148 = por %p146, %p147
      %p149 = scmp.ne.s32.totalorder %s138, %s139
      %p150 = scmp.eq.s32.totalorder %s20, 0
      %p151 = por %p149, %p150
      %p152 = scmp.ne.s32.totalorder %s138, %s139
      %p153 = scmp.eq.s32.totalorder %s21, 1
      %p154 = por %p152, %p153
      %p156 = scmp.ne.s32.totalorder %s139, %s155
      %p157 = scmp.eq.s32.totalorder %s21, 0
      %p158 = por %p156, %p157
      %p159 = scmp.le.s32.totalorder 1, %s15
      %p160 = scmp.lt.s32.totalorder %s15, 3
      %p161 = pnand %p159, %p160
      %p162 = pneg %p161
      // Predicated region
      $region9: #{tpu_custom_call.1} parent=5 // pred_check
        _
      $region10: #{tpu_custom_call.1} parent=5 // pred_check_branch
        %164 = sbr.rel (%p161) target = $region12
      $region11: #{tpu_custom_call.1} parent=5 // pred_region
        %s165 = ssub.s32 %s15, 1
        // Predicated region
        $region13: #{tpu_custom_call.1} parent=11 // pred_check
          %p166 = pneg %p62
        $region14: #{tpu_custom_call.1} parent=11 // pred_check_branch
          %168 = sbr.rel (%p166) target = $region16
        $region15: #{tpu_custom_call.1} parent=11 // pred_region
          _
        $region16: #{tpu_custom_call.1} parent=11 // pred_fallthru
          _
        // Predicated region
        $region17: #{tpu_custom_call.1} parent=11 // pred_check
          %p169 = pneg %p83
        $region18: #{tpu_custom_call.1} parent=11 // pred_check_branch
          %171 = sbr.rel (%p169) target = $region20
        $region19: #{tpu_custom_call.1} parent=11 // pred_region
          _
        $region20: #{tpu_custom_call.1} parent=11 // pred_fallthru
          _
        // Predicated region
        $region21: #{tpu_custom_call.1} parent=11 // pred_check
          %p172 = pneg %p104
        $region22: #{tpu_custom_call.1} parent=11 // pred_check_branch
          %174 = sbr.rel (%p172) target = $region24
        $region23: #{tpu_custom_call.1} parent=11 // pred_region
          %s176 = ssub.s32 18432, 18432
          %177 = vsyncadd [#allocation5], %s176
          %s178 = sshll.u32 [#allocation4], 4
          %s179 = int_to_ptr.vmem [resolvable:$true] %s178
          %184 = dma.hbm_to_vmem [thread:$0]  %s3, 18432, %s179, [#allocation5], 9216, 9216, 576
        $region24: #{tpu_custom_call.1} parent=11 // pred_fallthru
          _
        // Predicated region
        $region25: #{tpu_custom_call.1} parent=11 // pred_check
          %p185 = pneg %p125
        $region26: #{tpu_custom_call.1} parent=11 // pred_check_branch
          %187 = sbr.rel (%p185) target = $region28
        $region27: #{tpu_custom_call.1} parent=11 // pred_region
          _
        $region28: #{tpu_custom_call.1} parent=11 // pred_fallthru
          _
      $region12: #{tpu_custom_call.1} parent=5 // pred_fallthru
        _
      %p188 = scmp.lt.s32.totalorder %s15, 2
      // Predicated region
      $region29: #{tpu_custom_call.1} parent=5 // pred_check
        %p189 = pneg %p188
      $region30: #{tpu_custom_call.1} parent=5 // pred_check_branch
        %191 = sbr.rel (%p189) target = $region32
      $region31: #{tpu_custom_call.1} parent=5 // pred_region
        // Predicated region
        $region33: #{tpu_custom_call.1} parent=31 // pred_check
          %p192 = pneg %p35
        $region34: #{tpu_custom_call.1} parent=31 // pred_check_branch
          %194 = sbr.rel (%p192) target = $region36
        $region35: #{tpu_custom_call.1} parent=31 // pred_region
          %s195 = sand.u32 %s25, 1
          %s196 = scalar_lea.sflag [#allocation3], %s195
          %s197 = sand.u32 %s25, 1
          %s198 = smul.addr %s197, 584
          %s199 = scalar_lea.vmem [#allocation2], %s198
          %s200 = smul.u32 2, %s15
          %s202 = ssub.s32 9344, 9344
          %203 = vsyncadd %s196, %s202
          %s204 = smul.addr %s200, 73
          %s205 = smul.addr %s204, 64
          %s206 = scalar_lea.hbm %s0, %s205
          %s207 = sshll.u32 %s199, 4
          %s208 = int_to_ptr.vmem [resolvable:$true] %s207
          %213 = dma.hbm_to_vmem [thread:$0]  %s206, 9344, %s208, %s196, 4672, 4672, 292
        $region36: #{tpu_custom_call.1} parent=31 // pred_fallthru
          _
      $region32: #{tpu_custom_call.1} parent=5 // pred_fallthru
        _
      %p214 = scmp.le.s32.totalorder 1, %s15
      %p215 = scmp.lt.s32.totalorder %s15, 3
      %p216 = pnand %p214, %p215
      %p217 = pneg %p216
      // Predicated region
      $region37: #{tpu_custom_call.1} parent=5 // pred_check
        _
      $region38: #{tpu_custom_call.1} parent=5 // pred_check_branch
        %219 = sbr.rel (%p216) target = $region40
      $region39: #{tpu_custom_call.1} parent=5 // pred_region
        %s220 = ssub.s32 %s15, 1
        %s221 = sand.u32 %s28, 1
        %s222 = scalar_lea.sflag [#allocation3], %s221
        %s223 = sand.u32 %s28, 1
        %s224 = smul.addr %s223, 584
        %s225 = scalar_lea.vmem [#allocation2], %s224
        // Predicated region
        $region41: #{tpu_custom_call.1} parent=39 // pred_check
          %p226 = pneg %p41
        $region42: #{tpu_custom_call.1} parent=39 // pred_check_branch
          %228 = sbr.rel (%p226) target = $region44
        $region43: #{tpu_custom_call.1} parent=39 // pred_region
          %229 = dma.done %s222, 9344
        $region44: #{tpu_custom_call.1} parent=39 // pred_fallthru
          _
        // Predicated region
        $region45: #{tpu_custom_call.1} parent=39 // pred_check
          %p230 = pneg %p104
        $region46: #{tpu_custom_call.1} parent=39 // pred_check_branch
          %232 = sbr.rel (%p230) target = $region48
        $region47: #{tpu_custom_call.1} parent=39 // pred_region
          %233 = dma.done [#allocation5], 18432
        $region48: #{tpu_custom_call.1} parent=39 // pred_fallthru
          _
        %s234 = sand.u32 %s28, 1
        %s235 = scalar_lea.sflag [#allocation3], %s234
        %s236 = sand.u32 %s28, 1
        %s237 = smul.addr %s236, 584
        %s238 = scalar_lea.vmem [#allocation2], %s237
        %p239 = pneg %p41
        %p240 = pneg %p38
        %p241 = pneg %p62
        %p242 = pneg %p59
        %p243 = pneg %p83
        %p244 = pneg %p80
        %p245 = pneg %p104
        %p246 = pneg %p101
        %p247 = pneg %p125
        %p248 = pneg %p122
        %p249 = pneg %p151
        %p250 = pneg %p148
        %s251 = smul.u32 2, %s20
        %p252 = scmp.lt.s32.totalorder %s251, 3
        %s253 = scalar_select %p252, %s251, 3
        %s254 = smul.addr %s253, 8
        %s255 = smul.addr %s254, 8
        %s256 = scalar_lea.vmem %s5, %s255
        %s257 = smul.u32 2, %s20
        %s258 = smul.u32 2, %s20
        %p259 = scmp.lt.s32.totalorder %s258, 3
        %s260 = scalar_select %p259, %s258, 3
        %s261 = smul.addr %s260, 8
        %s262 = smul.addr %s261, 8
        %s263 = scalar_lea.vmem %s5, %s262
        %s264 = smul.u32 2, %s20
        %v265 = vld [vmem:[%s1] sm:$0xff]
        %v266 = vld [vmem:[%s1 + $0x8] sm:$0xff]
        %v267 = vld [vmem:[%s1 + $0x10] sm:$0xff]
        %v268 = vld [vmem:[%s1 + $0x18] sm:$0xff]
        %v269 = vld [vmem:[%s2] sm:$0xff]
        %v270 = vld [vmem:[%s2 + $0x8] sm:$0xff]
        %v271 = vld [vmem:[%s2 + $0x10] sm:$0xff]
        %v272 = vld [vmem:[%s2 + $0x18] sm:$0xff]
        loop: start=0, step=1, limit=36
        $region49: #{tpu_custom_call.1} parent=39 // loop_pre_header
          _
        $region50: #{tpu_custom_call.1} parent=39 // loop_header
          %s274 = sphi 0, %s278
          %p275 = scmp.ge.s32.totalorder %s274, 36
          %v279 = vphi 0.0, %v1102
          %v280 = vphi 0.0, %v1103
          %v281 = vphi 0.0, %v1104
          %v282 = vphi 0.0, %v1105
          %v283 = vphi 0.0, %v1697
          %v284 = vphi 0.0, %v1698
          %v285 = vphi 0.0, %v1699
          %v286 = vphi 0.0, %v1700
          %v287 = vphi 0.0, %v2330
          %v288 = vphi 0.0, %v2331
          %v289 = vphi 0.0, %v2332
          %v290 = vphi 0.0, %v2333
          %v291 = vphi 0.0, %v2925
          %v292 = vphi 0.0, %v2926
          %v293 = vphi 0.0, %v2927
          %v294 = vphi 0.0, %v2928
        $region51: #{tpu_custom_call.1} parent=39 // loop_header_branch
          %277 = sbr.rel (%p275) target = $region55
        $region52: #{tpu_custom_call.1} parent=39 // loop_body
          %s295 = smul.u32 %s274, 256
          %s296 = sshra.s32 %s295, 7
          %s297 = sand.u32 %s295, 127
          %s298 = smul.addr %s296, 8
          %s299 = scalar_lea.vmem [#allocation4], %s298
          %v300 = vld [vmem:[%s299] sm:$0xff]
          %v301 = vld [vmem:[%s299 + $0x8] sm:$0xff]
          %v302 = vld [vmem:[%s299 + $0x240] sm:$0x3]
          %v303 = vld [vmem:[%s299 + $0x248] sm:$0x3]
          %s304 = smul.addr %s296, 4
          %s305 = scalar_lea.vmem %s225, %s304 [#allocation2]
          %v306 = vld [vmem:[%s305] ss:$4 sm:$0x7]
          %308 = vset.pattern.permute.xlu0 0
          %309 = vperm.xlu0 %308, %v265
          %v310 = vpop.permute.xlu0 %309
          %313 = vset.pattern.permute.xlu0 0
          %314 = vperm.xlu0 %313, %v266
          %v315 = vpop.permute.xlu0 %314
          %318 = vset.pattern.permute.xlu0 0
          %319 = vperm.xlu0 %318, %v267
          %v320 = vpop.permute.xlu0 %319
          %323 = vset.pattern.permute.xlu0 0
          %324 = vperm.xlu0 %323, %v268
          %v325 = vpop.permute.xlu0 %324
          %v328 = vlaneseq
          %v329 = vshrl.u32 %v328, 7
          %v330 = vsub.s32 0, %v329
          %v331 = vrot.slane %v306, %v330
          %v332 = vlaneseq
          %v333 = vshrl.u32 %v332, 7
          %v334 = vsub.s32 1, %v333
          %v335 = vrot.slane %v306, %v334
          %v338 = vmul.f32 %v310, %v331
          %v339 = vmul.f32 %v310, %v335
          %v340 = vmul.f32 %v315, %v331
          %v341 = vmul.f32 %v315, %v335
          %v342 = vmul.f32 %v320, %v331
          %v343 = vmul.f32 %v320, %v335
          %v344 = vmul.f32 %v325, %v331
          %v345 = vmul.f32 %v325, %v335
          %347 = vset.pattern.permute.xlu0 0
          %348 = vperm.xlu0 %347, %v269
          %v349 = vpop.permute.xlu0 %348
          %352 = vset.pattern.permute.xlu0 0
          %353 = vperm.xlu0 %352, %v270
          %v354 = vpop.permute.xlu0 %353
          %357 = vset.pattern.permute.xlu0 0
          %358 = vperm.xlu0 %357, %v271
          %v359 = vpop.permute.xlu0 %358
          %362 = vset.pattern.permute.xlu0 0
          %363 = vperm.xlu0 %362, %v272
          %v364 = vpop.permute.xlu0 %363
          %v366 = vadd.f32 %v338, %v349
          %v367 = vadd.f32 %v339, %v349
          %v368 = vadd.f32 %v340, %v354
          %v369 = vadd.f32 %v341, %v354
          %v370 = vadd.f32 %v342, %v359
          %v371 = vadd.f32 %v343, %v359
          %v372 = vadd.f32 %v344, %v364
          %v373 = vadd.f32 %v345, %v364
          %374 = vset.pattern.permute.xlu0 1
          %375 = vperm.xlu0 %374, %v265
          %v376 = vpop.permute.xlu0 %375
          %378 = vset.pattern.permute.xlu0 1
          %379 = vperm.xlu0 %378, %v266
          %v380 = vpop.permute.xlu0 %379
          %382 = vset.pattern.permute.xlu0 1
          %383 = vperm.xlu0 %382, %v267
          %v384 = vpop.permute.xlu0 %383
          %386 = vset.pattern.permute.xlu0 1
          %387 = vperm.xlu0 %386, %v268
          %v388 = vpop.permute.xlu0 %387
          %v390 = vlaneseq
          %v391 = vshrl.u32 %v390, 7
          %v392 = vsub.s32 2, %v391
          %v393 = vrot.slane %v306, %v392
          %v395 = vmul.f32 %v376, %v331
          %v396 = vmul.f32 %v376, %v335
          %v397 = vmul.f32 %v376, %v393
          %v398 = vmul.f32 %v380, %v331
          %v399 = vmul.f32 %v380, %v335
          %v400 = vmul.f32 %v380, %v393
          %v401 = vmul.f32 %v384, %v331
          %v402 = vmul.f32 %v384, %v335
          %v403 = vmul.f32 %v384, %v393
          %v404 = vmul.f32 %v388, %v331
          %v405 = vmul.f32 %v388, %v335
          %v406 = vmul.f32 %v388, %v393
          %419 = vrot.lane.b32.xlu0 %v395, 127
          %v420 = vpop.permute.xlu0 %419
          %421 = vrot.lane.b32.xlu0 %v396, 127
          %v422 = vpop.permute.xlu0 %421
          %423 = vrot.lane.b32.xlu0 %v397, 127
          %v424 = vpop.permute.xlu0 %423
          %425 = vrot.lane.b32.xlu0 %v398, 127
          %v426 = vpop.permute.xlu0 %425
          %427 = vrot.lane.b32.xlu0 %v399, 127
          %v428 = vpop.permute.xlu0 %427
          %429 = vrot.lane.b32.xlu0 %v400, 127
          %v430 = vpop.permute.xlu0 %429
          %431 = vrot.lane.b32.xlu0 %v401, 127
          %v432 = vpop.permute.xlu0 %431
          %433 = vrot.lane.b32.xlu0 %v402, 127
          %v434 = vpop.permute.xlu0 %433
          %435 = vrot.lane.b32.xlu0 %v403, 127
          %v436 = vpop.permute.xlu0 %435
          %437 = vrot.lane.b32.xlu0 %v404, 127
          %v438 = vpop.permute.xlu0 %437
          %439 = vrot.lane.b32.xlu0 %v405, 127
          %v440 = vpop.permute.xlu0 %439
          %441 = vrot.lane.b32.xlu0 %v406, 127
          %v442 = vpop.permute.xlu0 %441
          %vm443 = vcmask 1039360
          %v444 = vsel %vm443, %v420, %v422
          %v445 = vsel %vm443, %v422, %v424
          %v446 = vsel %vm443, %v426, %v428
          %v447 = vsel %vm443, %v428, %v430
          %v448 = vsel %vm443, %v432, %v434
          %v449 = vsel %vm443, %v434, %v436
          %v450 = vsel %vm443, %v438, %v440
          %v451 = vsel %vm443, %v440, %v442
          %v460 = vadd.f32 %v366, %v444
          %v461 = vadd.f32 %v367, %v445
          %v462 = vadd.f32 %v368, %v446
          %v463 = vadd.f32 %v369, %v447
          %v464 = vadd.f32 %v370, %v448
          %v465 = vadd.f32 %v371, %v449
          %v466 = vadd.f32 %v372, %v450
          %v467 = vadd.f32 %v373, %v451
          %468 = vset.pattern.permute.xlu0 2
          %469 = vperm.xlu0 %468, %v265
          %v470 = vpop.permute.xlu0 %469
          %472 = vset.pattern.permute.xlu0 2
          %473 = vperm.xlu0 %472, %v266
          %v474 = vpop.permute.xlu0 %473
          %476 = vset.pattern.permute.xlu0 2
          %477 = vperm.xlu0 %476, %v267
          %v478 = vpop.permute.xlu0 %477
          %480 = vset.pattern.permute.xlu0 2
          %481 = vperm.xlu0 %480, %v268
          %v482 = vpop.permute.xlu0 %481
          %v484 = vmul.f32 %v470, %v331
          %v485 = vmul.f32 %v470, %v335
          %v486 = vmul.f32 %v470, %v393
          %v487 = vmul.f32 %v474, %v331
          %v488 = vmul.f32 %v474, %v335
          %v489 = vmul.f32 %v474, %v393
          %v490 = vmul.f32 %v478, %v331
          %v491 = vmul.f32 %v478, %v335
          %v492 = vmul.f32 %v478, %v393
          %v493 = vmul.f32 %v482, %v331
          %v494 = vmul.f32 %v482, %v335
          %v495 = vmul.f32 %v482, %v393
          %508 = vrot.lane.b32.xlu0 %v484, 126
          %v509 = vpop.permute.xlu0 %508
          %510 = vrot.lane.b32.xlu0 %v485, 126
          %v511 = vpop.permute.xlu0 %510
          %512 = vrot.lane.b32.xlu0 %v486, 126
          %v513 = vpop.permute.xlu0 %512
          %514 = vrot.lane.b32.xlu0 %v487, 126
          %v515 = vpop.permute.xlu0 %514
          %516 = vrot.lane.b32.xlu0 %v488, 126
          %v517 = vpop.permute.xlu0 %516
          %518 = vrot.lane.b32.xlu0 %v489, 126
          %v519 = vpop.permute.xlu0 %518
          %520 = vrot.lane.b32.xlu0 %v490, 126
          %v521 = vpop.permute.xlu0 %520
          %522 = vrot.lane.b32.xlu0 %v491, 126
          %v523 = vpop.permute.xlu0 %522
          %524 = vrot.lane.b32.xlu0 %v492, 126
          %v525 = vpop.permute.xlu0 %524
          %526 = vrot.lane.b32.xlu0 %v493, 126
          %v527 = vpop.permute.xlu0 %526
          %528 = vrot.lane.b32.xlu0 %v494, 126
          %v529 = vpop.permute.xlu0 %528
          %530 = vrot.lane.b32.xlu0 %v495, 126
          %v531 = vpop.permute.xlu0 %530
          %vm532 = vcmask 1031168
          %v533 = vsel %vm532, %v509, %v511
          %v534 = vsel %vm532, %v511, %v513
          %v535 = vsel %vm532, %v515, %v517
          %v536 = vsel %vm532, %v517, %v519
          %v537 = vsel %vm532, %v521, %v523
          %v538 = vsel %vm532, %v523, %v525
          %v539 = vsel %vm532, %v527, %v529
          %v540 = vsel %vm532, %v529, %v531
          %v549 = vadd.f32 %v460, %v533
          %v550 = vadd.f32 %v461, %v534
          %v551 = vadd.f32 %v462, %v535
          %v552 = vadd.f32 %v463, %v536
          %v553 = vadd.f32 %v464, %v537
          %v554 = vadd.f32 %v465, %v538
          %v555 = vadd.f32 %v466, %v539
          %v556 = vadd.f32 %v467, %v540
          %s557 = scalar_lea.vmem %s305, 1 [#allocation2]
          %v558 = vld [vmem:[%s557] ss:$4 sm:$0x7]
          %559 = vset.pattern.permute.xlu0 3
          %560 = vperm.xlu0 %559, %v265
          %v561 = vpop.permute.xlu0 %560
          %563 = vset.pattern.permute.xlu0 3
          %564 = vperm.xlu0 %563, %v266
          %v565 = vpop.permute.xlu0 %564
          %567 = vset.pattern.permute.xlu0 3
          %568 = vperm.xlu0 %567, %v267
          %v569 = vpop.permute.xlu0 %568
          %571 = vset.pattern.permute.xlu0 3
          %572 = vperm.xlu0 %571, %v268
          %v573 = vpop.permute.xlu0 %572
          %v576 = vlaneseq
          %v577 = vshrl.u32 %v576, 7
          %v578 = vsub.s32 0, %v577
          %v579 = vrot.slane %v558, %v578
          %v580 = vlaneseq
          %v581 = vshrl.u32 %v580, 7
          %v582 = vsub.s32 1, %v581
          %v583 = vrot.slane %v558, %v582
          %v586 = vmul.f32 %v561, %v579
          %v587 = vmul.f32 %v561, %v583
          %v588 = vmul.f32 %v565, %v579
          %v589 = vmul.f32 %v565, %v583
          %v590 = vmul.f32 %v569, %v579
          %v591 = vmul.f32 %v569, %v583
          %v592 = vmul.f32 %v573, %v579
          %v593 = vmul.f32 %v573, %v583
          %v594 = vadd.f32 %v549, %v586
          %v595 = vadd.f32 %v550, %v587
          %v596 = vadd.f32 %v551, %v588
          %v597 = vadd.f32 %v552, %v589
          %v598 = vadd.f32 %v553, %v590
          %v599 = vadd.f32 %v554, %v591
          %v600 = vadd.f32 %v555, %v592
          %v601 = vadd.f32 %v556, %v593
          %602 = vset.pattern.permute.xlu0 4
          %603 = vperm.xlu0 %602, %v265
          %v604 = vpop.permute.xlu0 %603
          %606 = vset.pattern.permute.xlu0 4
          %607 = vperm.xlu0 %606, %v266
          %v608 = vpop.permute.xlu0 %607
          %610 = vset.pattern.permute.xlu0 4
          %611 = vperm.xlu0 %610, %v267
          %v612 = vpop.permute.xlu0 %611
          %614 = vset.pattern.permute.xlu0 4
          %615 = vperm.xlu0 %614, %v268
          %v616 = vpop.permute.xlu0 %615
          %v618 = vlaneseq
          %v619 = vshrl.u32 %v618, 7
          %v620 = vsub.s32 2, %v619
          %v621 = vrot.slane %v558, %v620
          %v623 = vmul.f32 %v604, %v579
          %v624 = vmul.f32 %v604, %v583
          %v625 = vmul.f32 %v604, %v621
          %v626 = vmul.f32 %v608, %v579
          %v627 = vmul.f32 %v608, %v583
          %v628 = vmul.f32 %v608, %v621
          %v629 = vmul.f32 %v612, %v579
          %v630 = vmul.f32 %v612, %v583
          %v631 = vmul.f32 %v612, %v621
          %v632 = vmul.f32 %v616, %v579
          %v633 = vmul.f32 %v616, %v583
          %v634 = vmul.f32 %v616, %v621
          %647 = vrot.lane.b32.xlu0 %v623, 127
          %v648 = vpop.permute.xlu0 %647
          %649 = vrot.lane.b32.xlu0 %v624, 127
          %v650 = vpop.permute.xlu0 %649
          %651 = vrot.lane.b32.xlu0 %v625, 127
          %v652 = vpop.permute.xlu0 %651
          %653 = vrot.lane.b32.xlu0 %v626, 127
          %v654 = vpop.permute.xlu0 %653
          %655 = vrot.lane.b32.xlu0 %v627, 127
          %v656 = vpop.permute.xlu0 %655
          %657 = vrot.lane.b32.xlu0 %v628, 127
          %v658 = vpop.permute.xlu0 %657
          %659 = vrot.lane.b32.xlu0 %v629, 127
          %v660 = vpop.permute.xlu0 %659
          %661 = vrot.lane.b32.xlu0 %v630, 127
          %v662 = vpop.permute.xlu0 %661
          %663 = vrot.lane.b32.xlu0 %v631, 127
          %v664 = vpop.permute.xlu0 %663
          %665 = vrot.lane.b32.xlu0 %v632, 127
          %v666 = vpop.permute.xlu0 %665
          %667 = vrot.lane.b32.xlu0 %v633, 127
          %v668 = vpop.permute.xlu0 %667
          %669 = vrot.lane.b32.xlu0 %v634, 127
          %v670 = vpop.permute.xlu0 %669
          %v671 = vsel %vm443, %v648, %v650
          %v672 = vsel %vm443, %v650, %v652
          %v673 = vsel %vm443, %v654, %v656
          %v674 = vsel %vm443, %v656, %v658
          %v675 = vsel %vm443, %v660, %v662
          %v676 = vsel %vm443, %v662, %v664
          %v677 = vsel %vm443, %v666, %v668
          %v678 = vsel %vm443, %v668, %v670
          %v687 = vadd.f32 %v594, %v671
          %v688 = vadd.f32 %v595, %v672
          %v689 = vadd.f32 %v596, %v673
          %v690 = vadd.f32 %v597, %v674
          %v691 = vadd.f32 %v598, %v675
          %v692 = vadd.f32 %v599, %v676
          %v693 = vadd.f32 %v600, %v677
          %v694 = vadd.f32 %v601, %v678
          %695 = vset.pattern.permute.xlu0 5
          %696 = vperm.xlu0 %695, %v265
          %v697 = vpop.permute.xlu0 %696
          %699 = vset.pattern.permute.xlu0 5
          %700 = vperm.xlu0 %699, %v266
          %v701 = vpop.permute.xlu0 %700
          %703 = vset.pattern.permute.xlu0 5
          %704 = vperm.xlu0 %703, %v267
          %v705 = vpop.permute.xlu0 %704
          %707 = vset.pattern.permute.xlu0 5
          %708 = vperm.xlu0 %707, %v268
          %v709 = vpop.permute.xlu0 %708
          %v711 = vmul.f32 %v697, %v579
          %v712 = vmul.f32 %v697, %v583
          %v713 = vmul.f32 %v697, %v621
          %v714 = vmul.f32 %v701, %v579
          %v715 = vmul.f32 %v701, %v583
          %v716 = vmul.f32 %v701, %v621
          %v717 = vmul.f32 %v705, %v579
          %v718 = vmul.f32 %v705, %v583
          %v719 = vmul.f32 %v705, %v621
          %v720 = vmul.f32 %v709, %v579
          %v721 = vmul.f32 %v709, %v583
          %v722 = vmul.f32 %v709, %v621
          %735 = vrot.lane.b32.xlu0 %v711, 126
          %v736 = vpop.permute.xlu0 %735
          %737 = vrot.lane.b32.xlu0 %v712, 126
          %v738 = vpop.permute.xlu0 %737
          %739 = vrot.lane.b32.xlu0 %v713, 126
          %v740 = vpop.permute.xlu0 %739
          %741 = vrot.lane.b32.xlu0 %v714, 126
          %v742 = vpop.permute.xlu0 %741
          %743 = vrot.lane.b32.xlu0 %v715, 126
          %v744 = vpop.permute.xlu0 %743
          %745 = vrot.lane.b32.xlu0 %v716, 126
          %v746 = vpop.permute.xlu0 %745
          %747 = vrot.lane.b32.xlu0 %v717, 126
          %v748 = vpop.permute.xlu0 %747
          %749 = vrot.lane.b32.xlu0 %v718, 126
          %v750 = vpop.permute.xlu0 %749
          %751 = vrot.lane.b32.xlu0 %v719, 126
          %v752 = vpop.permute.xlu0 %751
          %753 = vrot.lane.b32.xlu0 %v720, 126
          %v754 = vpop.permute.xlu0 %753
          %755 = vrot.lane.b32.xlu0 %v721, 126
          %v756 = vpop.permute.xlu0 %755
          %757 = vrot.lane.b32.xlu0 %v722, 126
          %v758 = vpop.permute.xlu0 %757
          %v759 = vsel %vm532, %v736, %v738
          %v760 = vsel %vm532, %v738, %v740
          %v761 = vsel %vm532, %v742, %v744
          %v762 = vsel %vm532, %v744, %v746
          %v763 = vsel %vm532, %v748, %v750
          %v764 = vsel %vm532, %v750, %v752
          %v765 = vsel %vm532, %v754, %v756
          %v766 = vsel %vm532, %v756, %v758
          %v775 = vadd.f32 %v687, %v759
          %v776 = vadd.f32 %v688, %v760
          %v777 = vadd.f32 %v689, %v761
          %v778 = vadd.f32 %v690, %v762
          %v779 = vadd.f32 %v691, %v763
          %v780 = vadd.f32 %v692, %v764
          %v781 = vadd.f32 %v693, %v765
          %v782 = vadd.f32 %v694, %v766
          %s783 = scalar_lea.vmem %s305, 2 [#allocation2]
          %v784 = vld [vmem:[%s783] ss:$4 sm:$0x7]
          %785 = vset.pattern.permute.xlu0 6
          %786 = vperm.xlu0 %785, %v265
          %v787 = vpop.permute.xlu0 %786
          %789 = vset.pattern.permute.xlu0 6
          %790 = vperm.xlu0 %789, %v266
          %v791 = vpop.permute.xlu0 %790
          %793 = vset.pattern.permute.xlu0 6
          %794 = vperm.xlu0 %793, %v267
          %v795 = vpop.permute.xlu0 %794
          %797 = vset.pattern.permute.xlu0 6
          %798 = vperm.xlu0 %797, %v268
          %v799 = vpop.permute.xlu0 %798
          %v802 = vlaneseq
          %v803 = vshrl.u32 %v802, 7
          %v804 = vsub.s32 0, %v803
          %v805 = vrot.slane %v784, %v804
          %v806 = vlaneseq
          %v807 = vshrl.u32 %v806, 7
          %v808 = vsub.s32 1, %v807
          %v809 = vrot.slane %v784, %v808
          %v812 = vmul.f32 %v787, %v805
          %v813 = vmul.f32 %v787, %v809
          %v814 = vmul.f32 %v791, %v805
          %v815 = vmul.f32 %v791, %v809
          %v816 = vmul.f32 %v795, %v805
          %v817 = vmul.f32 %v795, %v809
          %v818 = vmul.f32 %v799, %v805
          %v819 = vmul.f32 %v799, %v809
          %v820 = vadd.f32 %v775, %v812
          %v821 = vadd.f32 %v776, %v813
          %v822 = vadd.f32 %v777, %v814
          %v823 = vadd.f32 %v778, %v815
          %v824 = vadd.f32 %v779, %v816
          %v825 = vadd.f32 %v780, %v817
          %v826 = vadd.f32 %v781, %v818
          %v827 = vadd.f32 %v782, %v819
          %828 = vset.pattern.permute.xlu0 7
          %829 = vperm.xlu0 %828, %v265
          %v830 = vpop.permute.xlu0 %829
          %832 = vset.pattern.permute.xlu0 7
          %833 = vperm.xlu0 %832, %v266
          %v834 = vpop.permute.xlu0 %833
          %836 = vset.pattern.permute.xlu0 7
          %837 = vperm.xlu0 %836, %v267
          %v838 = vpop.permute.xlu0 %837
          %840 = vset.pattern.permute.xlu0 7
          %841 = vperm.xlu0 %840, %v268
          %v842 = vpop.permute.xlu0 %841
          %v844 = vlaneseq
          %v845 = vshrl.u32 %v844, 7
          %v846 = vsub.s32 2, %v845
          %v847 = vrot.slane %v784, %v846
          %v849 = vmul.f32 %v830, %v805
          %v850 = vmul.f32 %v830, %v809
          %v851 = vmul.f32 %v830, %v847
          %v852 = vmul.f32 %v834, %v805
          %v853 = vmul.f32 %v834, %v809
          %v854 = vmul.f32 %v834, %v847
          %v855 = vmul.f32 %v838, %v805
          %v856 = vmul.f32 %v838, %v809
          %v857 = vmul.f32 %v838, %v847
          %v858 = vmul.f32 %v842, %v805
          %v859 = vmul.f32 %v842, %v809
          %v860 = vmul.f32 %v842, %v847
          %873 = vrot.lane.b32.xlu0 %v849, 127
          %v874 = vpop.permute.xlu0 %873
          %875 = vrot.lane.b32.xlu0 %v850, 127
          %v876 = vpop.permute.xlu0 %875
          %877 = vrot.lane.b32.xlu0 %v851, 127
          %v878 = vpop.permute.xlu0 %877
          %879 = vrot.lane.b32.xlu0 %v852, 127
          %v880 = vpop.permute.xlu0 %879
          %881 = vrot.lane.b32.xlu0 %v853, 127
          %v882 = vpop.permute.xlu0 %881
          %883 = vrot.lane.b32.xlu0 %v854, 127
          %v884 = vpop.permute.xlu0 %883
          %885 = vrot.lane.b32.xlu0 %v855, 127
          %v886 = vpop.permute.xlu0 %885
          %887 = vrot.lane.b32.xlu0 %v856, 127
          %v888 = vpop.permute.xlu0 %887
          %889 = vrot.lane.b32.xlu0 %v857, 127
          %v890 = vpop.permute.xlu0 %889
          %891 = vrot.lane.b32.xlu0 %v858, 127
          %v892 = vpop.permute.xlu0 %891
          %893 = vrot.lane.b32.xlu0 %v859, 127
          %v894 = vpop.permute.xlu0 %893
          %895 = vrot.lane.b32.xlu0 %v860, 127
          %v896 = vpop.permute.xlu0 %895
          %v897 = vsel %vm443, %v874, %v876
          %v898 = vsel %vm443, %v876, %v878
          %v899 = vsel %vm443, %v880, %v882
          %v900 = vsel %vm443, %v882, %v884
          %v901 = vsel %vm443, %v886, %v888
          %v902 = vsel %vm443, %v888, %v890
          %v903 = vsel %vm443, %v892, %v894
          %v904 = vsel %vm443, %v894, %v896
          %v913 = vadd.f32 %v820, %v897
          %v914 = vadd.f32 %v821, %v898
          %v915 = vadd.f32 %v822, %v899
          %v916 = vadd.f32 %v823, %v900
          %v917 = vadd.f32 %v824, %v901
          %v918 = vadd.f32 %v825, %v902
          %v919 = vadd.f32 %v826, %v903
          %v920 = vadd.f32 %v827, %v904
          %921 = vset.pattern.permute.xlu0 8
          %922 = vperm.xlu0 %921, %v265
          %v923 = vpop.permute.xlu0 %922
          %925 = vset.pattern.permute.xlu0 8
          %926 = vperm.xlu0 %925, %v266
          %v927 = vpop.permute.xlu0 %926
          %929 = vset.pattern.permute.xlu0 8
          %930 = vperm.xlu0 %929, %v267
          %v931 = vpop.permute.xlu0 %930
          %933 = vset.pattern.permute.xlu0 8
          %934 = vperm.xlu0 %933, %v268
          %v935 = vpop.permute.xlu0 %934
          %v937 = vmul.f32 %v923, %v805
          %v938 = vmul.f32 %v923, %v809
          %v939 = vmul.f32 %v923, %v847
          %v940 = vmul.f32 %v927, %v805
          %v941 = vmul.f32 %v927, %v809
          %v942 = vmul.f32 %v927, %v847
          %v943 = vmul.f32 %v931, %v805
          %v944 = vmul.f32 %v931, %v809
          %v945 = vmul.f32 %v931, %v847
          %v946 = vmul.f32 %v935, %v805
          %v947 = vmul.f32 %v935, %v809
          %v948 = vmul.f32 %v935, %v847
          %961 = vrot.lane.b32.xlu0 %v937, 126
          %v962 = vpop.permute.xlu0 %961
          %963 = vrot.lane.b32.xlu0 %v938, 126
          %v964 = vpop.permute.xlu0 %963
          %965 = vrot.lane.b32.xlu0 %v939, 126
          %v966 = vpop.permute.xlu0 %965
          %967 = vrot.lane.b32.xlu0 %v940, 126
          %v968 = vpop.permute.xlu0 %967
          %969 = vrot.lane.b32.xlu0 %v941, 126
          %v970 = vpop.permute.xlu0 %969
          %971 = vrot.lane.b32.xlu0 %v942, 126
          %v972 = vpop.permute.xlu0 %971
          %973 = vrot.lane.b32.xlu0 %v943, 126
          %v974 = vpop.permute.xlu0 %973
          %975 = vrot.lane.b32.xlu0 %v944, 126
          %v976 = vpop.permute.xlu0 %975
          %977 = vrot.lane.b32.xlu0 %v945, 126
          %v978 = vpop.permute.xlu0 %977
          %979 = vrot.lane.b32.xlu0 %v946, 126
          %v980 = vpop.permute.xlu0 %979
          %981 = vrot.lane.b32.xlu0 %v947, 126
          %v982 = vpop.permute.xlu0 %981
          %983 = vrot.lane.b32.xlu0 %v948, 126
          %v984 = vpop.permute.xlu0 %983
          %v985 = vsel %vm532, %v962, %v964
          %v986 = vsel %vm532, %v964, %v966
          %v987 = vsel %vm532, %v968, %v970
          %v988 = vsel %vm532, %v970, %v972
          %v989 = vsel %vm532, %v974, %v976
          %v990 = vsel %vm532, %v976, %v978
          %v991 = vsel %vm532, %v980, %v982
          %v992 = vsel %vm532, %v982, %v984
          %v1001 = vadd.f32 %v913, %v985
          %v1002 = vadd.f32 %v914, %v986
          %v1003 = vadd.f32 %v915, %v987
          %v1004 = vadd.f32 %v916, %v988
          %v1005 = vadd.f32 %v917, %v989
          %v1006 = vadd.f32 %v918, %v990
          %v1007 = vadd.f32 %v919, %v991
          %v1008 = vadd.f32 %v920, %v992
          %v1009 = vmax.f32 %v1001, 0.0
          %v1010 = vmax.f32 %v1002, 0.0
          %v1011 = vmax.f32 %v1003, 0.0
          %v1012 = vmax.f32 %v1004, 0.0
          %v1013 = vmax.f32 %v1005, 0.0
          %v1014 = vmax.f32 %v1006, 0.0
          %v1015 = vmax.f32 %v1007, 0.0
          %v1016 = vmax.f32 %v1008, 0.0
          %1017 = vmatprep.subr.mxu0 %v301
          %1018 = vmatpush1.xpose.msra.mxu0 %v300
          %1019 = vmatprep.subr.mxu0 %v303
          %1020 = vmatpush1.xpose.msra.mxu0 %v302
          %1021 = vmatprep.subr.mxu0 0.0
          %1022 = vmatpush1.xpose.msra.mxu0 0.0
          %1023 = vmatprep.subr.mxu0 0.0
          %1024 = vmatpush1.xpose.msra.mxu0 0.0
          %1025 = vmatprep.subr.mxu0 0.0
          %1026 = vmatpush1.xpose.msra.mxu0 0.0
          %1027 = vmatprep.subr.mxu0 0.0
          %1028 = vmatpush1.xpose.msra.mxu0 0.0
          %1029 = vmatprep.subr.mxu0 0.0
          %1030 = vmatpush1.xpose.msra.mxu0 0.0
          %1031 = vmatprep.subr.mxu0 0.0
          %1032 = vmatpush1.xpose.msra.mxu0 0.0
          %1033 = vmatprep.subr.mxu0 0.0
          %1034 = vmatpush1.xpose.msra.mxu0 0.0
          %1035 = vmatprep.subr.mxu0 0.0
          %1036 = vmatpush1.xpose.msra.mxu0 0.0
          %1037 = vmatprep.subr.mxu0 0.0
          %1038 = vmatpush1.xpose.msra.mxu0 0.0
          %1039 = vmatprep.subr.mxu0 0.0
          %1040 = vmatpush1.xpose.msra.mxu0 0.0
          %1041 = vmatprep.subr.mxu0 0.0
          %1042 = vmatpush1.xpose.msra.mxu0 0.0
          %1043 = vmatprep.subr.mxu0 0.0
          %1044 = vmatpush1.xpose.msra.mxu0 0.0
          %1045 = vmatprep.subr.mxu0 0.0
          %1046 = vmatpush1.xpose.msra.mxu0 0.0
          %1047 = vmatprep.subr.mxu0 0.0
          %1048 = vmatpush1.xpose.msra.mxu0 0.0
          %1049 = vmatprep.subr.mxu0 0.0
          %1050 = vmatpush1.xpose.msra.mxu0 0.0
          %1051 = vmatprep.subr.mxu0 0.0
          %1052 = vmatpush1.xpose.msra.mxu0 0.0
          %1053 = vmatprep.subr.mxu0 0.0
          %1054 = vmatpush1.xpose.msra.mxu0 0.0
          %1055 = vmatprep.subr.mxu0 0.0
          %1056 = vmatpush1.xpose.msra.mxu0 0.0
          %1057 = vmatprep.subr.mxu0 0.0
          %1058 = vmatpush1.xpose.msra.mxu0 0.0
          %1059 = vmatprep.subr.mxu0 0.0
          %1060 = vmatpush1.xpose.msra.mxu0 0.0
          %1061 = vmatprep.subr.mxu0 0.0
          %1062 = vmatpush1.xpose.msra.mxu0 0.0
          %1063 = vmatprep.subr.mxu0 0.0
          %1064 = vmatpush1.xpose.msra.mxu0 0.0
          %1065 = vmatprep.subr.mxu0 0.0
          %1066 = vmatpush1.xpose.msra.mxu0 0.0
          %1067 = vmatprep.subr.mxu0 0.0
          %1068 = vmatpush1.xpose.msra.mxu0 0.0
          %1069 = vmatprep.subr.mxu0 0.0
          %1070 = vmatpush1.xpose.msra.mxu0 0.0
          %1071 = vmatprep.subr.mxu0 0.0
          %1072 = vmatpush1.xpose.msra.mxu0 0.0
          %1073 = vmatprep.subr.mxu0 0.0
          %1074 = vmatpush1.xpose.msra.mxu0 0.0
          %1075 = vmatprep.subr.mxu0 0.0
          %1076 = vmatpush1.xpose.msra.mxu0 0.0
          %1077 = vmatprep.subr.mxu0 0.0
          %1078 = vmatpush1.xpose.msra.mxu0 0.0
          %1079 = vmatprep.subr.mxu0 0.0
          %1080 = vmatpush1.xpose.msra.mxu0 0.0
          %1081 = vmatprep.mubr.f32.mxu0 %v1010
          %1082 = vmatmul.mubr.f32.gmra.mrb[0].mxu0 %v1009
          %v1083 = vpop.f32.mrb[0].mxu0
          %v1084 = vadd.f32 0.0, %v1083
          %v1085 = vpop.f32.mrb[0].mxu0
          %1086 = vmatprep.mubr.f32.mxu0 %v1012
          %1087 = vmatmul.mubr.f32.gmra.mrb[0].mxu0 %v1011
          %v1088 = vpop.f32.mrb[0].mxu0
          %v1089 = vadd.f32 0.0, %v1088
          %v1090 = vpop.f32.mrb[0].mxu0
          %1091 = vmatprep.mubr.f32.mxu0 %v1014
          %1092 = vmatmul.mubr.f32.gmra.mrb[0].mxu0 %v1013
          %v1093 = vpop.f32.mrb[0].mxu0
          %v1094 = vadd.f32 0.0, %v1093
          %v1095 = vpop.f32.mrb[0].mxu0
          %1096 = vmatprep.mubr.f32.mxu0 %v1016
          %1097 = vmatmul.mubr.f32.gmra.mrb[0].mxu0 %v1015
          %v1098 = vpop.f32.mrb[0].mxu0
          %v1099 = vadd.f32 0.0, %v1098
          %v1100 = vpop.f32.mrb[0].mxu0
          %1101 = vdwg.mxu0
          %v1102 = vadd.f32 %v279, %v1084
          %v1103 = vadd.f32 %v280, %v1089
          %v1104 = vadd.f32 %v281, %v1094
          %v1105 = vadd.f32 %v282, %v1099
          %v1106 = vmul.f32 %v310, %v579
          %v1107 = vmul.f32 %v310, %v583
          %v1108 = vmul.f32 %v315, %v579
          %v1109 = vmul.f32 %v315, %v583
          %v1110 = vmul.f32 %v320, %v579
          %v1111 = vmul.f32 %v320, %v583
          %v1112 = vmul.f32 %v325, %v579
          %v1113 = vmul.f32 %v325, %v583
          %v1114 = vadd.f32 %v1106, %v349
          %v1115 = vadd.f32 %v1107, %v349
          %v1116 = vadd.f32 %v1108, %v354
          %v1117 = vadd.f32 %v1109, %v354
          %v1118 = vadd.f32 %v1110, %v359
          %v1119 = vadd.f32 %v1111, %v359
          %v1120 = vadd.f32 %v1112, %v364
          %v1121 = vadd.f32 %v1113, %v364
          %v1122 = vmul.f32 %v376, %v579
          %v1123 = vmul.f32 %v376, %v583
          %v1124 = vmul.f32 %v376, %v621
          %v1125 = vmul.f32 %v380, %v579
          %v1126 = vmul.f32 %v380, %v583
          %v1127 = vmul.f32 %v380, %v621
          %v1128 = vmul.f32 %v384, %v579
          %v1129 = vmul.f32 %v384, %v583
          %v1130 = vmul.f32 %v384, %v621
          %v1131 = vmul.f32 %v388, %v579
          %v1132 = vmul.f32 %v388, %v583
          %v1133 = vmul.f32 %v388, %v621
          %1146 = vrot.lane.b32.xlu0 %v1122, 127
          %v1147 = vpop.permute.xlu0 %1146
          %1148 = vrot.lane.b32.xlu0 %v1123, 127
          %v1149 = vpop.permute.xlu0 %1148
          %1150 = vrot.lane.b32.xlu0 %v1124, 127
          %v1151 = vpop.permute.xlu0 %1150
          %1152 = vrot.lane.b32.xlu0 %v1125, 127
          %v1153 = vpop.permute.xlu0 %1152
          %1154 = vrot.lane.b32.xlu0 %v1126, 127
          %v1155 = vpop.permute.xlu0 %1154
          %1156 = vrot.lane.b32.xlu0 %v1127, 127
          %v1157 = vpop.permute.xlu0 %1156
          %1158 = vrot.lane.b32.xlu0 %v1128, 127
          %v1159 = vpop.permute.xlu0 %1158
          %1160 = vrot.lane.b32.xlu0 %v1129, 127
          %v1161 = vpop.permute.xlu0 %1160
          %1162 = vrot.lane.b32.xlu0 %v1130, 127
          %v1163 = vpop.permute.xlu0 %1162
          %1164 = vrot.lane.b32.xlu0 %v1131, 127
          %v1165 = vpop.permute.xlu0 %1164
          %1166 = vrot.lane.b32.xlu0 %v1132, 127
          %v1167 = vpop.permute.xlu0 %1166
          %1168 = vrot.lane.b32.xlu0 %v1133, 127
          %v1169 = vpop.permute.xlu0 %1168
          %v1170 = vsel %vm443, %v1147, %v1149
          %v1171 = vsel %vm443, %v1149, %v1151
          %v1172 = vsel %vm443, %v1153, %v1155
          %v1173 = vsel %vm443, %v1155, %v1157
          %v1174 = vsel %vm443, %v1159, %v1161
          %v1175 = vsel %vm443, %v1161, %v1163
          %v1176 = vsel %vm443, %v1165, %v1167
          %v1177 = vsel %vm443, %v1167, %v1169
          %v1186 = vadd.f32 %v1114, %v1170
          %v1187 = vadd.f32 %v1115, %v1171
          %v1188 = vadd.f32 %v1116, %v1172
          %v1189 = vadd.f32 %v1117, %v1173
          %v1190 = vadd.f32 %v1118, %v1174
          %v1191 = vadd.f32 %v1119, %v1175
          %v1192 = vadd.f32 %v1120, %v1176
          %v1193 = vadd.f32 %v1121, %v1177
          %v1194 = vmul.f32 %v470, %v579
          %v1195 = vmul.f32 %v470, %v583
          %v1196 = vmul.f32 %v470, %v621
          %v1197 = vmul.f32 %v474, %v579
          %v1198 = vmul.f32 %v474, %v583
          %v1199 = vmul.f32 %v474, %v621
          %v1200 = vmul.f32 %v478, %v579
          %v1201 = vmul.f32 %v478, %v583
          %v1202 = vmul.f32 %v478, %v621
          %v1203 = vmul.f32 %v482, %v579
          %v1204 = vmul.f32 %v482, %v583
          %v1205 = vmul.f32 %v482, %v621
          %1218 = vrot.lane.b32.xlu0 %v1194, 126
          %v1219 = vpop.permute.xlu0 %1218
          %1220 = vrot.lane.b32.xlu0 %v1195, 126
          %v1221 = vpop.permute.xlu0 %1220
          %1222 = vrot.lane.b32.xlu0 %v1196, 126
          %v1223 = vpop.permute.xlu0 %1222
          %1224 = vrot.lane.b32.xlu0 %v1197, 126
          %v1225 = vpop.permute.xlu0 %1224
          %1226 = vrot.lane.b32.xlu0 %v1198, 126
          %v1227 = vpop.permute.xlu0 %1226
          %1228 = vrot.lane.b32.xlu0 %v1199, 126
          %v1229 = vpop.permute.xlu0 %1228
          %1230 = vrot.lane.b32.xlu0 %v1200, 126
          %v1231 = vpop.permute.xlu0 %1230
          %1232 = vrot.lane.b32.xlu0 %v1201, 126
          %v1233 = vpop.permute.xlu0 %1232
          %1234 = vrot.lane.b32.xlu0 %v1202, 126
          %v1235 = vpop.permute.xlu0 %1234
          %1236 = vrot.lane.b32.xlu0 %v1203, 126
          %v1237 = vpop.permute.xlu0 %1236
          %1238 = vrot.lane.b32.xlu0 %v1204, 126
          %v1239 = vpop.permute.xlu0 %1238
          %1240 = vrot.lane.b32.xlu0 %v1205, 126
          %v1241 = vpop.permute.xlu0 %1240
          %v1242 = vsel %vm532, %v1219, %v1221
          %v1243 = vsel %vm532, %v1221, %v1223
          %v1244 = vsel %vm532, %v1225, %v1227
          %v1245 = vsel %vm532, %v1227, %v1229
          %v1246 = vsel %vm532, %v1231, %v1233
          %v1247 = vsel %vm532, %v1233, %v1235
          %v1248 = vsel %vm532, %v1237, %v1239
          %v1249 = vsel %vm532, %v1239, %v1241
          %v1258 = vadd.f32 %v1186, %v1242
          %v1259 = vadd.f32 %v1187, %v1243
          %v1260 = vadd.f32 %v1188, %v1244
          %v1261 = vadd.f32 %v1189, %v1245
          %v1262 = vadd.f32 %v1190, %v1246
          %v1263 = vadd.f32 %v1191, %v1247
          %v1264 = vadd.f32 %v1192, %v1248
          %v1265 = vadd.f32 %v1193, %v1249
          %v1266 = vmul.f32 %v561, %v805
          %v1267 = vmul.f32 %v561, %v809
          %v1268 = vmul.f32 %v565, %v805
          %v1269 = vmul.f32 %v565, %v809
          %v1270 = vmul.f32 %v569, %v805
          %v1271 = vmul.f32 %v569, %v809
          %v1272 = vmul.f32 %v573, %v805
          %v1273 = vmul.f32 %v573, %v809
          %v1274 = vadd.f32 %v1258, %v1266
          %v1275 = vadd.f32 %v1259, %v1267
          %v1276 = vadd.f32 %v1260, %v1268
          %v1277 = vadd.f32 %v1261, %v1269
          %v1278 = vadd.f32 %v1262, %v1270
          %v1279 = vadd.f32 %v1263, %v1271
          %v1280 = vadd.f32 %v1264, %v1272
          %v1281 = vadd.f32 %v1265, %v1273
          %v1282 = vmul.f32 %v604, %v805
          %v1283 = vmul.f32 %v604, %v809
          %v1284 = vmul.f32 %v604, %v847
          %v1285 = vmul.f32 %v608, %v805
          %v1286 = vmul.f32 %v608, %v809
          %v1287 = vmul.f32 %v608, %v847
          %v1288 = vmul.f32 %v612, %v805
          %v1289 = vmul.f32 %v612, %v809
          %v1290 = vmul.f32 %v612, %v847
          %v1291 = vmul.f32 %v616, %v805
          %v1292 = vmul.f32 %v616, %v809
          %v1293 = vmul.f32 %v616, %v847
          %1306 = vrot.lane.b32.xlu0 %v1282, 127
          %v1307 = vpop.permute.xlu0 %1306
          %1308 = vrot.lane.b32.xlu0 %v1283, 127
          %v1309 = vpop.permute.xlu0 %1308
          %1310 = vrot.lane.b32.xlu0 %v1284, 127
          %v1311 = vpop.permute.xlu0 %1310
          %1312 = vrot.lane.b32.xlu0 %v1285, 127
          %v1313 = vpop.permute.xlu0 %1312
          %1314 = vrot.lane.b32.xlu0 %v1286, 127
          %v1315 = vpop.permute.xlu0 %1314
          %1316 = vrot.lane.b32.xlu0 %v1287, 127
          %v1317 = vpop.permute.xlu0 %1316
          %1318 = vrot.lane.b32.xlu0 %v1288, 127
          %v1319 = vpop.permute.xlu0 %1318
          %1320 = vrot.lane.b32.xlu0 %v1289, 127
          %v1321 = vpop.permute.xlu0 %1320
          %1322 = vrot.lane.b32.xlu0 %v1290, 127
          %v1323 = vpop.permute.xlu0 %1322
          %1324 = vrot.lane.b32.xlu0 %v1291, 127
          %v1325 = vpop.permute.xlu0 %1324
          %1326 = vrot.lane.b32.xlu0 %v1292, 127
          %v1327 = vpop.permute.xlu0 %1326
          %1328 = vrot.lane.b32.xlu0 %v1293, 127
          %v1329 = vpop.permute.xlu0 %1328
          %v1330 = vsel %vm443, %v1307, %v1309
          %v1331 = vsel %vm443, %v1309, %v1311
          %v1332 = vsel %vm443, %v1313, %v1315
          %v1333 = vsel %vm443, %v1315, %v1317
          %v1334 = vsel %vm443, %v1319, %v1321
          %v1335 = vsel %vm443, %v1321, %v1323
          %v1336 = vsel %vm443, %v1325, %v1327
          %v1337 = vsel %vm443, %v1327, %v1329
          %v1346 = vadd.f32 %v1274, %v1330
          %v1347 = vadd.f32 %v1275, %v1331
          %v1348 = vadd.f32 %v1276, %v1332
          %v1349 = vadd.f32 %v1277, %v1333
          %v1350 = vadd.f32 %v1278, %v1334
          %v1351 = vadd.f32 %v1279, %v1335
          %v1352 = vadd.f32 %v1280, %v1336
          %v1353 = vadd.f32 %v1281, %v1337
          %v1354 = vmul.f32 %v697, %v805
          %v1355 = vmul.f32 %v697, %v809
          %v1356 = vmul.f32 %v697, %v847
          %v1357 = vmul.f32 %v701, %v805
          %v1358 = vmul.f32 %v701, %v809
          %v1359 = vmul.f32 %v701, %v847
          %v1360 = vmul.f32 %v705, %v805
          %v1361 = vmul.f32 %v705, %v809
          %v1362 = vmul.f32 %v705, %v847
          %v1363 = vmul.f32 %v709, %v805
          %v1364 = vmul.f32 %v709, %v809
          %v1365 = vmul.f32 %v709, %v847
          %1378 = vrot.lane.b32.xlu0 %v1354, 126
          %v1379 = vpop.permute.xlu0 %1378
          %1380 = vrot.lane.b32.xlu0 %v1355, 126
          %v1381 = vpop.permute.xlu0 %1380
          %1382 = vrot.lane.b32.xlu0 %v1356, 126
          %v1383 = vpop.permute.xlu0 %1382
          %1384 = vrot.lane.b32.xlu0 %v1357, 126
          %v1385 = vpop.permute.xlu0 %1384
          %1386 = vrot.lane.b32.xlu0 %v1358, 126
          %v1387 = vpop.permute.xlu0 %1386
          %1388 = vrot.lane.b32.xlu0 %v1359, 126
          %v1389 = vpop.permute.xlu0 %1388
          %1390 = vrot.lane.b32.xlu0 %v1360, 126
          %v1391 = vpop.permute.xlu0 %1390
          %1392 = vrot.lane.b32.xlu0 %v1361, 126
          %v1393 = vpop.permute.xlu0 %1392
          %1394 = vrot.lane.b32.xlu0 %v1362, 126
          %v1395 = vpop.permute.xlu0 %1394
          %1396 = vrot.lane.b32.xlu0 %v1363, 126
          %v1397 = vpop.permute.xlu0 %1396
          %1398 = vrot.lane.b32.xlu0 %v1364, 126
          %v1399 = vpop.permute.xlu0 %1398
          %1400 = vrot.lane.b32.xlu0 %v1365, 126
          %v1401 = vpop.permute.xlu0 %1400
          %v1402 = vsel %vm532, %v1379, %v1381
          %v1403 = vsel %vm532, %v1381, %v1383
          %v1404 = vsel %vm532, %v1385, %v1387
          %v1405 = vsel %vm532, %v1387, %v1389
          %v1406 = vsel %vm532, %v1391, %v1393
          %v1407 = vsel %vm532, %v1393, %v1395
          %v1408 = vsel %vm532, %v1397, %v1399
          %v1409 = vsel %vm532, %v1399, %v1401
          %v1418 = vadd.f32 %v1346, %v1402
          %v1419 = vadd.f32 %v1347, %v1403
          %v1420 = vadd.f32 %v1348, %v1404
          %v1421 = vadd.f32 %v1349, %v1405
          %v1422 = vadd.f32 %v1350, %v1406
          %v1423 = vadd.f32 %v1351, %v1407
          %v1424 = vadd.f32 %v1352, %v1408
          %v1425 = vadd.f32 %v1353, %v1409
          %s1426 = scalar_lea.vmem %s305, 3 [#allocation2]
          %v1427 = vld [vmem:[%s1426] ss:$4 sm:$0x7]
          %v1429 = vlaneseq
          %v1430 = vshrl.u32 %v1429, 7
          %v1431 = vsub.s32 0, %v1430
          %v1432 = vrot.slane %v1427, %v1431
          %v1433 = vlaneseq
          %v1434 = vshrl.u32 %v1433, 7
          %v1435 = vsub.s32 1, %v1434
          %v1436 = vrot.slane %v1427, %v1435
          %v1439 = vmul.f32 %v787, %v1432
          %v1440 = vmul.f32 %v787, %v1436
          %v1441 = vmul.f32 %v791, %v1432
          %v1442 = vmul.f32 %v791, %v1436
          %v1443 = vmul.f32 %v795, %v1432
          %v1444 = vmul.f32 %v795, %v1436
          %v1445 = vmul.f32 %v799, %v1432
          %v1446 = vmul.f32 %v799, %v1436
          %v1447 = vadd.f32 %v1418, %v1439
          %v1448 = vadd.f32 %v1419, %v1440
          %v1449 = vadd.f32 %v1420, %v1441
          %v1450 = vadd.f32 %v1421, %v1442
          %v1451 = vadd.f32 %v1422, %v1443
          %v1452 = vadd.f32 %v1423, %v1444
          %v1453 = vadd.f32 %v1424, %v1445
          %v1454 = vadd.f32 %v1425, %v1446
          %v1455 = vlaneseq
          %v1456 = vshrl.u32 %v1455, 7
          %v1457 = vsub.s32 2, %v1456
          %v1458 = vrot.slane %v1427, %v1457
          %v1460 = vmul.f32 %v830, %v1432
          %v1461 = vmul.f32 %v830, %v1436
          %v1462 = vmul.f32 %v830, %v1458
          %v1463 = vmul.f32 %v834, %v1432
          %v1464 = vmul.f32 %v834, %v1436
          %v1465 = vmul.f32 %v834, %v1458
          %v1466 = vmul.f32 %v838, %v1432
          %v1467 = vmul.f32 %v838, %v1436
          %v1468 = vmul.f32 %v838, %v1458
          %v1469 = vmul.f32 %v842, %v1432
          %v1470 = vmul.f32 %v842, %v1436
          %v1471 = vmul.f32 %v842, %v1458
          %1484 = vrot.lane.b32.xlu0 %v1460, 127
          %v1485 = vpop.permute.xlu0 %1484
          %1486 = vrot.lane.b32.xlu0 %v1461, 127
          %v1487 = vpop.permute.xlu0 %1486
          %1488 = vrot.lane.b32.xlu0 %v1462, 127
          %v1489 = vpop.permute.xlu0 %1488
          %1490 = vrot.lane.b32.xlu0 %v1463, 127
          %v1491 = vpop.permute.xlu0 %1490
          %1492 = vrot.lane.b32.xlu0 %v1464, 127
          %v1493 = vpop.permute.xlu0 %1492
          %1494 = vrot.lane.b32.xlu0 %v1465, 127
          %v1495 = vpop.permute.xlu0 %1494
          %1496 = vrot.lane.b32.xlu0 %v1466, 127
          %v1497 = vpop.permute.xlu0 %1496
          %1498 = vrot.lane.b32.xlu0 %v1467, 127
          %v1499 = vpop.permute.xlu0 %1498
          %1500 = vrot.lane.b32.xlu0 %v1468, 127
          %v1501 = vpop.permute.xlu0 %1500
          %1502 = vrot.lane.b32.xlu0 %v1469, 127
          %v1503 = vpop.permute.xlu0 %1502
          %1504 = vrot.lane.b32.xlu0 %v1470, 127
          %v1505 = vpop.permute.xlu0 %1504
          %1506 = vrot.lane.b32.xlu0 %v1471, 127
          %v1507 = vpop.permute.xlu0 %1506
          %v1508 = vsel %vm443, %v1485, %v1487
          %v1509 = vsel %vm443, %v1487, %v1489
          %v1510 = vsel %vm443, %v1491, %v1493
          %v1511 = vsel %vm443, %v1493, %v1495
          %v1512 = vsel %vm443, %v1497, %v1499
          %v1513 = vsel %vm443, %v1499, %v1501
          %v1514 = vsel %vm443, %v1503, %v1505
          %v1515 = vsel %vm443, %v1505, %v1507
          %v1524 = vadd.f32 %v1447, %v1508
          %v1525 = vadd.f32 %v1448, %v1509
          %v1526 = vadd.f32 %v1449, %v1510
          %v1527 = vadd.f32 %v1450, %v1511
          %v1528 = vadd.f32 %v1451, %v1512
          %v1529 = vadd.f32 %v1452, %v1513
          %v1530 = vadd.f32 %v1453, %v1514
          %v1531 = vadd.f32 %v1454, %v1515
          %v1532 = vmul.f32 %v923, %v1432
          %v1533 = vmul.f32 %v923, %v1436
          %v1534 = vmul.f32 %v923, %v1458
          %v1535 = vmul.f32 %v927, %v1432
          %v1536 = vmul.f32 %v927, %v1436
          %v1537 = vmul.f32 %v927, %v1458
          %v1538 = vmul.f32 %v931, %v1432
          %v1539 = vmul.f32 %v931, %v1436
          %v1540 = vmul.f32 %v931, %v1458
          %v1541 = vmul.f32 %v935, %v1432
          %v1542 = vmul.f32 %v935, %v1436
          %v1543 = vmul.f32 %v935, %v1458
          %1556 = vrot.lane.b32.xlu0 %v1532, 126
          %v1557 = vpop.permute.xlu0 %1556
          %1558 = vrot.lane.b32.xlu0 %v1533, 126
          %v1559 = vpop.permute.xlu0 %1558
          %1560 = vrot.lane.b32.xlu0 %v1534, 126
          %v1561 = vpop.permute.xlu0 %1560
          %1562 = vrot.lane.b32.xlu0 %v1535, 126
          %v1563 = vpop.permute.xlu0 %1562
          %1564 = vrot.lane.b32.xlu0 %v1536, 126
          %v1565 = vpop.permute.xlu0 %1564
          %1566 = vrot.lane.b32.xlu0 %v1537, 126
          %v1567 = vpop.permute.xlu0 %1566
          %1568 = vrot.lane.b32.xlu0 %v1538, 126
          %v1569 = vpop.permute.xlu0 %1568
          %1570 = vrot.lane.b32.xlu0 %v1539, 126
          %v1571 = vpop.permute.xlu0 %1570
          %1572 = vrot.lane.b32.xlu0 %v1540, 126
          %v1573 = vpop.permute.xlu0 %1572
          %1574 = vrot.lane.b32.xlu0 %v1541, 126
          %v1575 = vpop.permute.xlu0 %1574
          %1576 = vrot.lane.b32.xlu0 %v1542, 126
          %v1577 = vpop.permute.xlu0 %1576
          %1578 = vrot.lane.b32.xlu0 %v1543, 126
          %v1579 = vpop.permute.xlu0 %1578
          %v1580 = vsel %vm532, %v1557, %v1559
          %v1581 = vsel %vm532, %v1559, %v1561
          %v1582 = vsel %vm532, %v1563, %v1565
          %v1583 = vsel %vm532, %v1565, %v1567
          %v1584 = vsel %vm532, %v1569, %v1571
          %v1585 = vsel %vm532, %v1571, %v1573
          %v1586 = vsel %vm532, %v1575, %v1577
          %v1587 = vsel %vm532, %v1577, %v1579
          %v1596 = vadd.f32 %v1524, %v1580
          %v1597 = vadd.f32 %v1525, %v1581
          %v1598 = vadd.f32 %v1526, %v1582
          %v1599 = vadd.f32 %v1527, %v1583
          %v1600 = vadd.f32 %v1528, %v1584
          %v1601 = vadd.f32 %v1529, %v1585
          %v1602 = vadd.f32 %v1530, %v1586
          %v1603 = vadd.f32 %v1531, %v1587
          %v1604 = vmax.f32 %v1596, 0.0
          %v1605 = vmax.f32 %v1597, 0.0
          %v1606 = vmax.f32 %v1598, 0.0
          %v1607 = vmax.f32 %v1599, 0.0
          %v1608 = vmax.f32 %v1600, 0.0
          %v1609 = vmax.f32 %v1601, 0.0
          %v1610 = vmax.f32 %v1602, 0.0
          %v1611 = vmax.f32 %v1603, 0.0
          %1612 = vmatprep.subr.mxu0 %v301
          %1613 = vmatpush1.xpose.msra.mxu0 %v300
          %1614 = vmatprep.subr.mxu0 %v303
          %1615 = vmatpush1.xpose.msra.mxu0 %v302
          %1616 = vmatprep.subr.mxu0 0.0
          %1617 = vmatpush1.xpose.msra.mxu0 0.0
          %1618 = vmatprep.subr.mxu0 0.0
          %1619 = vmatpush1.xpose.msra.mxu0 0.0
          %1620 = vmatprep.subr.mxu0 0.0
          %1621 = vmatpush1.xpose.msra.mxu0 0.0
          %1622 = vmatprep.subr.mxu0 0.0
          %1623 = vmatpush1.xpose.msra.mxu0 0.0
          %1624 = vmatprep.subr.mxu0 0.0
          %1625 = vmatpush1.xpose.msra.mxu0 0.0
          %1626 = vmatprep.subr.mxu0 0.0
          %1627 = vmatpush1.xpose.msra.mxu0 0.0
          %1628 = vmatprep.subr.mxu0 0.0
          %1629 = vmatpush1.xpose.msra.mxu0 0.0
          %1630 = vmatprep.subr.mxu0 0.0
          %1631 = vmatpush1.xpose.msra.mxu0 0.0
          %1632 = vmatprep.subr.mxu0 0.0
          %1633 = vmatpush1.xpose.msra.mxu0 0.0
          %1634 = vmatprep.subr.mxu0 0.0
          %1635 = vmatpush1.xpose.msra.mxu0 0.0
          %1636 = vmatprep.subr.mxu0 0.0
          %1637 = vmatpush1.xpose.msra.mxu0 0.0
          %1638 = vmatprep.subr.mxu0 0.0
          %1639 = vmatpush1.xpose.msra.mxu0 0.0
          %1640 = vmatprep.subr.mxu0 0.0
          %1641 = vmatpush1.xpose.msra.mxu0 0.0
          %1642 = vmatprep.subr.mxu0 0.0
          %1643 = vmatpush1.xpose.msra.mxu0 0.0
          %1644 = vmatprep.subr.mxu0 0.0
          %1645 = vmatpush1.xpose.msra.mxu0 0.0
          %1646 = vmatprep.subr.mxu0 0.0
          %1647 = vmatpush1.xpose.msra.mxu0 0.0
          %1648 = vmatprep.subr.mxu0 0.0
          %1649 = vmatpush1.xpose.msra.mxu0 0.0
          %1650 = vmatprep.subr.mxu0 0.0
          %1651 = vmatpush1.xpose.msra.mxu0 0.0
          %1652 = vmatprep.subr.mxu0 0.0
          %1653 = vmatpush1.xpose.msra.mxu0 0.0
          %1654 = vmatprep.subr.mxu0 0.0
          %1655 = vmatpush1.xpose.msra.mxu0 0.0
          %1656 = vmatprep.subr.mxu0 0.0
          %1657 = vmatpush1.xpose.msra.mxu0 0.0
          %1658 = vmatprep.subr.mxu0 0.0
          %1659 = vmatpush1.xpose.msra.mxu0 0.0
          %1660 = vmatprep.subr.mxu0 0.0
          %1661 = vmatpush1.xpose.msra.mxu0 0.0
          %1662 = vmatprep.subr.mxu0 0.0
          %1663 = vmatpush1.xpose.msra.mxu0 0.0
          %1664 = vmatprep.subr.mxu0 0.0
          %1665 = vmatpush1.xpose.msra.mxu0 0.0
          %1666 = vmatprep.subr.mxu0 0.0
          %1667 = vmatpush1.xpose.msra.mxu0 0.0
          %1668 = vmatprep.subr.mxu0 0.0
          %1669 = vmatpush1.xpose.msra.mxu0 0.0
          %1670 = vmatprep.subr.mxu0 0.0
          %1671 = vmatpush1.xpose.msra.mxu0 0.0
          %1672 = vmatprep.subr.mxu0 0.0
          %1673 = vmatpush1.xpose.msra.mxu0 0.0
          %1674 = vmatprep.subr.mxu0 0.0
          %1675 = vmatpush1.xpose.msra.mxu0 0.0
          %1676 = vmatprep.mubr.f32.mxu0 %v1605
          %1677 = vmatmul.mubr.f32.gmra.mrb[0].mxu0 %v1604
          %v1678 = vpop.f32.mrb[0].mxu0
          %v1679 = vadd.f32 0.0, %v1678
          %v1680 = vpop.f32.mrb[0].mxu0
          %1681 = vmatprep.mubr.f32.mxu0 %v1607
          %1682 = vmatmul.mubr.f32.gmra.mrb[0].mxu0 %v1606
          %v1683 = vpop.f32.mrb[0].mxu0
          %v1684 = vadd.f32 0.0, %v1683
          %v1685 = vpop.f32.mrb[0].mxu0
          %1686 = vmatprep.mubr.f32.mxu0 %v1609
          %1687 = vmatmul.mubr.f32.gmra.mrb[0].mxu0 %v1608
          %v1688 = vpop.f32.mrb[0].mxu0
          %v1689 = vadd.f32 0.0, %v1688
          %v1690 = vpop.f32.mrb[0].mxu0
          %1691 = vmatprep.mubr.f32.mxu0 %v1611
          %1692 = vmatmul.mubr.f32.gmra.mrb[0].mxu0 %v1610
          %v1693 = vpop.f32.mrb[0].mxu0
          %v1694 = vadd.f32 0.0, %v1693
          %v1695 = vpop.f32.mrb[0].mxu0
          %1696 = vdwg.mxu0
          %v1697 = vadd.f32 %v283, %v1679
          %v1698 = vadd.f32 %v284, %v1684
          %v1699 = vadd.f32 %v285, %v1689
          %v1700 = vadd.f32 %v286, %v1694
          %s1701 = sadd.s32 %s296, 73
          %s1702 = smul.addr %s1701, 4
          %s1703 = scalar_lea.vmem %s225, %s1702 [#allocation2]
          %v1704 = vld [vmem:[%s1703] ss:$4 sm:$0x7]
          %v1706 = vlaneseq
          %v1707 = vshrl.u32 %v1706, 7
          %v1708 = vsub.s32 0, %v1707
          %v1709 = vrot.slane %v1704, %v1708
          %v1710 = vlaneseq
          %v1711 = vshrl.u32 %v1710, 7
          %v1712 = vsub.s32 1, %v1711
          %v1713 = vrot.slane %v1704, %v1712
          %v1716 = vmul.f32 %v310, %v1709
          %v1717 = vmul.f32 %v310, %v1713
          %v1718 = vmul.f32 %v315, %v1709
          %v1719 = vmul.f32 %v315, %v1713
          %v1720 = vmul.f32 %v320, %v1709
          %v1721 = vmul.f32 %v320, %v1713
          %v1722 = vmul.f32 %v325, %v1709
          %v1723 = vmul.f32 %v325, %v1713
          %v1724 = vadd.f32 %v1716, %v349
          %v1725 = vadd.f32 %v1717, %v349
          %v1726 = vadd.f32 %v1718, %v354
          %v1727 = vadd.f32 %v1719, %v354
          %v1728 = vadd.f32 %v1720, %v359
          %v1729 = vadd.f32 %v1721, %v359
          %v1730 = vadd.f32 %v1722, %v364
          %v1731 = vadd.f32 %v1723, %v364
          %v1732 = vlaneseq
          %v1733 = vshrl.u32 %v1732, 7
          %v1734 = vsub.s32 2, %v1733
          %v1735 = vrot.slane %v1704, %v1734
          %v1737 = vmul.f32 %v376, %v1709
          %v1738 = vmul.f32 %v376, %v1713
          %v1739 = vmul.f32 %v376, %v1735
          %v1740 = vmul.f32 %v380, %v1709
          %v1741 = vmul.f32 %v380, %v1713
          %v1742 = vmul.f32 %v380, %v1735
          %v1743 = vmul.f32 %v384, %v1709
          %v1744 = vmul.f32 %v384, %v1713
          %v1745 = vmul.f32 %v384, %v1735
          %v1746 = vmul.f32 %v388, %v1709
          %v1747 = vmul.f32 %v388, %v1713
          %v1748 = vmul.f32 %v388, %v1735
          %1761 = vrot.lane.b32.xlu0 %v1737, 127
          %v1762 = vpop.permute.xlu0 %1761
          %1763 = vrot.lane.b32.xlu0 %v1738, 127
          %v1764 = vpop.permute.xlu0 %1763
          %1765 = vrot.lane.b32.xlu0 %v1739, 127
          %v1766 = vpop.permute.xlu0 %1765
          %1767 = vrot.lane.b32.xlu0 %v1740, 127
          %v1768 = vpop.permute.xlu0 %1767
          %1769 = vrot.lane.b32.xlu0 %v1741, 127
          %v1770 = vpop.permute.xlu0 %1769
          %1771 = vrot.lane.b32.xlu0 %v1742, 127
          %v1772 = vpop.permute.xlu0 %1771
          %1773 = vrot.lane.b32.xlu0 %v1743, 127
          %v1774 = vpop.permute.xlu0 %1773
          %1775 = vrot.lane.b32.xlu0 %v1744, 127
          %v1776 = vpop.permute.xlu0 %1775
          %1777 = vrot.lane.b32.xlu0 %v1745, 127
          %v1778 = vpop.permute.xlu0 %1777
          %1779 = vrot.lane.b32.xlu0 %v1746, 127
          %v1780 = vpop.permute.xlu0 %1779
          %1781 = vrot.lane.b32.xlu0 %v1747, 127
          %v1782 = vpop.permute.xlu0 %1781
          %1783 = vrot.lane.b32.xlu0 %v1748, 127
          %v1784 = vpop.permute.xlu0 %1783
          %v1785 = vsel %vm443, %v1762, %v1764
          %v1786 = vsel %vm443, %v1764, %v1766
          %v1787 = vsel %vm443, %v1768, %v1770
          %v1788 = vsel %vm443, %v1770, %v1772
          %v1789 = vsel %vm443, %v1774, %v1776
          %v1790 = vsel %vm443, %v1776, %v1778
          %v1791 = vsel %vm443, %v1780, %v1782
          %v1792 = vsel %vm443, %v1782, %v1784
          %v1801 = vadd.f32 %v1724, %v1785
          %v1802 = vadd.f32 %v1725, %v1786
          %v1803 = vadd.f32 %v1726, %v1787
          %v1804 = vadd.f32 %v1727, %v1788
          %v1805 = vadd.f32 %v1728, %v1789
          %v1806 = vadd.f32 %v1729, %v1790
          %v1807 = vadd.f32 %v1730, %v1791
          %v1808 = vadd.f32 %v1731, %v1792
          %v1809 = vmul.f32 %v470, %v1709
          %v1810 = vmul.f32 %v470, %v1713
          %v1811 = vmul.f32 %v470, %v1735
          %v1812 = vmul.f32 %v474, %v1709
          %v1813 = vmul.f32 %v474, %v1713
          %v1814 = vmul.f32 %v474, %v1735
          %v1815 = vmul.f32 %v478, %v1709
          %v1816 = vmul.f32 %v478, %v1713
          %v1817 = vmul.f32 %v478, %v1735
          %v1818 = vmul.f32 %v482, %v1709
          %v1819 = vmul.f32 %v482, %v1713
          %v1820 = vmul.f32 %v482, %v1735
          %1833 = vrot.lane.b32.xlu0 %v1809, 126
          %v1834 = vpop.permute.xlu0 %1833
          %1835 = vrot.lane.b32.xlu0 %v1810, 126
          %v1836 = vpop.permute.xlu0 %1835
          %1837 = vrot.lane.b32.xlu0 %v1811, 126
          %v1838 = vpop.permute.xlu0 %1837
          %1839 = vrot.lane.b32.xlu0 %v1812, 126
          %v1840 = vpop.permute.xlu0 %1839
          %1841 = vrot.lane.b32.xlu0 %v1813, 126
          %v1842 = vpop.permute.xlu0 %1841
          %1843 = vrot.lane.b32.xlu0 %v1814, 126
          %v1844 = vpop.permute.xlu0 %1843
          %1845 = vrot.lane.b32.xlu0 %v1815, 126
          %v1846 = vpop.permute.xlu0 %1845
          %1847 = vrot.lane.b32.xlu0 %v1816, 126
          %v1848 = vpop.permute.xlu0 %1847
          %1849 = vrot.lane.b32.xlu0 %v1817, 126
          %v1850 = vpop.permute.xlu0 %1849
          %1851 = vrot.lane.b32.xlu0 %v1818, 126
          %v1852 = vpop.permute.xlu0 %1851
          %1853 = vrot.lane.b32.xlu0 %v1819, 126
          %v1854 = vpop.permute.xlu0 %1853
          %1855 = vrot.lane.b32.xlu0 %v1820, 126
          %v1856 = vpop.permute.xlu0 %1855
          %v1857 = vsel %vm532, %v1834, %v1836
          %v1858 = vsel %vm532, %v1836, %v1838
          %v1859 = vsel %vm532, %v1840, %v1842
          %v1860 = vsel %vm532, %v1842, %v1844
          %v1861 = vsel %vm532, %v1846, %v1848
          %v1862 = vsel %vm532, %v1848, %v1850
          %v1863 = vsel %vm532, %v1852, %v1854
          %v1864 = vsel %vm532, %v1854, %v1856
          %v1873 = vadd.f32 %v1801, %v1857
          %v1874 = vadd.f32 %v1802, %v1858
          %v1875 = vadd.f32 %v1803, %v1859
          %v1876 = vadd.f32 %v1804, %v1860
          %v1877 = vadd.f32 %v1805, %v1861
          %v1878 = vadd.f32 %v1806, %v1862
          %v1879 = vadd.f32 %v1807, %v1863
          %v1880 = vadd.f32 %v1808, %v1864
          %s1881 = scalar_lea.vmem %s1703, 1 [#allocation2]
          %v1882 = vld [vmem:[%s1881] ss:$4 sm:$0x7]
          %v1884 = vlaneseq
          %v1885 = vshrl.u32 %v1884, 7
          %v1886 = vsub.s32 0, %v1885
          %v1887 = vrot.slane %v1882, %v1886
          %v1888 = vlaneseq
          %v1889 = vshrl.u32 %v1888, 7
          %v1890 = vsub.s32 1, %v1889
          %v1891 = vrot.slane %v1882, %v1890
          %v1894 = vmul.f32 %v561, %v1887
          %v1895 = vmul.f32 %v561, %v1891
          %v1896 = vmul.f32 %v565, %v1887
          %v1897 = vmul.f32 %v565, %v1891
          %v1898 = vmul.f32 %v569, %v1887
          %v1899 = vmul.f32 %v569, %v1891
          %v1900 = vmul.f32 %v573, %v1887
          %v1901 = vmul.f32 %v573, %v1891
          %v1902 = vadd.f32 %v1873, %v1894
          %v1903 = vadd.f32 %v1874, %v1895
          %v1904 = vadd.f32 %v1875, %v1896
          %v1905 = vadd.f32 %v1876, %v1897
          %v1906 = vadd.f32 %v1877, %v1898
          %v1907 = vadd.f32 %v1878, %v1899
          %v1908 = vadd.f32 %v1879, %v1900
          %v1909 = vadd.f32 %v1880, %v1901
          %v1910 = vlaneseq
          %v1911 = vshrl.u32 %v1910, 7
          %v1912 = vsub.s32 2, %v1911
          %v1913 = vrot.slane %v1882, %v1912
          %v1915 = vmul.f32 %v604, %v1887
          %v1916 = vmul.f32 %v604, %v1891
          %v1917 = vmul.f32 %v604, %v1913
          %v1918 = vmul.f32 %v608, %v1887
          %v1919 = vmul.f32 %v608, %v1891
          %v1920 = vmul.f32 %v608, %v1913
          %v1921 = vmul.f32 %v612, %v1887
          %v1922 = vmul.f32 %v612, %v1891
          %v1923 = vmul.f32 %v612, %v1913
          %v1924 = vmul.f32 %v616, %v1887
          %v1925 = vmul.f32 %v616, %v1891
          %v1926 = vmul.f32 %v616, %v1913
          %1939 = vrot.lane.b32.xlu0 %v1915, 127
          %v1940 = vpop.permute.xlu0 %1939
          %1941 = vrot.lane.b32.xlu0 %v1916, 127
          %v1942 = vpop.permute.xlu0 %1941
          %1943 = vrot.lane.b32.xlu0 %v1917, 127
          %v1944 = vpop.permute.xlu0 %1943
          %1945 = vrot.lane.b32.xlu0 %v1918, 127
          %v1946 = vpop.permute.xlu0 %1945
          %1947 = vrot.lane.b32.xlu0 %v1919, 127
          %v1948 = vpop.permute.xlu0 %1947
          %1949 = vrot.lane.b32.xlu0 %v1920, 127
          %v1950 = vpop.permute.xlu0 %1949
          %1951 = vrot.lane.b32.xlu0 %v1921, 127
          %v1952 = vpop.permute.xlu0 %1951
          %1953 = vrot.lane.b32.xlu0 %v1922, 127
          %v1954 = vpop.permute.xlu0 %1953
          %1955 = vrot.lane.b32.xlu0 %v1923, 127
          %v1956 = vpop.permute.xlu0 %1955
          %1957 = vrot.lane.b32.xlu0 %v1924, 127
          %v1958 = vpop.permute.xlu0 %1957
          %1959 = vrot.lane.b32.xlu0 %v1925, 127
          %v1960 = vpop.permute.xlu0 %1959
          %1961 = vrot.lane.b32.xlu0 %v1926, 127
          %v1962 = vpop.permute.xlu0 %1961
          %v1963 = vsel %vm443, %v1940, %v1942
          %v1964 = vsel %vm443, %v1942, %v1944
          %v1965 = vsel %vm443, %v1946, %v1948
          %v1966 = vsel %vm443, %v1948, %v1950
          %v1967 = vsel %vm443, %v1952, %v1954
          %v1968 = vsel %vm443, %v1954, %v1956
          %v1969 = vsel %vm443, %v1958, %v1960
          %v1970 = vsel %vm443, %v1960, %v1962
          %v1979 = vadd.f32 %v1902, %v1963
          %v1980 = vadd.f32 %v1903, %v1964
          %v1981 = vadd.f32 %v1904, %v1965
          %v1982 = vadd.f32 %v1905, %v1966
          %v1983 = vadd.f32 %v1906, %v1967
          %v1984 = vadd.f32 %v1907, %v1968
          %v1985 = vadd.f32 %v1908, %v1969
          %v1986 = vadd.f32 %v1909, %v1970
          %v1987 = vmul.f32 %v697, %v1887
          %v1988 = vmul.f32 %v697, %v1891
          %v1989 = vmul.f32 %v697, %v1913
          %v1990 = vmul.f32 %v701, %v1887
          %v1991 = vmul.f32 %v701, %v1891
          %v1992 = vmul.f32 %v701, %v1913
          %v1993 = vmul.f32 %v705, %v1887
          %v1994 = vmul.f32 %v705, %v1891
          %v1995 = vmul.f32 %v705, %v1913
          %v1996 = vmul.f32 %v709, %v1887
          %v1997 = vmul.f32 %v709, %v1891
          %v1998 = vmul.f32 %v709, %v1913
          %2011 = vrot.lane.b32.xlu0 %v1987, 126
          %v2012 = vpop.permute.xlu0 %2011
          %2013 = vrot.lane.b32.xlu0 %v1988, 126
          %v2014 = vpop.permute.xlu0 %2013
          %2015 = vrot.lane.b32.xlu0 %v1989, 126
          %v2016 = vpop.permute.xlu0 %2015
          %2017 = vrot.lane.b32.xlu0 %v1990, 126
          %v2018 = vpop.permute.xlu0 %2017
          %2019 = vrot.lane.b32.xlu0 %v1991, 126
          %v2020 = vpop.permute.xlu0 %2019
          %2021 = vrot.lane.b32.xlu0 %v1992, 126
          %v2022 = vpop.permute.xlu0 %2021
          %2023 = vrot.lane.b32.xlu0 %v1993, 126
          %v2024 = vpop.permute.xlu0 %2023
          %2025 = vrot.lane.b32.xlu0 %v1994, 126
          %v2026 = vpop.permute.xlu0 %2025
          %2027 = vrot.lane.b32.xlu0 %v1995, 126
          %v2028 = vpop.permute.xlu0 %2027
          %2029 = vrot.lane.b32.xlu0 %v1996, 126
          %v2030 = vpop.permute.xlu0 %2029
          %2031 = vrot.lane.b32.xlu0 %v1997, 126
          %v2032 = vpop.permute.xlu0 %2031
          %2033 = vrot.lane.b32.xlu0 %v1998, 126
          %v2034 = vpop.permute.xlu0 %2033
          %v2035 = vsel %vm532, %v2012, %v2014
          %v2036 = vsel %vm532, %v2014, %v2016
          %v2037 = vsel %vm532, %v2018, %v2020
          %v2038 = vsel %vm532, %v2020, %v2022
          %v2039 = vsel %vm532, %v2024, %v2026
          %v2040 = vsel %vm532, %v2026, %v2028
          %v2041 = vsel %vm532, %v2030, %v2032
          %v2042 = vsel %vm532, %v2032, %v2034
          %v2051 = vadd.f32 %v1979, %v2035
          %v2052 = vadd.f32 %v1980, %v2036
          %v2053 = vadd.f32 %v1981, %v2037
          %v2054 = vadd.f32 %v1982, %v2038
          %v2055 = vadd.f32 %v1983, %v2039
          %v2056 = vadd.f32 %v1984, %v2040
          %v2057 = vadd.f32 %v1985, %v2041
          %v2058 = vadd.f32 %v1986, %v2042
          %s2059 = scalar_lea.vmem %s1703, 2 [#allocation2]
          %v2060 = vld [vmem:[%s2059] ss:$4 sm:$0x7]
          %v2062 = vlaneseq
          %v2063 = vshrl.u32 %v2062, 7
          %v2064 = vsub.s32 0, %v2063
          %v2065 = vrot.slane %v2060, %v2064
          %v2066 = vlaneseq
          %v2067 = vshrl.u32 %v2066, 7
          %v2068 = vsub.s32 1, %v2067
          %v2069 = vrot.slane %v2060, %v2068
          %v2072 = vmul.f32 %v787, %v2065
          %v2073 = vmul.f32 %v787, %v2069
          %v2074 = vmul.f32 %v791, %v2065
          %v2075 = vmul.f32 %v791, %v2069
          %v2076 = vmul.f32 %v795, %v2065
          %v2077 = vmul.f32 %v795, %v2069
          %v2078 = vmul.f32 %v799, %v2065
          %v2079 = vmul.f32 %v799, %v2069
          %v2080 = vadd.f32 %v2051, %v2072
          %v2081 = vadd.f32 %v2052, %v2073
          %v2082 = vadd.f32 %v2053, %v2074
          %v2083 = vadd.f32 %v2054, %v2075
          %v2084 = vadd.f32 %v2055, %v2076
          %v2085 = vadd.f32 %v2056, %v2077
          %v2086 = vadd.f32 %v2057, %v2078
          %v2087 = vadd.f32 %v2058, %v2079
          %v2088 = vlaneseq
          %v2089 = vshrl.u32 %v2088, 7
          %v2090 = vsub.s32 2, %v2089
          %v2091 = vrot.slane %v2060, %v2090
          %v2093 = vmul.f32 %v830, %v2065
          %v2094 = vmul.f32 %v830, %v2069
          %v2095 = vmul.f32 %v830, %v2091
          %v2096 = vmul.f32 %v834, %v2065
          %v2097 = vmul.f32 %v834, %v2069
          %v2098 = vmul.f32 %v834, %v2091
          %v2099 = vmul.f32 %v838, %v2065
          %v2100 = vmul.f32 %v838, %v2069
          %v2101 = vmul.f32 %v838, %v2091
          %v2102 = vmul.f32 %v842, %v2065
          %v2103 = vmul.f32 %v842, %v2069
          %v2104 = vmul.f32 %v842, %v2091
          %2117 = vrot.lane.b32.xlu0 %v2093, 127
          %v2118 = vpop.permute.xlu0 %2117
          %2119 = vrot.lane.b32.xlu0 %v2094, 127
          %v2120 = vpop.permute.xlu0 %2119
          %2121 = vrot.lane.b32.xlu0 %v2095, 127
          %v2122 = vpop.permute.xlu0 %2121
          %2123 = vrot.lane.b32.xlu0 %v2096, 127
          %v2124 = vpop.permute.xlu0 %2123
          %2125 = vrot.lane.b32.xlu0 %v2097, 127
          %v2126 = vpop.permute.xlu0 %2125
          %2127 = vrot.lane.b32.xlu0 %v2098, 127
          %v2128 = vpop.permute.xlu0 %2127
          %2129 = vrot.lane.b32.xlu0 %v2099, 127
          %v2130 = vpop.permute.xlu0 %2129
          %2131 = vrot.lane.b32.xlu0 %v2100, 127
          %v2132 = vpop.permute.xlu0 %2131
          %2133 = vrot.lane.b32.xlu0 %v2101, 127
          %v2134 = vpop.permute.xlu0 %2133
          %2135 = vrot.lane.b32.xlu0 %v2102, 127
          %v2136 = vpop.permute.xlu0 %2135
          %2137 = vrot.lane.b32.xlu0 %v2103, 127
          %v2138 = vpop.permute.xlu0 %2137
          %2139 = vrot.lane.b32.xlu0 %v2104, 127
          %v2140 = vpop.permute.xlu0 %2139
          %v2141 = vsel %vm443, %v2118, %v2120
          %v2142 = vsel %vm443, %v2120, %v2122
          %v2143 = vsel %vm443, %v2124, %v2126
          %v2144 = vsel %vm443, %v2126, %v2128
          %v2145 = vsel %vm443, %v2130, %v2132
          %v2146 = vsel %vm443, %v2132, %v2134
          %v2147 = vsel %vm443, %v2136, %v2138
          %v2148 = vsel %vm443, %v2138, %v2140
          %v2157 = vadd.f32 %v2080, %v2141
          %v2158 = vadd.f32 %v2081, %v2142
          %v2159 = vadd.f32 %v2082, %v2143
          %v2160 = vadd.f32 %v2083, %v2144
          %v2161 = vadd.f32 %v2084, %v2145
          %v2162 = vadd.f32 %v2085, %v2146
          %v2163 = vadd.f32 %v2086, %v2147
          %v2164 = vadd.f32 %v2087, %v2148
          %v2165 = vmul.f32 %v923, %v2065
          %v2166 = vmul.f32 %v923, %v2069
          %v2167 = vmul.f32 %v923, %v2091
          %v2168 = vmul.f32 %v927, %v2065
          %v2169 = vmul.f32 %v927, %v2069
          %v2170 = vmul.f32 %v927, %v2091
          %v2171 = vmul.f32 %v931, %v2065
          %v2172 = vmul.f32 %v931, %v2069
          %v2173 = vmul.f32 %v931, %v2091
          %v2174 = vmul.f32 %v935, %v2065
          %v2175 = vmul.f32 %v935, %v2069
          %v2176 = vmul.f32 %v935, %v2091
          %2189 = vrot.lane.b32.xlu0 %v2165, 126
          %v2190 = vpop.permute.xlu0 %2189
          %2191 = vrot.lane.b32.xlu0 %v2166, 126
          %v2192 = vpop.permute.xlu0 %2191
          %2193 = vrot.lane.b32.xlu0 %v2167, 126
          %v2194 = vpop.permute.xlu0 %2193
          %2195 = vrot.lane.b32.xlu0 %v2168, 126
          %v2196 = vpop.permute.xlu0 %2195
          %2197 = vrot.lane.b32.xlu0 %v2169, 126
          %v2198 = vpop.permute.xlu0 %2197
          %2199 = vrot.lane.b32.xlu0 %v2170, 126
          %v2200 = vpop.permute.xlu0 %2199
          %2201 = vrot.lane.b32.xlu0 %v2171, 126
          %v2202 = vpop.permute.xlu0 %2201
          %2203 = vrot.lane.b32.xlu0 %v2172, 126
          %v2204 = vpop.permute.xlu0 %2203
          %2205 = vrot.lane.b32.xlu0 %v2173, 126
          %v2206 = vpop.permute.xlu0 %2205
          %2207 = vrot.lane.b32.xlu0 %v2174, 126
          %v2208 = vpop.permute.xlu0 %2207
          %2209 = vrot.lane.b32.xlu0 %v2175, 126
          %v2210 = vpop.permute.xlu0 %2209
          %2211 = vrot.lane.b32.xlu0 %v2176, 126
          %v2212 = vpop.permute.xlu0 %2211
          %v2213 = vsel %vm532, %v2190, %v2192
          %v2214 = vsel %vm532, %v2192, %v2194
          %v2215 = vsel %vm532, %v2196, %v2198
          %v2216 = vsel %vm532, %v2198, %v2200
          %v2217 = vsel %vm532, %v2202, %v2204
          %v2218 = vsel %vm532, %v2204, %v2206
          %v2219 = vsel %vm532, %v2208, %v2210
          %v2220 = vsel %vm532, %v2210, %v2212
          %v2229 = vadd.f32 %v2157, %v2213
          %v2230 = vadd.f32 %v2158, %v2214
          %v2231 = vadd.f32 %v2159, %v2215
          %v2232 = vadd.f32 %v2160, %v2216
          %v2233 = vadd.f32 %v2161, %v2217
          %v2234 = vadd.f32 %v2162, %v2218
          %v2235 = vadd.f32 %v2163, %v2219
          %v2236 = vadd.f32 %v2164, %v2220
          %v2237 = vmax.f32 %v2229, 0.0
          %v2238 = vmax.f32 %v2230, 0.0
          %v2239 = vmax.f32 %v2231, 0.0
          %v2240 = vmax.f32 %v2232, 0.0
          %v2241 = vmax.f32 %v2233, 0.0
          %v2242 = vmax.f32 %v2234, 0.0
          %v2243 = vmax.f32 %v2235, 0.0
          %v2244 = vmax.f32 %v2236, 0.0
          %2245 = vmatprep.subr.mxu0 %v301
          %2246 = vmatpush1.xpose.msra.mxu0 %v300
          %2247 = vmatprep.subr.mxu0 %v303
          %2248 = vmatpush1.xpose.msra.mxu0 %v302
          %2249 = vmatprep.subr.mxu0 0.0
          %2250 = vmatpush1.xpose.msra.mxu0 0.0
          %2251 = vmatprep.subr.mxu0 0.0
          %2252 = vmatpush1.xpose.msra.mxu0 0.0
          %2253 = vmatprep.subr.mxu0 0.0
          %2254 = vmatpush1.xpose.msra.mxu0 0.0
          %2255 = vmatprep.subr.mxu0 0.0
          %2256 = vmatpush1.xpose.msra.mxu0 0.0
          %2257 = vmatprep.subr.mxu0 0.0
          %2258 = vmatpush1.xpose.msra.mxu0 0.0
          %2259 = vmatprep.subr.mxu0 0.0
          %2260 = vmatpush1.xpose.msra.mxu0 0.0
          %2261 = vmatprep.subr.mxu0 0.0
          %2262 = vmatpush1.xpose.msra.mxu0 0.0
          %2263 = vmatprep.subr.mxu0 0.0
          %2264 = vmatpush1.xpose.msra.mxu0 0.0
          %2265 = vmatprep.subr.mxu0 0.0
          %2266 = vmatpush1.xpose.msra.mxu0 0.0
          %2267 = vmatprep.subr.mxu0 0.0
          %2268 = vmatpush1.xpose.msra.mxu0 0.0
          %2269 = vmatprep.subr.mxu0 0.0
          %2270 = vmatpush1.xpose.msra.mxu0 0.0
          %2271 = vmatprep.subr.mxu0 0.0
          %2272 = vmatpush1.xpose.msra.mxu0 0.0
          %2273 = vmatprep.subr.mxu0 0.0
          %2274 = vmatpush1.xpose.msra.mxu0 0.0
          %2275 = vmatprep.subr.mxu0 0.0
          %2276 = vmatpush1.xpose.msra.mxu0 0.0
          %2277 = vmatprep.subr.mxu0 0.0
          %2278 = vmatpush1.xpose.msra.mxu0 0.0
          %2279 = vmatprep.subr.mxu0 0.0
          %2280 = vmatpush1.xpose.msra.mxu0 0.0
          %2281 = vmatprep.subr.mxu0 0.0
          %2282 = vmatpush1.xpose.msra.mxu0 0.0
          %2283 = vmatprep.subr.mxu0 0.0
          %2284 = vmatpush1.xpose.msra.mxu0 0.0
          %2285 = vmatprep.subr.mxu0 0.0
          %2286 = vmatpush1.xpose.msra.mxu0 0.0
          %2287 = vmatprep.subr.mxu0 0.0
          %2288 = vmatpush1.xpose.msra.mxu0 0.0
          %2289 = vmatprep.subr.mxu0 0.0
          %2290 = vmatpush1.xpose.msra.mxu0 0.0
          %2291 = vmatprep.subr.mxu0 0.0
          %2292 = vmatpush1.xpose.msra.mxu0 0.0
          %2293 = vmatprep.subr.mxu0 0.0
          %2294 = vmatpush1.xpose.msra.mxu0 0.0
          %2295 = vmatprep.subr.mxu0 0.0
          %2296 = vmatpush1.xpose.msra.mxu0 0.0
          %2297 = vmatprep.subr.mxu0 0.0
          %2298 = vmatpush1.xpose.msra.mxu0 0.0
          %2299 = vmatprep.subr.mxu0 0.0
          %2300 = vmatpush1.xpose.msra.mxu0 0.0
          %2301 = vmatprep.subr.mxu0 0.0
          %2302 = vmatpush1.xpose.msra.mxu0 0.0
          %2303 = vmatprep.subr.mxu0 0.0
          %2304 = vmatpush1.xpose.msra.mxu0 0.0
          %2305 = vmatprep.subr.mxu0 0.0
          %2306 = vmatpush1.xpose.msra.mxu0 0.0
          %2307 = vmatprep.subr.mxu0 0.0
          %2308 = vmatpush1.xpose.msra.mxu0 0.0
          %2309 = vmatprep.mubr.f32.mxu0 %v2238
          %2310 = vmatmul.mubr.f32.gmra.mrb[0].mxu0 %v2237
          %v2311 = vpop.f32.mrb[0].mxu0
          %v2312 = vadd.f32 0.0, %v2311
          %v2313 = vpop.f32.mrb[0].mxu0
          %2314 = vmatprep.mubr.f32.mxu0 %v2240
          %2315 = vmatmul.mubr.f32.gmra.mrb[0].mxu0 %v2239
          %v2316 = vpop.f32.mrb[0].mxu0
          %v2317 = vadd.f32 0.0, %v2316
          %v2318 = vpop.f32.mrb[0].mxu0
          %2319 = vmatprep.mubr.f32.mxu0 %v2242
          %2320 = vmatmul.mubr.f32.gmra.mrb[0].mxu0 %v2241
          %v2321 = vpop.f32.mrb[0].mxu0
          %v2322 = vadd.f32 0.0, %v2321
          %v2323 = vpop.f32.mrb[0].mxu0
          %2324 = vmatprep.mubr.f32.mxu0 %v2244
          %2325 = vmatmul.mubr.f32.gmra.mrb[0].mxu0 %v2243
          %v2326 = vpop.f32.mrb[0].mxu0
          %v2327 = vadd.f32 0.0, %v2326
          %v2328 = vpop.f32.mrb[0].mxu0
          %2329 = vdwg.mxu0
          %v2330 = vadd.f32 %v287, %v2312
          %v2331 = vadd.f32 %v288, %v2317
          %v2332 = vadd.f32 %v289, %v2322
          %v2333 = vadd.f32 %v290, %v2327
          %v2334 = vmul.f32 %v310, %v1887
          %v2335 = vmul.f32 %v310, %v1891
          %v2336 = vmul.f32 %v315, %v1887
          %v2337 = vmul.f32 %v315, %v1891
          %v2338 = vmul.f32 %v320, %v1887
          %v2339 = vmul.f32 %v320, %v1891
          %v2340 = vmul.f32 %v325, %v1887
          %v2341 = vmul.f32 %v325, %v1891
          %v2342 = vadd.f32 %v2334, %v349
          %v2343 = vadd.f32 %v2335, %v349
          %v2344 = vadd.f32 %v2336, %v354
          %v2345 = vadd.f32 %v2337, %v354
          %v2346 = vadd.f32 %v2338, %v359
          %v2347 = vadd.f32 %v2339, %v359
          %v2348 = vadd.f32 %v2340, %v364
          %v2349 = vadd.f32 %v2341, %v364
          %v2350 = vmul.f32 %v376, %v1887
          %v2351 = vmul.f32 %v376, %v1891
          %v2352 = vmul.f32 %v376, %v1913
          %v2353 = vmul.f32 %v380, %v1887
          %v2354 = vmul.f32 %v380, %v1891
          %v2355 = vmul.f32 %v380, %v1913
          %v2356 = vmul.f32 %v384, %v1887
          %v2357 = vmul.f32 %v384, %v1891
          %v2358 = vmul.f32 %v384, %v1913
          %v2359 = vmul.f32 %v388, %v1887
          %v2360 = vmul.f32 %v388, %v1891
          %v2361 = vmul.f32 %v388, %v1913
          %2374 = vrot.lane.b32.xlu0 %v2350, 127
          %v2375 = vpop.permute.xlu0 %2374
          %2376 = vrot.lane.b32.xlu0 %v2351, 127
          %v2377 = vpop.permute.xlu0 %2376
          %2378 = vrot.lane.b32.xlu0 %v2352, 127
          %v2379 = vpop.permute.xlu0 %2378
          %2380 = vrot.lane.b32.xlu0 %v2353, 127
          %v2381 = vpop.permute.xlu0 %2380
          %2382 = vrot.lane.b32.xlu0 %v2354, 127
          %v2383 = vpop.permute.xlu0 %2382
          %2384 = vrot.lane.b32.xlu0 %v2355, 127
          %v2385 = vpop.permute.xlu0 %2384
          %2386 = vrot.lane.b32.xlu0 %v2356, 127
          %v2387 = vpop.permute.xlu0 %2386
          %2388 = vrot.lane.b32.xlu0 %v2357, 127
          %v2389 = vpop.permute.xlu0 %2388
          %2390 = vrot.lane.b32.xlu0 %v2358, 127
          %v2391 = vpop.permute.xlu0 %2390
          %2392 = vrot.lane.b32.xlu0 %v2359, 127
          %v2393 = vpop.permute.xlu0 %2392
          %2394 = vrot.lane.b32.xlu0 %v2360, 127
          %v2395 = vpop.permute.xlu0 %2394
          %2396 = vrot.lane.b32.xlu0 %v2361, 127
          %v2397 = vpop.permute.xlu0 %2396
          %v2398 = vsel %vm443, %v2375, %v2377
          %v2399 = vsel %vm443, %v2377, %v2379
          %v2400 = vsel %vm443, %v2381, %v2383
          %v2401 = vsel %vm443, %v2383, %v2385
          %v2402 = vsel %vm443, %v2387, %v2389
          %v2403 = vsel %vm443, %v2389, %v2391
          %v2404 = vsel %vm443, %v2393, %v2395
          %v2405 = vsel %vm443, %v2395, %v2397
          %v2414 = vadd.f32 %v2342, %v2398
          %v2415 = vadd.f32 %v2343, %v2399
          %v2416 = vadd.f32 %v2344, %v2400
          %v2417 = vadd.f32 %v2345, %v2401
          %v2418 = vadd.f32 %v2346, %v2402
          %v2419 = vadd.f32 %v2347, %v2403
          %v2420 = vadd.f32 %v2348, %v2404
          %v2421 = vadd.f32 %v2349, %v2405
          %v2422 = vmul.f32 %v470, %v1887
          %v2423 = vmul.f32 %v470, %v1891
          %v2424 = vmul.f32 %v470, %v1913
          %v2425 = vmul.f32 %v474, %v1887
          %v2426 = vmul.f32 %v474, %v1891
          %v2427 = vmul.f32 %v474, %v1913
          %v2428 = vmul.f32 %v478, %v1887
          %v2429 = vmul.f32 %v478, %v1891
          %v2430 = vmul.f32 %v478, %v1913
          %v2431 = vmul.f32 %v482, %v1887
          %v2432 = vmul.f32 %v482, %v1891
          %v2433 = vmul.f32 %v482, %v1913
          %2446 = vrot.lane.b32.xlu0 %v2422, 126
          %v2447 = vpop.permute.xlu0 %2446
          %2448 = vrot.lane.b32.xlu0 %v2423, 126
          %v2449 = vpop.permute.xlu0 %2448
          %2450 = vrot.lane.b32.xlu0 %v2424, 126
          %v2451 = vpop.permute.xlu0 %2450
          %2452 = vrot.lane.b32.xlu0 %v2425, 126
          %v2453 = vpop.permute.xlu0 %2452
          %2454 = vrot.lane.b32.xlu0 %v2426, 126
          %v2455 = vpop.permute.xlu0 %2454
          %2456 = vrot.lane.b32.xlu0 %v2427, 126
          %v2457 = vpop.permute.xlu0 %2456
          %2458 = vrot.lane.b32.xlu0 %v2428, 126
          %v2459 = vpop.permute.xlu0 %2458
          %2460 = vrot.lane.b32.xlu0 %v2429, 126
          %v2461 = vpop.permute.xlu0 %2460
          %2462 = vrot.lane.b32.xlu0 %v2430, 126
          %v2463 = vpop.permute.xlu0 %2462
          %2464 = vrot.lane.b32.xlu0 %v2431, 126
          %v2465 = vpop.permute.xlu0 %2464
          %2466 = vrot.lane.b32.xlu0 %v2432, 126
          %v2467 = vpop.permute.xlu0 %2466
          %2468 = vrot.lane.b32.xlu0 %v2433, 126
          %v2469 = vpop.permute.xlu0 %2468
          %v2470 = vsel %vm532, %v2447, %v2449
          %v2471 = vsel %vm532, %v2449, %v2451
          %v2472 = vsel %vm532, %v2453, %v2455
          %v2473 = vsel %vm532, %v2455, %v2457
          %v2474 = vsel %vm532, %v2459, %v2461
          %v2475 = vsel %vm532, %v2461, %v2463
          %v2476 = vsel %vm532, %v2465, %v2467
          %v2477 = vsel %vm532, %v2467, %v2469
          %v2486 = vadd.f32 %v2414, %v2470
          %v2487 = vadd.f32 %v2415, %v2471
          %v2488 = vadd.f32 %v2416, %v2472
          %v2489 = vadd.f32 %v2417, %v2473
          %v2490 = vadd.f32 %v2418, %v2474
          %v2491 = vadd.f32 %v2419, %v2475
          %v2492 = vadd.f32 %v2420, %v2476
          %v2493 = vadd.f32 %v2421, %v2477
          %v2494 = vmul.f32 %v561, %v2065
          %v2495 = vmul.f32 %v561, %v2069
          %v2496 = vmul.f32 %v565, %v2065
          %v2497 = vmul.f32 %v565, %v2069
          %v2498 = vmul.f32 %v569, %v2065
          %v2499 = vmul.f32 %v569, %v2069
          %v2500 = vmul.f32 %v573, %v2065
          %v2501 = vmul.f32 %v573, %v2069
          %v2502 = vadd.f32 %v2486, %v2494
          %v2503 = vadd.f32 %v2487, %v2495
          %v2504 = vadd.f32 %v2488, %v2496
          %v2505 = vadd.f32 %v2489, %v2497
          %v2506 = vadd.f32 %v2490, %v2498
          %v2507 = vadd.f32 %v2491, %v2499
          %v2508 = vadd.f32 %v2492, %v2500
          %v2509 = vadd.f32 %v2493, %v2501
          %v2510 = vmul.f32 %v604, %v2065
          %v2511 = vmul.f32 %v604, %v2069
          %v2512 = vmul.f32 %v604, %v2091
          %v2513 = vmul.f32 %v608, %v2065
          %v2514 = vmul.f32 %v608, %v2069
          %v2515 = vmul.f32 %v608, %v2091
          %v2516 = vmul.f32 %v612, %v2065
          %v2517 = vmul.f32 %v612, %v2069
          %v2518 = vmul.f32 %v612, %v2091
          %v2519 = vmul.f32 %v616, %v2065
          %v2520 = vmul.f32 %v616, %v2069
          %v2521 = vmul.f32 %v616, %v2091
          %2534 = vrot.lane.b32.xlu0 %v2510, 127
          %v2535 = vpop.permute.xlu0 %2534
          %2536 = vrot.lane.b32.xlu0 %v2511, 127
          %v2537 = vpop.permute.xlu0 %2536
          %2538 = vrot.lane.b32.xlu0 %v2512, 127
          %v2539 = vpop.permute.xlu0 %2538
          %2540 = vrot.lane.b32.xlu0 %v2513, 127
          %v2541 = vpop.permute.xlu0 %2540
          %2542 = vrot.lane.b32.xlu0 %v2514, 127
          %v2543 = vpop.permute.xlu0 %2542
          %2544 = vrot.lane.b32.xlu0 %v2515, 127
          %v2545 = vpop.permute.xlu0 %2544
          %2546 = vrot.lane.b32.xlu0 %v2516, 127
          %v2547 = vpop.permute.xlu0 %2546
          %2548 = vrot.lane.b32.xlu0 %v2517, 127
          %v2549 = vpop.permute.xlu0 %2548
          %2550 = vrot.lane.b32.xlu0 %v2518, 127
          %v2551 = vpop.permute.xlu0 %2550
          %2552 = vrot.lane.b32.xlu0 %v2519, 127
          %v2553 = vpop.permute.xlu0 %2552
          %2554 = vrot.lane.b32.xlu0 %v2520, 127
          %v2555 = vpop.permute.xlu0 %2554
          %2556 = vrot.lane.b32.xlu0 %v2521, 127
          %v2557 = vpop.permute.xlu0 %2556
          %v2558 = vsel %vm443, %v2535, %v2537
          %v2559 = vsel %vm443, %v2537, %v2539
          %v2560 = vsel %vm443, %v2541, %v2543
          %v2561 = vsel %vm443, %v2543, %v2545
          %v2562 = vsel %vm443, %v2547, %v2549
          %v2563 = vsel %vm443, %v2549, %v2551
          %v2564 = vsel %vm443, %v2553, %v2555
          %v2565 = vsel %vm443, %v2555, %v2557
          %v2574 = vadd.f32 %v2502, %v2558
          %v2575 = vadd.f32 %v2503, %v2559
          %v2576 = vadd.f32 %v2504, %v2560
          %v2577 = vadd.f32 %v2505, %v2561
          %v2578 = vadd.f32 %v2506, %v2562
          %v2579 = vadd.f32 %v2507, %v2563
          %v2580 = vadd.f32 %v2508, %v2564
          %v2581 = vadd.f32 %v2509, %v2565
          %v2582 = vmul.f32 %v697, %v2065
          %v2583 = vmul.f32 %v697, %v2069
          %v2584 = vmul.f32 %v697, %v2091
          %v2585 = vmul.f32 %v701, %v2065
          %v2586 = vmul.f32 %v701, %v2069
          %v2587 = vmul.f32 %v701, %v2091
          %v2588 = vmul.f32 %v705, %v2065
          %v2589 = vmul.f32 %v705, %v2069
          %v2590 = vmul.f32 %v705, %v2091
          %v2591 = vmul.f32 %v709, %v2065
          %v2592 = vmul.f32 %v709, %v2069
          %v2593 = vmul.f32 %v709, %v2091
          %2606 = vrot.lane.b32.xlu0 %v2582, 126
          %v2607 = vpop.permute.xlu0 %2606
          %2608 = vrot.lane.b32.xlu0 %v2583, 126
          %v2609 = vpop.permute.xlu0 %2608
          %2610 = vrot.lane.b32.xlu0 %v2584, 126
          %v2611 = vpop.permute.xlu0 %2610
          %2612 = vrot.lane.b32.xlu0 %v2585, 126
          %v2613 = vpop.permute.xlu0 %2612
          %2614 = vrot.lane.b32.xlu0 %v2586, 126
          %v2615 = vpop.permute.xlu0 %2614
          %2616 = vrot.lane.b32.xlu0 %v2587, 126
          %v2617 = vpop.permute.xlu0 %2616
          %2618 = vrot.lane.b32.xlu0 %v2588, 126
          %v2619 = vpop.permute.xlu0 %2618
          %2620 = vrot.lane.b32.xlu0 %v2589, 126
          %v2621 = vpop.permute.xlu0 %2620
          %2622 = vrot.lane.b32.xlu0 %v2590, 126
          %v2623 = vpop.permute.xlu0 %2622
          %2624 = vrot.lane.b32.xlu0 %v2591, 126
          %v2625 = vpop.permute.xlu0 %2624
          %2626 = vrot.lane.b32.xlu0 %v2592, 126
          %v2627 = vpop.permute.xlu0 %2626
          %2628 = vrot.lane.b32.xlu0 %v2593, 126
          %v2629 = vpop.permute.xlu0 %2628
          %v2630 = vsel %vm532, %v2607, %v2609
          %v2631 = vsel %vm532, %v2609, %v2611
          %v2632 = vsel %vm532, %v2613, %v2615
          %v2633 = vsel %vm532, %v2615, %v2617
          %v2634 = vsel %vm532, %v2619, %v2621
          %v2635 = vsel %vm532, %v2621, %v2623
          %v2636 = vsel %vm532, %v2625, %v2627
          %v2637 = vsel %vm532, %v2627, %v2629
          %v2646 = vadd.f32 %v2574, %v2630
          %v2647 = vadd.f32 %v2575, %v2631
          %v2648 = vadd.f32 %v2576, %v2632
          %v2649 = vadd.f32 %v2577, %v2633
          %v2650 = vadd.f32 %v2578, %v2634
          %v2651 = vadd.f32 %v2579, %v2635
          %v2652 = vadd.f32 %v2580, %v2636
          %v2653 = vadd.f32 %v2581, %v2637
          %s2654 = scalar_lea.vmem %s1703, 3 [#allocation2]
          %v2655 = vld [vmem:[%s2654] ss:$4 sm:$0x7]
          %v2657 = vlaneseq
          %v2658 = vshrl.u32 %v2657, 7
          %v2659 = vsub.s32 0, %v2658
          %v2660 = vrot.slane %v2655, %v2659
          %v2661 = vlaneseq
          %v2662 = vshrl.u32 %v2661, 7
          %v2663 = vsub.s32 1, %v2662
          %v2664 = vrot.slane %v2655, %v2663
          %v2667 = vmul.f32 %v787, %v2660
          %v2668 = vmul.f32 %v787, %v2664
          %v2669 = vmul.f32 %v791, %v2660
          %v2670 = vmul.f32 %v791, %v2664
          %v2671 = vmul.f32 %v795, %v2660
          %v2672 = vmul.f32 %v795, %v2664
          %v2673 = vmul.f32 %v799, %v2660
          %v2674 = vmul.f32 %v799, %v2664
          %v2675 = vadd.f32 %v2646, %v2667
          %v2676 = vadd.f32 %v2647, %v2668
          %v2677 = vadd.f32 %v2648, %v2669
          %v2678 = vadd.f32 %v2649, %v2670
          %v2679 = vadd.f32 %v2650, %v2671
          %v2680 = vadd.f32 %v2651, %v2672
          %v2681 = vadd.f32 %v2652, %v2673
          %v2682 = vadd.f32 %v2653, %v2674
          %v2683 = vlaneseq
          %v2684 = vshrl.u32 %v2683, 7
          %v2685 = vsub.s32 2, %v2684
          %v2686 = vrot.slane %v2655, %v2685
          %v2688 = vmul.f32 %v830, %v2660
          %v2689 = vmul.f32 %v830, %v2664
          %v2690 = vmul.f32 %v830, %v2686
          %v2691 = vmul.f32 %v834, %v2660
          %v2692 = vmul.f32 %v834, %v2664
          %v2693 = vmul.f32 %v834, %v2686
          %v2694 = vmul.f32 %v838, %v2660
          %v2695 = vmul.f32 %v838, %v2664
          %v2696 = vmul.f32 %v838, %v2686
          %v2697 = vmul.f32 %v842, %v2660
          %v2698 = vmul.f32 %v842, %v2664
          %v2699 = vmul.f32 %v842, %v2686
          %2712 = vrot.lane.b32.xlu0 %v2688, 127
          %v2713 = vpop.permute.xlu0 %2712
          %2714 = vrot.lane.b32.xlu0 %v2689, 127
          %v2715 = vpop.permute.xlu0 %2714
          %2716 = vrot.lane.b32.xlu0 %v2690, 127
          %v2717 = vpop.permute.xlu0 %2716
          %2718 = vrot.lane.b32.xlu0 %v2691, 127
          %v2719 = vpop.permute.xlu0 %2718
          %2720 = vrot.lane.b32.xlu0 %v2692, 127
          %v2721 = vpop.permute.xlu0 %2720
          %2722 = vrot.lane.b32.xlu0 %v2693, 127
          %v2723 = vpop.permute.xlu0 %2722
          %2724 = vrot.lane.b32.xlu0 %v2694, 127
          %v2725 = vpop.permute.xlu0 %2724
          %2726 = vrot.lane.b32.xlu0 %v2695, 127
          %v2727 = vpop.permute.xlu0 %2726
          %2728 = vrot.lane.b32.xlu0 %v2696, 127
          %v2729 = vpop.permute.xlu0 %2728
          %2730 = vrot.lane.b32.xlu0 %v2697, 127
          %v2731 = vpop.permute.xlu0 %2730
          %2732 = vrot.lane.b32.xlu0 %v2698, 127
          %v2733 = vpop.permute.xlu0 %2732
          %2734 = vrot.lane.b32.xlu0 %v2699, 127
          %v2735 = vpop.permute.xlu0 %2734
          %v2736 = vsel %vm443, %v2713, %v2715
          %v2737 = vsel %vm443, %v2715, %v2717
          %v2738 = vsel %vm443, %v2719, %v2721
          %v2739 = vsel %vm443, %v2721, %v2723
          %v2740 = vsel %vm443, %v2725, %v2727
          %v2741 = vsel %vm443, %v2727, %v2729
          %v2742 = vsel %vm443, %v2731, %v2733
          %v2743 = vsel %vm443, %v2733, %v2735
          %v2752 = vadd.f32 %v2675, %v2736
          %v2753 = vadd.f32 %v2676, %v2737
          %v2754 = vadd.f32 %v2677, %v2738
          %v2755 = vadd.f32 %v2678, %v2739
          %v2756 = vadd.f32 %v2679, %v2740
          %v2757 = vadd.f32 %v2680, %v2741
          %v2758 = vadd.f32 %v2681, %v2742
          %v2759 = vadd.f32 %v2682, %v2743
          %v2760 = vmul.f32 %v923, %v2660
          %v2761 = vmul.f32 %v923, %v2664
          %v2762 = vmul.f32 %v923, %v2686
          %v2763 = vmul.f32 %v927, %v2660
          %v2764 = vmul.f32 %v927, %v2664
          %v2765 = vmul.f32 %v927, %v2686
          %v2766 = vmul.f32 %v931, %v2660
          %v2767 = vmul.f32 %v931, %v2664
          %v2768 = vmul.f32 %v931, %v2686
          %v2769 = vmul.f32 %v935, %v2660
          %v2770 = vmul.f32 %v935, %v2664
          %v2771 = vmul.f32 %v935, %v2686
          %2784 = vrot.lane.b32.xlu0 %v2760, 126
          %v2785 = vpop.permute.xlu0 %2784
          %2786 = vrot.lane.b32.xlu0 %v2761, 126
          %v2787 = vpop.permute.xlu0 %2786
          %2788 = vrot.lane.b32.xlu0 %v2762, 126
          %v2789 = vpop.permute.xlu0 %2788
          %2790 = vrot.lane.b32.xlu0 %v2763, 126
          %v2791 = vpop.permute.xlu0 %2790
          %2792 = vrot.lane.b32.xlu0 %v2764, 126
          %v2793 = vpop.permute.xlu0 %2792
          %2794 = vrot.lane.b32.xlu0 %v2765, 126
          %v2795 = vpop.permute.xlu0 %2794
          %2796 = vrot.lane.b32.xlu0 %v2766, 126
          %v2797 = vpop.permute.xlu0 %2796
          %2798 = vrot.lane.b32.xlu0 %v2767, 126
          %v2799 = vpop.permute.xlu0 %2798
          %2800 = vrot.lane.b32.xlu0 %v2768, 126
          %v2801 = vpop.permute.xlu0 %2800
          %2802 = vrot.lane.b32.xlu0 %v2769, 126
          %v2803 = vpop.permute.xlu0 %2802
          %2804 = vrot.lane.b32.xlu0 %v2770, 126
          %v2805 = vpop.permute.xlu0 %2804
          %2806 = vrot.lane.b32.xlu0 %v2771, 126
          %v2807 = vpop.permute.xlu0 %2806
          %v2808 = vsel %vm532, %v2785, %v2787
          %v2809 = vsel %vm532, %v2787, %v2789
          %v2810 = vsel %vm532, %v2791, %v2793
          %v2811 = vsel %vm532, %v2793, %v2795
          %v2812 = vsel %vm532, %v2797, %v2799
          %v2813 = vsel %vm532, %v2799, %v2801
          %v2814 = vsel %vm532, %v2803, %v2805
          %v2815 = vsel %vm532, %v2805, %v2807
          %v2824 = vadd.f32 %v2752, %v2808
          %v2825 = vadd.f32 %v2753, %v2809
          %v2826 = vadd.f32 %v2754, %v2810
          %v2827 = vadd.f32 %v2755, %v2811
          %v2828 = vadd.f32 %v2756, %v2812
          %v2829 = vadd.f32 %v2757, %v2813
          %v2830 = vadd.f32 %v2758, %v2814
          %v2831 = vadd.f32 %v2759, %v2815
          %v2832 = vmax.f32 %v2824, 0.0
          %v2833 = vmax.f32 %v2825, 0.0
          %v2834 = vmax.f32 %v2826, 0.0
          %v2835 = vmax.f32 %v2827, 0.0
          %v2836 = vmax.f32 %v2828, 0.0
          %v2837 = vmax.f32 %v2829, 0.0
          %v2838 = vmax.f32 %v2830, 0.0
          %v2839 = vmax.f32 %v2831, 0.0
          %2840 = vmatprep.subr.mxu0 %v301
          %2841 = vmatpush1.xpose.msra.mxu0 %v300
          %2842 = vmatprep.subr.mxu0 %v303
          %2843 = vmatpush1.xpose.msra.mxu0 %v302
          %2844 = vmatprep.subr.mxu0 0.0
          %2845 = vmatpush1.xpose.msra.mxu0 0.0
          %2846 = vmatprep.subr.mxu0 0.0
          %2847 = vmatpush1.xpose.msra.mxu0 0.0
          %2848 = vmatprep.subr.mxu0 0.0
          %2849 = vmatpush1.xpose.msra.mxu0 0.0
          %2850 = vmatprep.subr.mxu0 0.0
          %2851 = vmatpush1.xpose.msra.mxu0 0.0
          %2852 = vmatprep.subr.mxu0 0.0
          %2853 = vmatpush1.xpose.msra.mxu0 0.0
          %2854 = vmatprep.subr.mxu0 0.0
          %2855 = vmatpush1.xpose.msra.mxu0 0.0
          %2856 = vmatprep.subr.mxu0 0.0
          %2857 = vmatpush1.xpose.msra.mxu0 0.0
          %2858 = vmatprep.subr.mxu0 0.0
          %2859 = vmatpush1.xpose.msra.mxu0 0.0
          %2860 = vmatprep.subr.mxu0 0.0
          %2861 = vmatpush1.xpose.msra.mxu0 0.0
          %2862 = vmatprep.subr.mxu0 0.0
          %2863 = vmatpush1.xpose.msra.mxu0 0.0
          %2864 = vmatprep.subr.mxu0 0.0
          %2865 = vmatpush1.xpose.msra.mxu0 0.0
          %2866 = vmatprep.subr.mxu0 0.0
          %2867 = vmatpush1.xpose.msra.mxu0 0.0
          %2868 = vmatprep.subr.mxu0 0.0
          %2869 = vmatpush1.xpose.msra.mxu0 0.0
          %2870 = vmatprep.subr.mxu0 0.0
          %2871 = vmatpush1.xpose.msra.mxu0 0.0
          %2872 = vmatprep.subr.mxu0 0.0
          %2873 = vmatpush1.xpose.msra.mxu0 0.0
          %2874 = vmatprep.subr.mxu0 0.0
          %2875 = vmatpush1.xpose.msra.mxu0 0.0
          %2876 = vmatprep.subr.mxu0 0.0
          %2877 = vmatpush1.xpose.msra.mxu0 0.0
          %2878 = vmatprep.subr.mxu0 0.0
          %2879 = vmatpush1.xpose.msra.mxu0 0.0
          %2880 = vmatprep.subr.mxu0 0.0
          %2881 = vmatpush1.xpose.msra.mxu0 0.0
          %2882 = vmatprep.subr.mxu0 0.0
          %2883 = vmatpush1.xpose.msra.mxu0 0.0
          %2884 = vmatprep.subr.mxu0 0.0
          %2885 = vmatpush1.xpose.msra.mxu0 0.0
          %2886 = vmatprep.subr.mxu0 0.0
          %2887 = vmatpush1.xpose.msra.mxu0 0.0
          %2888 = vmatprep.subr.mxu0 0.0
          %2889 = vmatpush1.xpose.msra.mxu0 0.0
          %2890 = vmatprep.subr.mxu0 0.0
          %2891 = vmatpush1.xpose.msra.mxu0 0.0
          %2892 = vmatprep.subr.mxu0 0.0
          %2893 = vmatpush1.xpose.msra.mxu0 0.0
          %2894 = vmatprep.subr.mxu0 0.0
          %2895 = vmatpush1.xpose.msra.mxu0 0.0
          %2896 = vmatprep.subr.mxu0 0.0
          %2897 = vmatpush1.xpose.msra.mxu0 0.0
          %2898 = vmatprep.subr.mxu0 0.0
          %2899 = vmatpush1.xpose.msra.mxu0 0.0
          %2900 = vmatprep.subr.mxu0 0.0
          %2901 = vmatpush1.xpose.msra.mxu0 0.0
          %2902 = vmatprep.subr.mxu0 0.0
          %2903 = vmatpush1.xpose.msra.mxu0 0.0
          %2904 = vmatprep.mubr.f32.mxu0 %v2833
          %2905 = vmatmul.mubr.f32.gmra.mrb[0].mxu0 %v2832
          %v2906 = vpop.f32.mrb[0].mxu0
          %v2907 = vadd.f32 0.0, %v2906
          %v2908 = vpop.f32.mrb[0].mxu0
          %2909 = vmatprep.mubr.f32.mxu0 %v2835
          %2910 = vmatmul.mubr.f32.gmra.mrb[0].mxu0 %v2834
          %v2911 = vpop.f32.mrb[0].mxu0
          %v2912 = vadd.f32 0.0, %v2911
          %v2913 = vpop.f32.mrb[0].mxu0
          %2914 = vmatprep.mubr.f32.mxu0 %v2837
          %2915 = vmatmul.mubr.f32.gmra.mrb[0].mxu0 %v2836
          %v2916 = vpop.f32.mrb[0].mxu0
          %v2917 = vadd.f32 0.0, %v2916
          %v2918 = vpop.f32.mrb[0].mxu0
          %2919 = vmatprep.mubr.f32.mxu0 %v2839
          %2920 = vmatmul.mubr.f32.gmra.mrb[0].mxu0 %v2838
          %v2921 = vpop.f32.mrb[0].mxu0
          %v2922 = vadd.f32 0.0, %v2921
          %v2923 = vpop.f32.mrb[0].mxu0
          %2924 = vdwg.mxu0
          %v2925 = vadd.f32 %v291, %v2907
          %v2926 = vadd.f32 %v292, %v2912
          %v2927 = vadd.f32 %v293, %v2917
          %v2928 = vadd.f32 %v294, %v2922
        $region53: #{tpu_custom_call.1} parent=39 // loop_footer
          %s278 = sadd.s32 1, %s274
        $region54: #{tpu_custom_call.1} parent=39 // loop_footer_branch
          %273 = sbr.rel target = $region50
        $region55: #{tpu_custom_call.1} parent=39 // loop_exit
          _
        %v2929 = vld [vmem:[%s4] sm:$0x1]
        %v2931 = vlaneseq
        %v2932 = vshrl.u32 %v2931, 7
        %v2933 = vsub.s32 0, %v2932
        %v2934 = vrot.slane %v2929, %v2933
        %v2936 = vadd.f32 %v279, %v2934
        %v2937 = vadd.f32 %v280, %v2934
        %v2938 = vadd.f32 %v281, %v2934
        %v2939 = vadd.f32 %v282, %v2934
        %vm2940 = vcmask 80896
        %v2941 = vsel %vm2940, %v2936, -inf
        %v2942 = vsel %vm2940, %v2937, -inf
        %v2943 = vsel %vm2940, %v2938, -inf
        %v2944 = vsel %vm2940, %v2939, -inf
        %v2945 = vmax.f32 %v2941, %v2942
        %v2946 = vmax.f32 %v2943, %v2944
        %v2947 = vmax.f32 %v2945, %v2946
        %v2948 = vrot.slane %v2947, 4
        %v2949 = vmax.f32 %v2947, %v2948
        %v2950 = vrot.slane %v2949, 2
        %v2951 = vmax.f32 %v2949, %v2950
        %v2952 = vrot.slane %v2951, 1
        %v2953 = vmax.f32 %v2951, %v2952
        %v2954 = vsub.f32 %v2936, %v2953
        %v2955 = vsub.f32 %v2937, %v2953
        %v2956 = vsub.f32 %v2938, %v2953
        %v2957 = vsub.f32 %v2939, %v2953
        %v2958 = vmul.f32 %v2954, 1.442695
        %v2959 = vpow.pop %v2958
        %v2960 = vmul.f32 %v2955, 1.442695
        %v2961 = vpow.pop %v2960
        %v2962 = vmul.f32 %v2956, 1.442695
        %v2963 = vpow.pop %v2962
        %v2964 = vmul.f32 %v2957, 1.442695
        %v2965 = vpow.pop %v2964
        %v2966 = vsel %vm2940, %v2959, 0.0
        %v2967 = vsel %vm2940, %v2961, 0.0
        %v2968 = vadd.f32 %v2966, %v2967
        %v2969 = vsel %vm2940, %v2963, 0.0
        %v2970 = vadd.f32 %v2968, %v2969
        %v2971 = vsel %vm2940, %v2965, 0.0
        %v2972 = vadd.f32 %v2970, %v2971
        %v2973 = vrot.slane %v2972, 4
        %v2974 = vadd.f32 %v2972, %v2973
        %v2975 = vrot.slane %v2974, 2
        %v2976 = vadd.f32 %v2974, %v2975
        %v2977 = vrot.slane %v2976, 1
        %v2978 = vadd.f32 %v2976, %v2977
        %v2979 = vlog2.pop %v2978
        %v2980 = vmul.f32 %v2979, 0.6931472
        %v2981 = vsub.f32 %v2954, %v2980
        %v2982 = vsub.f32 %v2955, %v2980
        %v2983 = vsub.f32 %v2956, %v2980
        %v2984 = vsub.f32 %v2957, %v2980
        %2985 = vst.msk [vmem:[%s263] sm:$0xff] %vm2940, %v2981
        %2986 = vst.msk [vmem:[%s263 + $0x8] sm:$0xff] %vm2940, %v2982
        %2987 = vst.msk [vmem:[%s263 + $0x10] sm:$0xff] %vm2940, %v2983
        %2988 = vst.msk [vmem:[%s263 + $0x18] sm:$0xff] %vm2940, %v2984
        %v2989 = vadd.f32 %v283, %v2934
        %v2990 = vadd.f32 %v284, %v2934
        %v2991 = vadd.f32 %v285, %v2934
        %v2992 = vadd.f32 %v286, %v2934
        %v2993 = vsel %vm2940, %v2989, -inf
        %v2994 = vsel %vm2940, %v2990, -inf
        %v2995 = vsel %vm2940, %v2991, -inf
        %v2996 = vsel %vm2940, %v2992, -inf
        %v2997 = vmax.f32 %v2993, %v2994
        %v2998 = vmax.f32 %v2995, %v2996
        %v2999 = vmax.f32 %v2997, %v2998
        %v3000 = vrot.slane %v2999, 4
        %v3001 = vmax.f32 %v2999, %v3000
        %v3002 = vrot.slane %v3001, 2
        %v3003 = vmax.f32 %v3001, %v3002
        %v3004 = vrot.slane %v3003, 1
        %v3005 = vmax.f32 %v3003, %v3004
        %v3006 = vsub.f32 %v2989, %v3005
        %v3007 = vsub.f32 %v2990, %v3005
        %v3008 = vsub.f32 %v2991, %v3005
        %v3009 = vsub.f32 %v2992, %v3005
        %v3010 = vmul.f32 %v3006, 1.442695
        %v3011 = vpow.pop %v3010
        %v3012 = vmul.f32 %v3007, 1.442695
        %v3013 = vpow.pop %v3012
        %v3014 = vmul.f32 %v3008, 1.442695
        %v3015 = vpow.pop %v3014
        %v3016 = vmul.f32 %v3009, 1.442695
        %v3017 = vpow.pop %v3016
        %v3018 = vsel %vm2940, %v3011, 0.0
        %v3019 = vsel %vm2940, %v3013, 0.0
        %v3020 = vadd.f32 %v3018, %v3019
        %v3021 = vsel %vm2940, %v3015, 0.0
        %v3022 = vadd.f32 %v3020, %v3021
        %v3023 = vsel %vm2940, %v3017, 0.0
        %v3024 = vadd.f32 %v3022, %v3023
        %v3025 = vrot.slane %v3024, 4
        %v3026 = vadd.f32 %v3024, %v3025
        %v3027 = vrot.slane %v3026, 2
        %v3028 = vadd.f32 %v3026, %v3027
        %v3029 = vrot.slane %v3028, 1
        %v3030 = vadd.f32 %v3028, %v3029
        %v3031 = vlog2.pop %v3030
        %v3032 = vmul.f32 %v3031, 0.6931472
        %v3033 = vsub.f32 %v3006, %v3032
        %v3034 = vsub.f32 %v3007, %v3032
        %v3035 = vsub.f32 %v3008, %v3032
        %v3036 = vsub.f32 %v3009, %v3032
        %3037 = vst.msk [vmem:[%s263 + $0x20] sm:$0xff] %vm2940, %v3033
        %3038 = vst.msk [vmem:[%s263 + $0x28] sm:$0xff] %vm2940, %v3034
        %3039 = vst.msk [vmem:[%s263 + $0x30] sm:$0xff] %vm2940, %v3035
        %3040 = vst.msk [vmem:[%s263 + $0x38] sm:$0xff] %vm2940, %v3036
        %v3041 = vadd.f32 %v287, %v2934
        %v3042 = vadd.f32 %v288, %v2934
        %v3043 = vadd.f32 %v289, %v2934
        %v3044 = vadd.f32 %v290, %v2934
        %v3045 = vsel %vm2940, %v3041, -inf
        %v3046 = vsel %vm2940, %v3042, -inf
        %v3047 = vsel %vm2940, %v3043, -inf
        %v3048 = vsel %vm2940, %v3044, -inf
        %v3049 = vmax.f32 %v3045, %v3046
        %v3050 = vmax.f32 %v3047, %v3048
        %v3051 = vmax.f32 %v3049, %v3050
        %v3052 = vrot.slane %v3051, 4
        %v3053 = vmax.f32 %v3051, %v3052
        %v3054 = vrot.slane %v3053, 2
        %v3055 = vmax.f32 %v3053, %v3054
        %v3056 = vrot.slane %v3055, 1
        %v3057 = vmax.f32 %v3055, %v3056
        %v3058 = vsub.f32 %v3041, %v3057
        %v3059 = vsub.f32 %v3042, %v3057
        %v3060 = vsub.f32 %v3043, %v3057
        %v3061 = vsub.f32 %v3044, %v3057
        %v3062 = vmul.f32 %v3058, 1.442695
        %v3063 = vpow.pop %v3062
        %v3064 = vmul.f32 %v3059, 1.442695
        %v3065 = vpow.pop %v3064
        %v3066 = vmul.f32 %v3060, 1.442695
        %v3067 = vpow.pop %v3066
        %v3068 = vmul.f32 %v3061, 1.442695
        %v3069 = vpow.pop %v3068
        %v3070 = vsel %vm2940, %v3063, 0.0
        %v3071 = vsel %vm2940, %v3065, 0.0
        %v3072 = vadd.f32 %v3070, %v3071
        %v3073 = vsel %vm2940, %v3067, 0.0
        %v3074 = vadd.f32 %v3072, %v3073
        %v3075 = vsel %vm2940, %v3069, 0.0
        %v3076 = vadd.f32 %v3074, %v3075
        %v3077 = vrot.slane %v3076, 4
        %v3078 = vadd.f32 %v3076, %v3077
        %v3079 = vrot.slane %v3078, 2
        %v3080 = vadd.f32 %v3078, %v3079
        %v3081 = vrot.slane %v3080, 1
        %v3082 = vadd.f32 %v3080, %v3081
        %v3083 = vlog2.pop %v3082
        %v3084 = vmul.f32 %v3083, 0.6931472
        %v3085 = vsub.f32 %v3058, %v3084
        %v3086 = vsub.f32 %v3059, %v3084
        %v3087 = vsub.f32 %v3060, %v3084
        %v3088 = vsub.f32 %v3061, %v3084
        %s3089 = scalar_lea.vmem %s263, 64
        %3090 = vst.msk [vmem:[%s3089] sm:$0xff] %vm2940, %v3085
        %3091 = vst.msk [vmem:[%s3089 + $0x8] sm:$0xff] %vm2940, %v3086
        %3092 = vst.msk [vmem:[%s3089 + $0x10] sm:$0xff] %vm2940, %v3087
        %3093 = vst.msk [vmem:[%s3089 + $0x18] sm:$0xff] %vm2940, %v3088
        %v3094 = vadd.f32 %v291, %v2934
        %v3095 = vadd.f32 %v292, %v2934
        %v3096 = vadd.f32 %v293, %v2934
        %v3097 = vadd.f32 %v294, %v2934
        %v3098 = vsel %vm2940, %v3094, -inf
        %v3099 = vsel %vm2940, %v3095, -inf
        %v3100 = vsel %vm2940, %v3096, -inf
        %v3101 = vsel %vm2940, %v3097, -inf
        %v3102 = vmax.f32 %v3098, %v3099
        %v3103 = vmax.f32 %v3100, %v3101
        %v3104 = vmax.f32 %v3102, %v3103
        %v3105 = vrot.slane %v3104, 4
        %v3106 = vmax.f32 %v3104, %v3105
        %v3107 = vrot.slane %v3106, 2
        %v3108 = vmax.f32 %v3106, %v3107
        %v3109 = vrot.slane %v3108, 1
        %v3110 = vmax.f32 %v3108, %v3109
        %v3111 = vsub.f32 %v3094, %v3110
        %v3112 = vsub.f32 %v3095, %v3110
        %v3113 = vsub.f32 %v3096, %v3110
        %v3114 = vsub.f32 %v3097, %v3110
        %v3115 = vmul.f32 %v3111, 1.442695
        %v3116 = vpow.pop %v3115
        %v3117 = vmul.f32 %v3112, 1.442695
        %v3118 = vpow.pop %v3117
        %v3119 = vmul.f32 %v3113, 1.442695
        %v3120 = vpow.pop %v3119
        %v3121 = vmul.f32 %v3114, 1.442695
        %v3122 = vpow.pop %v3121
        %v3123 = vsel %vm2940, %v3116, 0.0
        %v3124 = vsel %vm2940, %v3118, 0.0
        %v3125 = vadd.f32 %v3123, %v3124
        %v3126 = vsel %vm2940, %v3120, 0.0
        %v3127 = vadd.f32 %v3125, %v3126
        %v3128 = vsel %vm2940, %v3122, 0.0
        %v3129 = vadd.f32 %v3127, %v3128
        %v3130 = vrot.slane %v3129, 4
        %v3131 = vadd.f32 %v3129, %v3130
        %v3132 = vrot.slane %v3131, 2
        %v3133 = vadd.f32 %v3131, %v3132
        %v3134 = vrot.slane %v3133, 1
        %v3135 = vadd.f32 %v3133, %v3134
        %v3136 = vlog2.pop %v3135
        %v3137 = vmul.f32 %v3136, 0.6931472
        %v3138 = vsub.f32 %v3111, %v3137
        %v3139 = vsub.f32 %v3112, %v3137
        %v3140 = vsub.f32 %v3113, %v3137
        %v3141 = vsub.f32 %v3114, %v3137
        %3142 = vst.msk [vmem:[%s3089 + $0x20] sm:$0xff] %vm2940, %v3138
        %3143 = vst.msk [vmem:[%s3089 + $0x28] sm:$0xff] %vm2940, %v3139
        %3144 = vst.msk [vmem:[%s3089 + $0x30] sm:$0xff] %vm2940, %v3140
        %3145 = vst.msk [vmem:[%s3089 + $0x38] sm:$0xff] %vm2940, %v3141
        %s3146 = smul.u32 2, %s20
        %p3147 = scmp.lt.s32.totalorder %s3146, 3
        %s3148 = scalar_select %p3147, %s3146, 3
        %s3149 = smul.addr %s3148, 8
        %s3150 = smul.addr %s3149, 8
        %s3151 = scalar_lea.vmem %s5, %s3150
        // Predicated region
        $region56: #{tpu_custom_call.1} parent=39 // pred_check
          %p3152 = pneg %p148
        $region57: #{tpu_custom_call.1} parent=39 // pred_check_branch
          %3154 = sbr.rel (%p3152) target = $region59
        $region58: #{tpu_custom_call.1} parent=39 // pred_region
          %s3155 = smul.u32 2, %s20
        $region59: #{tpu_custom_call.1} parent=39 // pred_fallthru
          _
      $region40: #{tpu_custom_call.1} parent=5 // pred_fallthru
        _
      %p3156 = scmp.le.s32.totalorder 2, %s15
      // Predicated region
      $region60: #{tpu_custom_call.1} parent=5 // pred_check
        %p3157 = pneg %p3156
      $region61: #{tpu_custom_call.1} parent=5 // pred_check_branch
        %3159 = sbr.rel (%p3157) target = $region63
      $region62: #{tpu_custom_call.1} parent=5 // pred_region
        %s3160 = ssub.s32 %s15, 2
        // Predicated region
        $region64: #{tpu_custom_call.1} parent=62 // pred_check
          %p3161 = pneg %p154
        $region65: #{tpu_custom_call.1} parent=62 // pred_check_branch
          %3163 = sbr.rel (%p3161) target = $region67
        $region66: #{tpu_custom_call.1} parent=62 // pred_region
          %s3164 = smul.u32 2, %s21
          %p3165 = scmp.lt.s32.totalorder %s3164, 3
          %s3166 = scalar_select %p3165, %s3164, 3
          %s3167 = smul.addr %s3166, 8
          %s3168 = smul.addr %s3167, 8
          %s3169 = scalar_lea.vmem %s5, %s3168
        $region67: #{tpu_custom_call.1} parent=62 // pred_fallthru
          _
      $region63: #{tpu_custom_call.1} parent=5 // pred_fallthru
        _
    $region6: #{tpu_custom_call.1} parent=1 // loop_footer
      %s19 = sadd.s32 1, %s15
    $region7: #{tpu_custom_call.1} parent=1 // loop_footer_branch
      %14 = sbr.rel target = $region3
    $region8: #{tpu_custom_call.1} parent=1 // loop_exit
      _
    %3170 = vsyncpa [#allocation3], 1
    %s3171 = scalar_lea.sflag [#allocation3], 1
    %3172 = vsyncpa %s3171, 1
    %3173 = vsyncpa [#allocation5], 1

</llo_original>
